<compile_context>
chip_gen: v7x
topology: tpu7x:2x2x1
jax: 0.10.0
libtpu: 0.0.40
codegen_flags: <defaults>
</compile_context>

<pallas_src>
import jax
import jax.numpy as jnp
from jax.experimental import pallas as pl
from jax.experimental.pallas import tpu as pltpu

D = 32           # inner dim
H = 2            # attention heads
DH = D // H      # head dim
FF = 4 * D       # feed-forward inner dim
EPS_NORM = 1e-6  # norm1 / norm2 eps (LTX block default)
EPS_QK = 1e-5    # qk RMSNorm eps (diffusers Attention default)


def _rms(x, eps, weight=None):
    var = jnp.mean(x * x, axis=-1, keepdims=True)
    y = x * jax.lax.rsqrt(var + eps)
    if weight is not None:
        y = y * weight
    return y


def ltx_block_kernel(
    hs_ref, enc_ref, ada_ref, cos_ref, sin_ref, mask_ref,
    wqkv1_ref, bqkv1_ref, nq1_ref, nk1_ref, wo1_ref, bo1_ref,
    wq2_ref, bq2_ref, wkv2_ref, bkv2_ref, nq2_ref, nk2_ref, wo2_ref, bo2_ref,
    wf1_ref, bf1_ref, wf2_ref, bf2_ref,
    out_ref,
):
    x = hs_ref[0]          # [S, D]
    enc = enc_ref[0]       # [Se, D]
    ada = ada_ref[0]       # [6, D]  (scale_shift_table + temb, precomputed)
    cos = cos_ref[0]       # [S, D]  (per-head half-split permuted)
    sin = sin_ref[0]       # [S, D]  (per-head half-split permuted)
    mask = mask_ref[0]     # [1, Se] additive bias

    shift_msa, scale_msa, gate_msa = ada[0:1], ada[1:2], ada[2:3]
    shift_mlp, scale_mlp, gate_mlp = ada[3:4], ada[4:5], ada[5:6]

    scale = 1.0 / (DH ** 0.5)

    def rotate_half(t):
        # q/k are in per-head (even | odd) half-split layout, so the interleaved
        # RoPE rotation is exactly (-odd_half | even_half) within each head block.
        parts = []
        for h in range(H):
            a = t[:, h * DH:h * DH + DH // 2]           # even originals
            b = t[:, h * DH + DH // 2:(h + 1) * DH]     # odd originals
            parts.append(-b)
            parts.append(a)
        return jnp.concatenate(parts, axis=-1)

    def attention(q, k, v, wo, bo, bias=None):
        sq = q.shape[0]
        # Per-head score matmuls, stacked along sublanes -> single softmax pass.
        s = jnp.concatenate(
            [jnp.dot(q[:, h * DH:(h + 1) * DH], k[:, h * DH:(h + 1) * DH].T,
                     preferred_element_type=jnp.float32) for h in range(H)],
            axis=0) * scale                               # [H*sq, S_kv]
        if bias is not None:
            s = s + bias
        s = s - jnp.max(s, axis=-1, keepdims=True)
        p = jnp.exp(s)
        p = p * pl.reciprocal(jnp.sum(p, axis=-1, keepdims=True), approx=True)
        # Per-head PV matmuls, concat'd along lanes -> one fused output projection.
        o = jnp.concatenate(
            [jnp.dot(p[h * sq:(h + 1) * sq, :], v[:, h * DH:(h + 1) * DH],
                     preferred_element_type=jnp.float32) for h in range(H)],
            axis=-1)                                      # [sq, D]
        return jnp.dot(o, wo, preferred_element_type=jnp.float32) + bo

    # ---- norm1 (RMSNorm, no affine) + adaLN modulation ----
    nx = _rms(x, EPS_NORM) * (1.0 + scale_msa) + shift_msa

    # ---- self attention (fused QKV, qk RMSNorm across heads, half-split RoPE) ----
    qkv = jnp.dot(nx, wqkv1_ref[...], preferred_element_type=jnp.float32) + bqkv1_ref[...]
    q = _rms(qkv[:, 0:D], EPS_QK, nq1_ref[...])
    k = _rms(qkv[:, D:2 * D], EPS_QK, nk1_ref[...])
    v = qkv[:, 2 * D:3 * D]
    q = q * cos + rotate_half(q) * sin
    k = k * cos + rotate_half(k) * sin
    x = x + attention(q, k, v, wo1_ref[...], bo1_ref[...]) * gate_msa

    # ---- cross attention (no pre-norm in LTX block, additive encoder mask) ----
    q = jnp.dot(x, wq2_ref[...], preferred_element_type=jnp.float32) + bq2_ref[...]
    kv = jnp.dot(enc, wkv2_ref[...], preferred_element_type=jnp.float32) + bkv2_ref[...]
    q = _rms(q, EPS_QK, nq2_ref[...])
    k = _rms(kv[:, 0:D], EPS_QK, nk2_ref[...])
    v = kv[:, D:2 * D]
    x = x + attention(q, k, v, wo2_ref[...], bo2_ref[...], bias=mask)

    # ---- norm2 + modulation + feed-forward (gelu-tanh) ----
    nx = _rms(x, EPS_NORM) * (1.0 + scale_mlp) + shift_mlp
    hff = jnp.dot(nx, wf1_ref[...], preferred_element_type=jnp.float32) + bf1_ref[...]
    hff = jax.nn.gelu(hff, approximate=True)
    ff = jnp.dot(hff, wf2_ref[...], preferred_element_type=jnp.float32) + bf2_ref[...]
    x = x + ff * gate_mlp

    out_ref[0] = x


def _rope_permutation():
    # Per-head permutation: interleaved (0,1,2,3,...) -> (evens..., odds...) so the
    # in-kernel rotation is a contiguous half swap.  Applying it to the q/k weight
    # columns, biases, qk-norm weights and cos/sin tables leaves per-head q.k
    # dot-products (and hence attention outputs) exactly unchanged.
    idx = []
    for h in range(H):
        base = h * DH
        idx.extend(range(base, base + DH, 2))
        idx.extend(range(base + 1, base + DH, 2))
    return jnp.array(idx, dtype=jnp.int32)


def ltx_transformer_block(hidden_states, encoder_hidden_states, temb,
                          freqs_cos, freqs_sin, encoder_attention_mask, params):
    B, S, _ = hidden_states.shape
    Se = encoder_hidden_states.shape[1]
    perm = _rope_permutation()

    # adaLN precomputed wrapper-side (drops one kernel input + broadcast add).
    ada = params['scale_shift_table'][None] + temb.reshape(B, 6, D)

    # RoPE tables permuted to per-head half-split layout.
    cos_p = freqs_cos[..., perm]
    sin_p = freqs_sin[..., perm]

    # Fused (and RoPE-permuted) projection weights.
    wqkv1 = jnp.concatenate(
        [params['wq1'][:, perm], params['wk1'][:, perm], params['wv1']], axis=1)  # [D, 3D]
    bqkv1 = jnp.concatenate(
        [params['bq1'][:, perm], params['bk1'][:, perm], params['bv1']], axis=1)  # [1, 3D]
    nq1 = params['nq1'][:, perm]
    nk1 = params['nk1'][:, perm]
    wkv2 = jnp.concatenate([params['wk2'], params['wv2']], axis=1)                # [D, 2D]
    bkv2 = jnp.concatenate([params['bk2'], params['bv2']], axis=1)                # [1, 2D]

    def batched(shape):
        nd = len(shape)
        return pl.BlockSpec((1,) + shape, lambda b, _nd=nd: (b,) + (0,) * _nd)

    def full_spec(a):
        nd = a.ndim
        return pl.BlockSpec(a.shape, lambda b, _nd=nd: (0,) * _nd)

    in_arrays = [
        hidden_states, encoder_hidden_states, ada, cos_p, sin_p,
        encoder_attention_mask,
        wqkv1, bqkv1, nq1, nk1, params['wo1'], params['bo1'],
        params['wq2'], params['bq2'], wkv2, bkv2,
        params['nq2'], params['nk2'], params['wo2'], params['bo2'],
        params['wf1'], params['bf1'], params['wf2'], params['bf2'],
    ]
    in_specs = [
        batched((S, D)), batched((Se, D)), batched((6, D)),
        batched((S, D)), batched((S, D)), batched((1, Se)),
    ] + [full_spec(a) for a in in_arrays[6:]]

    return pl.pallas_call(
        ltx_block_kernel,
        out_shape=jax.ShapeDtypeStruct((B, S, D), jnp.float32),
        grid=(B,),
        in_specs=in_specs,
        out_specs=pl.BlockSpec((1, S, D), lambda b: (b, 0, 0)),
        compiler_params=pltpu.CompilerParams(dimension_semantics=("parallel",)),
    )(*in_arrays)


def transformer_layer_forward(inputs, params):
    """Equivalent of TransformerLayer.forward: runs the block, passes the rest through."""
    (hidden_states, encoder_hidden_states, temb, embedded_timestep,
     freqs_cos, freqs_sin, encoder_attention_mask, target) = inputs
    new_hidden = ltx_transformer_block(hidden_states, encoder_hidden_states, temb,
                                       freqs_cos, freqs_sin, encoder_attention_mask, params)
    # make_contiguous is a no-op for JAX arrays.
    return (new_hidden, encoder_hidden_states, temb, embedded_timestep,
            freqs_cos, freqs_sin, encoder_attention_mask, target)


# ----------------------------- pure-JAX reference -----------------------------
def reference_block(hidden, enc, temb, cos, sin, mask_bias, p):
    B, S, _ = hidden.shape

    def rms(x, eps, w=None):
        v = jnp.mean(x * x, axis=-1, keepdims=True)
        y = x * jax.lax.rsqrt(v + eps)
        return y if w is None else y * w

    def rotate(x):
        x2 = x.reshape(x.shape[:-1] + (-1, 2))
        xr = jnp.stack([-x2[..., 1], x2[..., 0]], axis=-1)
        return xr.reshape(x.shape)

    def attention(q, k, v, wo, bo, bias=None):
        qh = q.reshape(B, -1, H, DH).transpose(0, 2, 1, 3)
        kh = k.reshape(B, -1, H, DH).transpose(0, 2, 1, 3)
        vh = v.reshape(B, -1, H, DH).transpose(0, 2, 1, 3)
        s = jnp.einsum('bhqd,bhkd->bhqk', qh, kh) / jnp.sqrt(jnp.float32(DH))
        if bias is not None:
            s = s + bias[:, None, :, :]
        pw = jax.nn.softmax(s, axis=-1)
        o = jnp.einsum('bhqk,bhkd->bhqd', pw, vh)
        o = o.transpose(0, 2, 1, 3).reshape(B, -1, D)
        return o @ wo + bo

    ada = p['scale_shift_table'][None, None] + temb.reshape(B, 1, 6, D)
    shift_msa, scale_msa, gate_msa, shift_mlp, scale_mlp, gate_mlp = [
        ada[:, :, i, :] for i in range(6)]

    nx = rms(hidden, EPS_NORM) * (1 + scale_msa) + shift_msa
    q = nx @ p['wq1'] + p['bq1']
    k = nx @ p['wk1'] + p['bk1']
    v = nx @ p['wv1'] + p['bv1']
    q = rms(q, EPS_QK, p['nq1'])
    k = rms(k, EPS_QK, p['nk1'])
    q = q * cos + rotate(q) * sin
    k = k * cos + rotate(k) * sin
    hidden = hidden + attention(q, k, v, p['wo1'], p['bo1']) * gate_msa

    q = hidden @ p['wq2'] + p['bq2']
    k = enc @ p['wk2'] + p['bk2']
    v = enc @ p['wv2'] + p['bv2']
    q = rms(q, EPS_QK, p['nq2'])
    k = rms(k, EPS_QK, p['nk2'])
    hidden = hidden + attention(q, k, v, p['wo2'], p['bo2'], bias=mask_bias)

    nx = rms(hidden, EPS_NORM) * (1 + scale_mlp) + shift_mlp
    ff = jax.nn.gelu(nx @ p['wf1'] + p['bf1'], approximate=True) @ p['wf2'] + p['bf2']
    return hidden + ff * gate_mlp


# ----------------------------- parameter init -----------------------------
def init_params(key):
    keys = iter(jax.random.split(key, 32))

    def w(shape, scale=0.05):
        return (scale * jax.random.normal(next(keys), shape)).astype(jnp.float32)

    p = {'scale_shift_table':
         (jax.random.normal(next(keys), (6, D)) / (D ** 0.5)).astype(jnp.float32)}
    for suf in ('1', '2'):
        p['wq' + suf] = w((D, D)); p['bq' + suf] = w((1, D))
        p['wk' + suf] = w((D, D)); p['bk' + suf] = w((1, D))
        p['wv' + suf] = w((D, D)); p['bv' + suf] = w((1, D))
        p['wo' + suf] = w((D, D)); p['bo' + suf] = w((1, D))
        p['nq' + suf] = 1.0 + w((1, D)); p['nk' + suf] = 1.0 + w((1, D))
    p['wf1'] = w((D, FF)); p['bf1'] = w((1, FF))
    p['wf2'] = w((FF, D)); p['bf2'] = w((1, D))
    return p


if __name__ == "__main__":
    key = jax.random.PRNGKey(0)
    kp, kin = jax.random.split(key)
    params = init_params(kp)

    B, S, Se = 2, 16, 8
    ks = jax.random.split(kin, 8)
    hidden_states = jax.random.normal(ks[0], (B, S, D), jnp.float32)
    encoder_hidden_states = jax.random.normal(ks[1], (B, Se, D), jnp.float32)
    temb = jax.random.normal(ks[2], (B, 1, 6 * D), jnp.float32)
    embedded_timestep = jax.random.normal(ks[3], (B, 1, D), jnp.float32)
    # RoPE tables (interleaved-duplicated cos/sin, like LTX's repeat_interleave(2))
    angles = jax.random.uniform(ks[4], (B, S, D // 2), jnp.float32, 0.0, 3.14)
    freqs_cos = jnp.repeat(jnp.cos(angles), 2, axis=-1)
    freqs_sin = jnp.repeat(jnp.sin(angles), 2, axis=-1)
    # boolean text mask -> additive bias, as done in the LTX pipeline
    bool_mask = (jax.random.uniform(ks[5], (B, Se)) > 0.2).astype(jnp.float32)
    encoder_attention_mask = ((1.0 - bool_mask) * -10000.0)[:, None, :]  # [B, 1, Se]
    target = jax.random.normal(ks[6], (B, S, D), jnp.float32)

    inputs = (hidden_states, encoder_hidden_states, temb, embedded_timestep,
              freqs_cos, freqs_sin, encoder_attention_mask, target)

    outputs = transformer_layer_forward(inputs, params)
    outputs = jax.tree_util.tree_map(jax.block_until_ready, outputs)

    ref = reference_block(hidden_states, encoder_hidden_states, temb,
                          freqs_cos, freqs_sin, encoder_attention_mask, params)
    # tolerance slightly looser than pure-f32 because the softmax denominator uses
    # the EUP approximate reciprocal (pl.reciprocal(approx=True)).
    assert jnp.allclose(outputs[0], ref, atol=5e-3, rtol=5e-3), "kernel/reference mismatch"
    print("KERNEL_OK")
</pallas_src>

<mosaic_0001>
module attributes {stable_mosaic.version = 11 : i64} {
  func.func @ltx_block_kernel(%arg0: i32, %arg1: memref<1x16x32xf32, #tpu.memory_space<vmem>>, %arg2: memref<1x8x32xf32, #tpu.memory_space<vmem>>, %arg3: memref<1x6x32xf32, #tpu.memory_space<vmem>>, %arg4: memref<1x16x32xf32, #tpu.memory_space<vmem>>, %arg5: memref<1x16x32xf32, #tpu.memory_space<vmem>>, %arg6: memref<1x1x8xf32, #tpu.memory_space<vmem>>, %arg7: memref<32x96xf32, #tpu.memory_space<vmem>>, %arg8: memref<1x96xf32, #tpu.memory_space<vmem>>, %arg9: memref<1x32xf32, #tpu.memory_space<vmem>>, %arg10: memref<1x32xf32, #tpu.memory_space<vmem>>, %arg11: memref<32x32xf32, #tpu.memory_space<vmem>>, %arg12: memref<1x32xf32, #tpu.memory_space<vmem>>, %arg13: memref<32x32xf32, #tpu.memory_space<vmem>>, %arg14: memref<1x32xf32, #tpu.memory_space<vmem>>, %arg15: memref<32x64xf32, #tpu.memory_space<vmem>>, %arg16: memref<1x64xf32, #tpu.memory_space<vmem>>, %arg17: memref<1x32xf32, #tpu.memory_space<vmem>>, %arg18: memref<1x32xf32, #tpu.memory_space<vmem>>, %arg19: memref<32x32xf32, #tpu.memory_space<vmem>>, %arg20: memref<1x32xf32, #tpu.memory_space<vmem>>, %arg21: memref<32x128xf32, #tpu.memory_space<vmem>>, %arg22: memref<1x128xf32, #tpu.memory_space<vmem>>, %arg23: memref<128x32xf32, #tpu.memory_space<vmem>>, %arg24: memref<1x32xf32, #tpu.memory_space<vmem>>, %arg25: memref<1x16x32xf32, #tpu.memory_space<vmem>>) attributes {dimension_semantics = [#tpu.dimension_semantics<parallel>], iteration_bounds = array<i64: 2>, scalar_prefetch = 0 : i64, scratch_operands = 0 : i64, tpu.core_type = #tpu.core_type<tc>, window_params = [{transform_indices = @transform_0, window_bounds = array<i64: 1, 16, 32>}, {transform_indices = @transform_1, window_bounds = array<i64: 1, 8, 32>}, {transform_indices = @transform_2, window_bounds = array<i64: 1, 6, 32>}, {transform_indices = @transform_3, window_bounds = array<i64: 1, 16, 32>}, {transform_indices = @transform_4, window_bounds = array<i64: 1, 16, 32>}, {transform_indices = @transform_5, window_bounds = array<i64: 1, 1, 8>}, {pipeline_mode = #tpu.pipeline_mode<synchronous>, transform_indices = @transform_6, window_bounds = array<i64: 32, 96>}, {pipeline_mode = #tpu.pipeline_mode<synchronous>, transform_indices = @transform_7, window_bounds = array<i64: 1, 96>}, {pipeline_mode = #tpu.pipeline_mode<synchronous>, transform_indices = @transform_8, window_bounds = array<i64: 1, 32>}, {pipeline_mode = #tpu.pipeline_mode<synchronous>, transform_indices = @transform_9, window_bounds = array<i64: 1, 32>}, {pipeline_mode = #tpu.pipeline_mode<synchronous>, transform_indices = @transform_10, window_bounds = array<i64: 32, 32>}, {pipeline_mode = #tpu.pipeline_mode<synchronous>, transform_indices = @transform_11, window_bounds = array<i64: 1, 32>}, {pipeline_mode = #tpu.pipeline_mode<synchronous>, transform_indices = @transform_12, window_bounds = array<i64: 32, 32>}, {pipeline_mode = #tpu.pipeline_mode<synchronous>, transform_indices = @transform_13, window_bounds = array<i64: 1, 32>}, {pipeline_mode = #tpu.pipeline_mode<synchronous>, transform_indices = @transform_14, window_bounds = array<i64: 32, 64>}, {pipeline_mode = #tpu.pipeline_mode<synchronous>, transform_indices = @transform_15, window_bounds = array<i64: 1, 64>}, {pipeline_mode = #tpu.pipeline_mode<synchronous>, transform_indices = @transform_16, window_bounds = array<i64: 1, 32>}, {pipeline_mode = #tpu.pipeline_mode<synchronous>, transform_indices = @transform_17, window_bounds = array<i64: 1, 32>}, {pipeline_mode = #tpu.pipeline_mode<synchronous>, transform_indices = @transform_18, window_bounds = array<i64: 32, 32>}, {pipeline_mode = #tpu.pipeline_mode<synchronous>, transform_indices = @transform_19, window_bounds = array<i64: 1, 32>}, {pipeline_mode = #tpu.pipeline_mode<synchronous>, transform_indices = @transform_20, window_bounds = array<i64: 32, 128>}, {pipeline_mode = #tpu.pipeline_mode<synchronous>, transform_indices = @transform_21, window_bounds = array<i64: 1, 128>}, {pipeline_mode = #tpu.pipeline_mode<synchronous>, transform_indices = @transform_22, window_bounds = array<i64: 128, 32>}, {pipeline_mode = #tpu.pipeline_mode<synchronous>, transform_indices = @transform_23, window_bounds = array<i64: 1, 32>}, {transform_indices = @transform_24, window_bounds = array<i64: 1, 16, 32>}]} {
    %c0 = arith.constant 0 : index
    %c0_0 = arith.constant 0 : index
    %c0_1 = arith.constant 0 : index
    %0 = vector.load %arg1[%c0, %c0_0, %c0_1] : memref<1x16x32xf32, #tpu.memory_space<vmem>>, vector<1x16x32xf32>
    %1 = vector.shape_cast %0 : vector<1x16x32xf32> to vector<16x32xf32>
    %c0_2 = arith.constant 0 : index
    %c0_3 = arith.constant 0 : index
    %c0_4 = arith.constant 0 : index
    %2 = vector.load %arg2[%c0_2, %c0_3, %c0_4] : memref<1x8x32xf32, #tpu.memory_space<vmem>>, vector<1x8x32xf32>
    %3 = vector.shape_cast %2 : vector<1x8x32xf32> to vector<8x32xf32>
    %c0_5 = arith.constant 0 : index
    %c0_6 = arith.constant 0 : index
    %c0_7 = arith.constant 0 : index
    %4 = vector.load %arg3[%c0_5, %c0_6, %c0_7] : memref<1x6x32xf32, #tpu.memory_space<vmem>>, vector<1x6x32xf32>
    %5 = vector.shape_cast %4 : vector<1x6x32xf32> to vector<6x32xf32>
    %c0_8 = arith.constant 0 : index
    %c0_9 = arith.constant 0 : index
    %c0_10 = arith.constant 0 : index
    %6 = vector.load %arg4[%c0_8, %c0_9, %c0_10] : memref<1x16x32xf32, #tpu.memory_space<vmem>>, vector<1x16x32xf32>
    %7 = vector.shape_cast %6 : vector<1x16x32xf32> to vector<16x32xf32>
    %c0_11 = arith.constant 0 : index
    %c0_12 = arith.constant 0 : index
    %c0_13 = arith.constant 0 : index
    %8 = vector.load %arg5[%c0_11, %c0_12, %c0_13] : memref<1x16x32xf32, #tpu.memory_space<vmem>>, vector<1x16x32xf32>
    %9 = vector.shape_cast %8 : vector<1x16x32xf32> to vector<16x32xf32>
    %c0_14 = arith.constant 0 : index
    %c0_15 = arith.constant 0 : index
    %c0_16 = arith.constant 0 : index
    %10 = vector.load %arg6[%c0_14, %c0_15, %c0_16] : memref<1x1x8xf32, #tpu.memory_space<vmem>>, vector<1x1x8xf32>
    %11 = vector.shape_cast %10 : vector<1x1x8xf32> to vector<1x8xf32>
    %12 = vector.extract_strided_slice %5 {offsets = [0, 0], sizes = [1, 32], strides = [1, 1]} : vector<6x32xf32> to vector<1x32xf32>
    %13 = vector.extract_strided_slice %5 {offsets = [1, 0], sizes = [1, 32], strides = [1, 1]} : vector<6x32xf32> to vector<1x32xf32>
    %14 = vector.extract_strided_slice %5 {offsets = [2, 0], sizes = [1, 32], strides = [1, 1]} : vector<6x32xf32> to vector<1x32xf32>
    %15 = vector.extract_strided_slice %5 {offsets = [3, 0], sizes = [1, 32], strides = [1, 1]} : vector<6x32xf32> to vector<1x32xf32>
    %16 = vector.extract_strided_slice %5 {offsets = [4, 0], sizes = [1, 32], strides = [1, 1]} : vector<6x32xf32> to vector<1x32xf32>
    %17 = vector.extract_strided_slice %5 {offsets = [5, 0], sizes = [1, 32], strides = [1, 1]} : vector<6x32xf32> to vector<1x32xf32>
    %18 = arith.mulf %1, %1 : vector<16x32xf32>
    %cst = arith.constant dense<0.000000e+00> : vector<16xf32>
    %19 = vector.multi_reduction <add>, %18, %cst [1] : vector<16x32xf32> to vector<16xf32>
    %20 = vector.shape_cast %19 : vector<16xf32> to vector<16x1xf32>
    %cst_17 = arith.constant 3.200000e+01 : f32
    %21 = vector.broadcast %cst_17 : f32 to vector<16x1xf32>
    %22 = arith.divf %20, %21 : vector<16x1xf32>
    %cst_18 = arith.constant 9.99999997E-7 : f32
    %23 = vector.broadcast %cst_18 : f32 to vector<16x1xf32>
    %24 = arith.addf %22, %23 : vector<16x1xf32>
    %25 = math.rsqrt %24 : vector<16x1xf32>
    %26 = vector.broadcast %25 : vector<16x1xf32> to vector<16x32xf32>
    %27 = arith.mulf %1, %26 : vector<16x32xf32>
    %cst_19 = arith.constant 1.000000e+00 : f32
    %28 = vector.broadcast %cst_19 : f32 to vector<1x32xf32>
    %29 = arith.addf %28, %13 : vector<1x32xf32>
    %30 = vector.broadcast %29 : vector<1x32xf32> to vector<16x32xf32>
    %31 = arith.mulf %27, %30 : vector<16x32xf32>
    %32 = vector.broadcast %12 : vector<1x32xf32> to vector<16x32xf32>
    %33 = arith.addf %31, %32 : vector<16x32xf32>
    %c0_20 = arith.constant 0 : index
    %c0_21 = arith.constant 0 : index
    %34 = vector.load %arg7[%c0_20, %c0_21] : memref<32x96xf32, #tpu.memory_space<vmem>>, vector<32x96xf32>
    %cst_22 = arith.constant dense<0.000000e+00> : vector<16x96xf32>
    %35 = tpu.matmul %33, %34, %cst_22 {dimension_numbers = #tpu.dot_dimension_numbers<[1], [0], [0], [1], [0, 0, 1, 1], [], []>} : vector<16x32xf32>, vector<32x96xf32>, vector<16x96xf32> -> vector<16x96xf32>
    %c0_23 = arith.constant 0 : index
    %c0_24 = arith.constant 0 : index
    %36 = vector.load %arg8[%c0_23, %c0_24] : memref<1x96xf32, #tpu.memory_space<vmem>>, vector<1x96xf32>
    %37 = vector.broadcast %36 : vector<1x96xf32> to vector<16x96xf32>
    %38 = arith.addf %35, %37 : vector<16x96xf32>
    %39 = vector.extract_strided_slice %38 {offsets = [0, 0], sizes = [16, 32], strides = [1, 1]} : vector<16x96xf32> to vector<16x32xf32>
    %c0_25 = arith.constant 0 : index
    %c0_26 = arith.constant 0 : index
    %40 = vector.load %arg9[%c0_25, %c0_26] : memref<1x32xf32, #tpu.memory_space<vmem>>, vector<1x32xf32>
    %41 = arith.mulf %39, %39 : vector<16x32xf32>
    %cst_27 = arith.constant dense<0.000000e+00> : vector<16xf32>
    %42 = vector.multi_reduction <add>, %41, %cst_27 [1] : vector<16x32xf32> to vector<16xf32>
    %43 = vector.shape_cast %42 : vector<16xf32> to vector<16x1xf32>
    %cst_28 = arith.constant 3.200000e+01 : f32
    %44 = vector.broadcast %cst_28 : f32 to vector<16x1xf32>
    %45 = arith.divf %43, %44 : vector<16x1xf32>
    %cst_29 = arith.constant 9.99999974E-6 : f32
    %46 = vector.broadcast %cst_29 : f32 to vector<16x1xf32>
    %47 = arith.addf %45, %46 : vector<16x1xf32>
    %48 = math.rsqrt %47 : vector<16x1xf32>
    %49 = vector.broadcast %48 : vector<16x1xf32> to vector<16x32xf32>
    %50 = arith.mulf %39, %49 : vector<16x32xf32>
    %51 = vector.broadcast %40 : vector<1x32xf32> to vector<16x32xf32>
    %52 = arith.mulf %50, %51 : vector<16x32xf32>
    %53 = vector.extract_strided_slice %38 {offsets = [0, 32], sizes = [16, 32], strides = [1, 1]} : vector<16x96xf32> to vector<16x32xf32>
    %c0_30 = arith.constant 0 : index
    %c0_31 = arith.constant 0 : index
    %54 = vector.load %arg10[%c0_30, %c0_31] : memref<1x32xf32, #tpu.memory_space<vmem>>, vector<1x32xf32>
    %55 = arith.mulf %53, %53 : vector<16x32xf32>
    %cst_32 = arith.constant dense<0.000000e+00> : vector<16xf32>
    %56 = vector.multi_reduction <add>, %55, %cst_32 [1] : vector<16x32xf32> to vector<16xf32>
    %57 = vector.shape_cast %56 : vector<16xf32> to vector<16x1xf32>
    %cst_33 = arith.constant 3.200000e+01 : f32
    %58 = vector.broadcast %cst_33 : f32 to vector<16x1xf32>
    %59 = arith.divf %57, %58 : vector<16x1xf32>
    %cst_34 = arith.constant 9.99999974E-6 : f32
    %60 = vector.broadcast %cst_34 : f32 to vector<16x1xf32>
    %61 = arith.addf %59, %60 : vector<16x1xf32>
    %62 = math.rsqrt %61 : vector<16x1xf32>
    %63 = vector.broadcast %62 : vector<16x1xf32> to vector<16x32xf32>
    %64 = arith.mulf %53, %63 : vector<16x32xf32>
    %65 = vector.broadcast %54 : vector<1x32xf32> to vector<16x32xf32>
    %66 = arith.mulf %64, %65 : vector<16x32xf32>
    %67 = vector.extract_strided_slice %38 {offsets = [0, 64], sizes = [16, 32], strides = [1, 1]} : vector<16x96xf32> to vector<16x32xf32>
    %68 = arith.mulf %52, %7 : vector<16x32xf32>
    %69 = vector.extract_strided_slice %52 {offsets = [0, 0], sizes = [16, 8], strides = [1, 1]} : vector<16x32xf32> to vector<16x8xf32>
    %70 = vector.extract_strided_slice %52 {offsets = [0, 8], sizes = [16, 8], strides = [1, 1]} : vector<16x32xf32> to vector<16x8xf32>
    %cst_35 = arith.constant 0.000000e+00 : f32
    %71 = vector.broadcast %cst_35 : f32 to vector<16x8xf32>
    %72 = arith.subf %71, %70 : vector<16x8xf32>
    %73 = vector.extract_strided_slice %52 {offsets = [0, 16], sizes = [16, 8], strides = [1, 1]} : vector<16x32xf32> to vector<16x8xf32>
    %74 = vector.extract_strided_slice %52 {offsets = [0, 24], sizes = [16, 8], strides = [1, 1]} : vector<16x32xf32> to vector<16x8xf32>
    %cst_36 = arith.constant 0.000000e+00 : f32
    %75 = vector.broadcast %cst_36 : f32 to vector<16x8xf32>
    %76 = arith.subf %75, %74 : vector<16x8xf32>
    %77 = tpu.concatenate %72, %69, %76, %73 in 1 : vector<16x8xf32>, vector<16x8xf32>, vector<16x8xf32>, vector<16x8xf32> -> vector<16x32xf32>
    %78 = arith.mulf %77, %9 : vector<16x32xf32>
    %79 = arith.addf %68, %78 : vector<16x32xf32>
    %80 = arith.mulf %66, %7 : vector<16x32xf32>
    %81 = vector.extract_strided_slice %66 {offsets = [0, 0], sizes = [16, 8], strides = [1, 1]} : vector<16x32xf32> to vector<16x8xf32>
    %82 = vector.extract_strided_slice %66 {offsets = [0, 8], sizes = [16, 8], strides = [1, 1]} : vector<16x32xf32> to vector<16x8xf32>
    %cst_37 = arith.constant 0.000000e+00 : f32
    %83 = vector.broadcast %cst_37 : f32 to vector<16x8xf32>
    %84 = arith.subf %83, %82 : vector<16x8xf32>
    %85 = vector.extract_strided_slice %66 {offsets = [0, 16], sizes = [16, 8], strides = [1, 1]} : vector<16x32xf32> to vector<16x8xf32>
    %86 = vector.extract_strided_slice %66 {offsets = [0, 24], sizes = [16, 8], strides = [1, 1]} : vector<16x32xf32> to vector<16x8xf32>
    %cst_38 = arith.constant 0.000000e+00 : f32
    %87 = vector.broadcast %cst_38 : f32 to vector<16x8xf32>
    %88 = arith.subf %87, %86 : vector<16x8xf32>
    %89 = tpu.concatenate %84, %81, %88, %85 in 1 : vector<16x8xf32>, vector<16x8xf32>, vector<16x8xf32>, vector<16x8xf32> -> vector<16x32xf32>
    %90 = arith.mulf %89, %9 : vector<16x32xf32>
    %91 = arith.addf %80, %90 : vector<16x32xf32>
    %c0_39 = arith.constant 0 : index
    %c0_40 = arith.constant 0 : index
    %92 = vector.load %arg11[%c0_39, %c0_40] : memref<32x32xf32, #tpu.memory_space<vmem>>, vector<32x32xf32>
    %c0_41 = arith.constant 0 : index
    %c0_42 = arith.constant 0 : index
    %93 = vector.load %arg12[%c0_41, %c0_42] : memref<1x32xf32, #tpu.memory_space<vmem>>, vector<1x32xf32>
    %94 = vector.extract_strided_slice %79 {offsets = [0, 0], sizes = [16, 16], strides = [1, 1]} : vector<16x32xf32> to vector<16x16xf32>
    %95 = vector.extract_strided_slice %91 {offsets = [0, 0], sizes = [16, 16], strides = [1, 1]} : vector<16x32xf32> to vector<16x16xf32>
    %96 = tpu.transpose %95, [1, 0] : vector<16x16xf32> -> vector<16x16xf32>
    %cst_43 = arith.constant dense<0.000000e+00> : vector<16x16xf32>
    %97 = tpu.matmul %94, %96, %cst_43 {dimension_numbers = #tpu.dot_dimension_numbers<[1], [0], [0], [1], [0, 0, 1, 1], [], []>} : vector<16x16xf32>, vector<16x16xf32>, vector<16x16xf32> -> vector<16x16xf32>
    %98 = vector.extract_strided_slice %79 {offsets = [0, 16], sizes = [16, 16], strides = [1, 1]} : vector<16x32xf32> to vector<16x16xf32>
    %99 = vector.extract_strided_slice %91 {offsets = [0, 16], sizes = [16, 16], strides = [1, 1]} : vector<16x32xf32> to vector<16x16xf32>
    %100 = tpu.transpose %99, [1, 0] : vector<16x16xf32> -> vector<16x16xf32>
    %cst_44 = arith.constant dense<0.000000e+00> : vector<16x16xf32>
    %101 = tpu.matmul %98, %100, %cst_44 {dimension_numbers = #tpu.dot_dimension_numbers<[1], [0], [0], [1], [0, 0, 1, 1], [], []>} : vector<16x16xf32>, vector<16x16xf32>, vector<16x16xf32> -> vector<16x16xf32>
    %102 = tpu.concatenate %97, %101 in 0 : vector<16x16xf32>, vector<16x16xf32> -> vector<32x16xf32>
    %cst_45 = arith.constant 2.500000e-01 : f32
    %103 = vector.broadcast %cst_45 : f32 to vector<32x16xf32>
    %104 = arith.mulf %102, %103 : vector<32x16xf32>
    %cst_46 = arith.constant dense<0xFF800000> : vector<32xf32>
    %105 = vector.multi_reduction <maximumf>, %104, %cst_46 [1] : vector<32x16xf32> to vector<32xf32>
    %106 = vector.shape_cast %105 : vector<32xf32> to vector<32x1xf32>
    %107 = vector.broadcast %106 : vector<32x1xf32> to vector<32x16xf32>
    %108 = arith.subf %104, %107 : vector<32x16xf32>
    %109 = math.exp %108 : vector<32x16xf32>
    %cst_47 = arith.constant dense<0.000000e+00> : vector<32xf32>
    %110 = vector.multi_reduction <add>, %109, %cst_47 [1] : vector<32x16xf32> to vector<32xf32>
    %111 = vector.shape_cast %110 : vector<32xf32> to vector<32x1xf32>
    %112 = tpu.reciprocal %111 {approx = true} : vector<32x1xf32> -> vector<32x1xf32>
    %113 = vector.broadcast %112 : vector<32x1xf32> to vector<32x16xf32>
    %114 = arith.mulf %109, %113 : vector<32x16xf32>
    %115 = vector.extract_strided_slice %114 {offsets = [0, 0], sizes = [16, 16], strides = [1, 1]} : vector<32x16xf32> to vector<16x16xf32>
    %116 = vector.extract_strided_slice %67 {offsets = [0, 0], sizes = [16, 16], strides = [1, 1]} : vector<16x32xf32> to vector<16x16xf32>
    %cst_48 = arith.constant dense<0.000000e+00> : vector<16x16xf32>
    %117 = tpu.matmul %115, %116, %cst_48 {dimension_numbers = #tpu.dot_dimension_numbers<[1], [0], [0], [1], [0, 0, 1, 1], [], []>} : vector<16x16xf32>, vector<16x16xf32>, vector<16x16xf32> -> vector<16x16xf32>
    %118 = vector.extract_strided_slice %114 {offsets = [16, 0], sizes = [16, 16], strides = [1, 1]} : vector<32x16xf32> to vector<16x16xf32>
    %119 = vector.extract_strided_slice %67 {offsets = [0, 16], sizes = [16, 16], strides = [1, 1]} : vector<16x32xf32> to vector<16x16xf32>
    %cst_49 = arith.constant dense<0.000000e+00> : vector<16x16xf32>
    %120 = tpu.matmul %118, %119, %cst_49 {dimension_numbers = #tpu.dot_dimension_numbers<[1], [0], [0], [1], [0, 0, 1, 1], [], []>} : vector<16x16xf32>, vector<16x16xf32>, vector<16x16xf32> -> vector<16x16xf32>
    %121 = tpu.concatenate %117, %120 in 1 : vector<16x16xf32>, vector<16x16xf32> -> vector<16x32xf32>
    %cst_50 = arith.constant dense<0.000000e+00> : vector<16x32xf32>
    %122 = tpu.matmul %121, %92, %cst_50 {dimension_numbers = #tpu.dot_dimension_numbers<[1], [0], [0], [1], [0, 0, 1, 1], [], []>} : vector<16x32xf32>, vector<32x32xf32>, vector<16x32xf32> -> vector<16x32xf32>
    %123 = vector.broadcast %93 : vector<1x32xf32> to vector<16x32xf32>
    %124 = arith.addf %122, %123 : vector<16x32xf32>
    %125 = vector.broadcast %14 : vector<1x32xf32> to vector<16x32xf32>
    %126 = arith.mulf %124, %125 : vector<16x32xf32>
    %127 = arith.addf %1, %126 : vector<16x32xf32>
    %c0_51 = arith.constant 0 : index
    %c0_52 = arith.constant 0 : index
    %128 = vector.load %arg13[%c0_51, %c0_52] : memref<32x32xf32, #tpu.memory_space<vmem>>, vector<32x32xf32>
    %cst_53 = arith.constant dense<0.000000e+00> : vector<16x32xf32>
    %129 = tpu.matmul %127, %128, %cst_53 {dimension_numbers = #tpu.dot_dimension_numbers<[1], [0], [0], [1], [0, 0, 1, 1], [], []>} : vector<16x32xf32>, vector<32x32xf32>, vector<16x32xf32> -> vector<16x32xf32>
    %c0_54 = arith.constant 0 : index
    %c0_55 = arith.constant 0 : index
    %130 = vector.load %arg14[%c0_54, %c0_55] : memref<1x32xf32, #tpu.memory_space<vmem>>, vector<1x32xf32>
    %131 = vector.broadcast %130 : vector<1x32xf32> to vector<16x32xf32>
    %132 = arith.addf %129, %131 : vector<16x32xf32>
    %c0_56 = arith.constant 0 : index
    %c0_57 = arith.constant 0 : index
    %133 = vector.load %arg15[%c0_56, %c0_57] : memref<32x64xf32, #tpu.memory_space<vmem>>, vector<32x64xf32>
    %cst_58 = arith.constant dense<0.000000e+00> : vector<8x64xf32>
    %134 = tpu.matmul %3, %133, %cst_58 {dimension_numbers = #tpu.dot_dimension_numbers<[1], [0], [0], [1], [0, 0, 1, 1], [], []>} : vector<8x32xf32>, vector<32x64xf32>, vector<8x64xf32> -> vector<8x64xf32>
    %c0_59 = arith.constant 0 : index
    %c0_60 = arith.constant 0 : index
    %135 = vector.load %arg16[%c0_59, %c0_60] : memref<1x64xf32, #tpu.memory_space<vmem>>, vector<1x64xf32>
    %136 = vector.broadcast %135 : vector<1x64xf32> to vector<8x64xf32>
    %137 = arith.addf %134, %136 : vector<8x64xf32>
    %c0_61 = arith.constant 0 : index
    %c0_62 = arith.constant 0 : index
    %138 = vector.load %arg17[%c0_61, %c0_62] : memref<1x32xf32, #tpu.memory_space<vmem>>, vector<1x32xf32>
    %139 = arith.mulf %132, %132 : vector<16x32xf32>
    %cst_63 = arith.constant dense<0.000000e+00> : vector<16xf32>
    %140 = vector.multi_reduction <add>, %139, %cst_63 [1] : vector<16x32xf32> to vector<16xf32>
    %141 = vector.shape_cast %140 : vector<16xf32> to vector<16x1xf32>
    %cst_64 = arith.constant 3.200000e+01 : f32
    %142 = vector.broadcast %cst_64 : f32 to vector<16x1xf32>
    %143 = arith.divf %141, %142 : vector<16x1xf32>
    %cst_65 = arith.constant 9.99999974E-6 : f32
    %144 = vector.broadcast %cst_65 : f32 to vector<16x1xf32>
    %145 = arith.addf %143, %144 : vector<16x1xf32>
    %146 = math.rsqrt %145 : vector<16x1xf32>
    %147 = vector.broadcast %146 : vector<16x1xf32> to vector<16x32xf32>
    %148 = arith.mulf %132, %147 : vector<16x32xf32>
    %149 = vector.broadcast %138 : vector<1x32xf32> to vector<16x32xf32>
    %150 = arith.mulf %148, %149 : vector<16x32xf32>
    %151 = vector.extract_strided_slice %137 {offsets = [0, 0], sizes = [8, 32], strides = [1, 1]} : vector<8x64xf32> to vector<8x32xf32>
    %c0_66 = arith.constant 0 : index
    %c0_67 = arith.constant 0 : index
    %152 = vector.load %arg18[%c0_66, %c0_67] : memref<1x32xf32, #tpu.memory_space<vmem>>, vector<1x32xf32>
    %153 = arith.mulf %151, %151 : vector<8x32xf32>
    %cst_68 = arith.constant dense<0.000000e+00> : vector<8xf32>
    %154 = vector.multi_reduction <add>, %153, %cst_68 [1] : vector<8x32xf32> to vector<8xf32>
    %155 = vector.shape_cast %154 : vector<8xf32> to vector<8x1xf32>
    %cst_69 = arith.constant 3.200000e+01 : f32
    %156 = vector.broadcast %cst_69 : f32 to vector<8x1xf32>
    %157 = arith.divf %155, %156 : vector<8x1xf32>
    %cst_70 = arith.constant 9.99999974E-6 : f32
    %158 = vector.broadcast %cst_70 : f32 to vector<8x1xf32>
    %159 = arith.addf %157, %158 : vector<8x1xf32>
    %160 = math.rsqrt %159 : vector<8x1xf32>
    %161 = vector.broadcast %160 : vector<8x1xf32> to vector<8x32xf32>
    %162 = arith.mulf %151, %161 : vector<8x32xf32>
    %163 = vector.broadcast %152 : vector<1x32xf32> to vector<8x32xf32>
    %164 = arith.mulf %162, %163 : vector<8x32xf32>
    %165 = vector.extract_strided_slice %137 {offsets = [0, 32], sizes = [8, 32], strides = [1, 1]} : vector<8x64xf32> to vector<8x32xf32>
    %c0_71 = arith.constant 0 : index
    %c0_72 = arith.constant 0 : index
    %166 = vector.load %arg19[%c0_71, %c0_72] : memref<32x32xf32, #tpu.memory_space<vmem>>, vector<32x32xf32>
    %c0_73 = arith.constant 0 : index
    %c0_74 = arith.constant 0 : index
    %167 = vector.load %arg20[%c0_73, %c0_74] : memref<1x32xf32, #tpu.memory_space<vmem>>, vector<1x32xf32>
    %168 = vector.extract_strided_slice %150 {offsets = [0, 0], sizes = [16, 16], strides = [1, 1]} : vector<16x32xf32> to vector<16x16xf32>
    %169 = vector.extract_strided_slice %164 {offsets = [0, 0], sizes = [8, 16], strides = [1, 1]} : vector<8x32xf32> to vector<8x16xf32>
    %170 = tpu.transpose %169, [1, 0] : vector<8x16xf32> -> vector<16x8xf32>
    %cst_75 = arith.constant dense<0.000000e+00> : vector<16x8xf32>
    %171 = tpu.matmul %168, %170, %cst_75 {dimension_numbers = #tpu.dot_dimension_numbers<[1], [0], [0], [1], [0, 0, 1, 1], [], []>} : vector<16x16xf32>, vector<16x8xf32>, vector<16x8xf32> -> vector<16x8xf32>
    %172 = vector.extract_strided_slice %150 {offsets = [0, 16], sizes = [16, 16], strides = [1, 1]} : vector<16x32xf32> to vector<16x16xf32>
    %173 = vector.extract_strided_slice %164 {offsets = [0, 16], sizes = [8, 16], strides = [1, 1]} : vector<8x32xf32> to vector<8x16xf32>
    %174 = tpu.transpose %173, [1, 0] : vector<8x16xf32> -> vector<16x8xf32>
    %cst_76 = arith.constant dense<0.000000e+00> : vector<16x8xf32>
    %175 = tpu.matmul %172, %174, %cst_76 {dimension_numbers = #tpu.dot_dimension_numbers<[1], [0], [0], [1], [0, 0, 1, 1], [], []>} : vector<16x16xf32>, vector<16x8xf32>, vector<16x8xf32> -> vector<16x8xf32>
    %176 = tpu.concatenate %171, %175 in 0 : vector<16x8xf32>, vector<16x8xf32> -> vector<32x8xf32>
    %cst_77 = arith.constant 2.500000e-01 : f32
    %177 = vector.broadcast %cst_77 : f32 to vector<32x8xf32>
    %178 = arith.mulf %176, %177 : vector<32x8xf32>
    %179 = vector.broadcast %11 : vector<1x8xf32> to vector<32x8xf32>
    %180 = arith.addf %178, %179 : vector<32x8xf32>
    %cst_78 = arith.constant dense<0xFF800000> : vector<32xf32>
    %181 = vector.multi_reduction <maximumf>, %180, %cst_78 [1] : vector<32x8xf32> to vector<32xf32>
    %182 = vector.shape_cast %181 : vector<32xf32> to vector<32x1xf32>
    %183 = vector.broadcast %182 : vector<32x1xf32> to vector<32x8xf32>
    %184 = arith.subf %180, %183 : vector<32x8xf32>
    %185 = math.exp %184 : vector<32x8xf32>
    %cst_79 = arith.constant dense<0.000000e+00> : vector<32xf32>
    %186 = vector.multi_reduction <add>, %185, %cst_79 [1] : vector<32x8xf32> to vector<32xf32>
    %187 = vector.shape_cast %186 : vector<32xf32> to vector<32x1xf32>
    %188 = tpu.reciprocal %187 {approx = true} : vector<32x1xf32> -> vector<32x1xf32>
    %189 = vector.broadcast %188 : vector<32x1xf32> to vector<32x8xf32>
    %190 = arith.mulf %185, %189 : vector<32x8xf32>
    %191 = vector.extract_strided_slice %190 {offsets = [0, 0], sizes = [16, 8], strides = [1, 1]} : vector<32x8xf32> to vector<16x8xf32>
    %192 = vector.extract_strided_slice %165 {offsets = [0, 0], sizes = [8, 16], strides = [1, 1]} : vector<8x32xf32> to vector<8x16xf32>
    %cst_80 = arith.constant dense<0.000000e+00> : vector<16x16xf32>
    %193 = tpu.matmul %191, %192, %cst_80 {dimension_numbers = #tpu.dot_dimension_numbers<[1], [0], [0], [1], [0, 0, 1, 1], [], []>} : vector<16x8xf32>, vector<8x16xf32>, vector<16x16xf32> -> vector<16x16xf32>
    %194 = vector.extract_strided_slice %190 {offsets = [16, 0], sizes = [16, 8], strides = [1, 1]} : vector<32x8xf32> to vector<16x8xf32>
    %195 = vector.extract_strided_slice %165 {offsets = [0, 16], sizes = [8, 16], strides = [1, 1]} : vector<8x32xf32> to vector<8x16xf32>
    %cst_81 = arith.constant dense<0.000000e+00> : vector<16x16xf32>
    %196 = tpu.matmul %194, %195, %cst_81 {dimension_numbers = #tpu.dot_dimension_numbers<[1], [0], [0], [1], [0, 0, 1, 1], [], []>} : vector<16x8xf32>, vector<8x16xf32>, vector<16x16xf32> -> vector<16x16xf32>
    %197 = tpu.concatenate %193, %196 in 1 : vector<16x16xf32>, vector<16x16xf32> -> vector<16x32xf32>
    %cst_82 = arith.constant dense<0.000000e+00> : vector<16x32xf32>
    %198 = tpu.matmul %197, %166, %cst_82 {dimension_numbers = #tpu.dot_dimension_numbers<[1], [0], [0], [1], [0, 0, 1, 1], [], []>} : vector<16x32xf32>, vector<32x32xf32>, vector<16x32xf32> -> vector<16x32xf32>
    %199 = vector.broadcast %167 : vector<1x32xf32> to vector<16x32xf32>
    %200 = arith.addf %198, %199 : vector<16x32xf32>
    %201 = arith.addf %127, %200 : vector<16x32xf32>
    %202 = arith.mulf %201, %201 : vector<16x32xf32>
    %cst_83 = arith.constant dense<0.000000e+00> : vector<16xf32>
    %203 = vector.multi_reduction <add>, %202, %cst_83 [1] : vector<16x32xf32> to vector<16xf32>
    %204 = vector.shape_cast %203 : vector<16xf32> to vector<16x1xf32>
    %cst_84 = arith.constant 3.200000e+01 : f32
    %205 = vector.broadcast %cst_84 : f32 to vector<16x1xf32>
    %206 = arith.divf %204, %205 : vector<16x1xf32>
    %cst_85 = arith.constant 9.99999997E-7 : f32
    %207 = vector.broadcast %cst_85 : f32 to vector<16x1xf32>
    %208 = arith.addf %206, %207 : vector<16x1xf32>
    %209 = math.rsqrt %208 : vector<16x1xf32>
    %210 = vector.broadcast %209 : vector<16x1xf32> to vector<16x32xf32>
    %211 = arith.mulf %201, %210 : vector<16x32xf32>
    %cst_86 = arith.constant 1.000000e+00 : f32
    %212 = vector.broadcast %cst_86 : f32 to vector<1x32xf32>
    %213 = arith.addf %212, %16 : vector<1x32xf32>
    %214 = vector.broadcast %213 : vector<1x32xf32> to vector<16x32xf32>
    %215 = arith.mulf %211, %214 : vector<16x32xf32>
    %216 = vector.broadcast %15 : vector<1x32xf32> to vector<16x32xf32>
    %217 = arith.addf %215, %216 : vector<16x32xf32>
    %c0_87 = arith.constant 0 : index
    %c0_88 = arith.constant 0 : index
    %218 = vector.load %arg21[%c0_87, %c0_88] : memref<32x128xf32, #tpu.memory_space<vmem>>, vector<32x128xf32>
    %cst_89 = arith.constant dense<0.000000e+00> : vector<16x128xf32>
    %219 = tpu.matmul %217, %218, %cst_89 {dimension_numbers = #tpu.dot_dimension_numbers<[1], [0], [0], [1], [0, 0, 1, 1], [], []>} : vector<16x32xf32>, vector<32x128xf32>, vector<16x128xf32> -> vector<16x128xf32>
    %c0_90 = arith.constant 0 : index
    %c0_91 = arith.constant 0 : index
    %220 = vector.load %arg22[%c0_90, %c0_91] : memref<1x128xf32, #tpu.memory_space<vmem>>, vector<1x128xf32>
    %221 = vector.broadcast %220 : vector<1x128xf32> to vector<16x128xf32>
    %222 = arith.addf %219, %221 : vector<16x128xf32>
    %223 = arith.mulf %222, %222 : vector<16x128xf32>
    %224 = arith.mulf %222, %223 : vector<16x128xf32>
    %cst_92 = arith.constant 4.471500e-02 : f32
    %225 = vector.broadcast %cst_92 : f32 to vector<16x128xf32>
    %226 = arith.mulf %225, %224 : vector<16x128xf32>
    %227 = arith.addf %222, %226 : vector<16x128xf32>
    %cst_93 = arith.constant 0.797884583 : f32
    %228 = vector.broadcast %cst_93 : f32 to vector<16x128xf32>
    %229 = arith.mulf %228, %227 : vector<16x128xf32>
    %230 = math.tanh %229 : vector<16x128xf32>
    %cst_94 = arith.constant 1.000000e+00 : f32
    %231 = vector.broadcast %cst_94 : f32 to vector<16x128xf32>
    %232 = arith.addf %231, %230 : vector<16x128xf32>
    %cst_95 = arith.constant 5.000000e-01 : f32
    %233 = vector.broadcast %cst_95 : f32 to vector<16x128xf32>
    %234 = arith.mulf %233, %232 : vector<16x128xf32>
    %235 = arith.mulf %222, %234 : vector<16x128xf32>
    %c0_96 = arith.constant 0 : index
    %c0_97 = arith.constant 0 : index
    %236 = vector.load %arg23[%c0_96, %c0_97] : memref<128x32xf32, #tpu.memory_space<vmem>>, vector<128x32xf32>
    %cst_98 = arith.constant dense<0.000000e+00> : vector<16x32xf32>
    %237 = tpu.matmul %235, %236, %cst_98 {dimension_numbers = #tpu.dot_dimension_numbers<[1], [0], [0], [1], [0, 0, 1, 1], [], []>} : vector<16x128xf32>, vector<128x32xf32>, vector<16x32xf32> -> vector<16x32xf32>
    %c0_99 = arith.constant 0 : index
    %c0_100 = arith.constant 0 : index
    %238 = vector.load %arg24[%c0_99, %c0_100] : memref<1x32xf32, #tpu.memory_space<vmem>>, vector<1x32xf32>
    %239 = vector.broadcast %238 : vector<1x32xf32> to vector<16x32xf32>
    %240 = arith.addf %237, %239 : vector<16x32xf32>
    %241 = vector.broadcast %17 : vector<1x32xf32> to vector<16x32xf32>
    %242 = arith.mulf %240, %241 : vector<16x32xf32>
    %243 = arith.addf %201, %242 : vector<16x32xf32>
    %c0_101 = arith.constant 0 : index
    %c0_102 = arith.constant 0 : index
    %c0_103 = arith.constant 0 : index
    %244 = vector.load %arg25[%c0_101, %c0_102, %c0_103] : memref<1x16x32xf32, #tpu.memory_space<vmem>>, vector<1x16x32xf32>
    %245 = vector.shape_cast %244 : vector<1x16x32xf32> to vector<16x32xf32>
    %246 = vector.shape_cast %243 : vector<16x32xf32> to vector<1x16x32xf32>
    tpu.vector_store %arg25[%c0_101, %c0_102, %c0_103], %246 {strides = array<i32>} : memref<1x16x32xf32, #tpu.memory_space<vmem>>, vector<1x16x32xf32>,
    return
  }
  func.func @transform_0(%arg0: i32) -> (i32, i32, i32) {
    %c0_i32 = arith.constant 0 : i32
    %c0_i32_0 = arith.constant 0 : i32
    %c0_i32_1 = arith.constant 0 : i32
    return %arg0, %c0_i32, %c0_i32_0 : i32, i32, i32
  }
  func.func @transform_1(%arg0: i32) -> (i32, i32, i32) {
    %c0_i32 = arith.constant 0 : i32
    %c0_i32_0 = arith.constant 0 : i32
    %c0_i32_1 = arith.constant 0 : i32
    return %arg0, %c0_i32, %c0_i32_0 : i32, i32, i32
  }
  func.func @transform_2(%arg0: i32) -> (i32, i32, i32) {
    %c0_i32 = arith.constant 0 : i32
    %c0_i32_0 = arith.constant 0 : i32
    %c0_i32_1 = arith.constant 0 : i32
    return %arg0, %c0_i32, %c0_i32_0 : i32, i32, i32
  }
  func.func @transform_3(%arg0: i32) -> (i32, i32, i32) {
    %c0_i32 = arith.constant 0 : i32
    %c0_i32_0 = arith.constant 0 : i32
    %c0_i32_1 = arith.constant 0 : i32
    return %arg0, %c0_i32, %c0_i32_0 : i32, i32, i32
  }
  func.func @transform_4(%arg0: i32) -> (i32, i32, i32) {
    %c0_i32 = arith.constant 0 : i32
    %c0_i32_0 = arith.constant 0 : i32
    %c0_i32_1 = arith.constant 0 : i32
    return %arg0, %c0_i32, %c0_i32_0 : i32, i32, i32
  }
  func.func @transform_5(%arg0: i32) -> (i32, i32, i32) {
    %c0_i32 = arith.constant 0 : i32
    %c0_i32_0 = arith.constant 0 : i32
    %c0_i32_1 = arith.constant 0 : i32
    return %arg0, %c0_i32, %c0_i32_0 : i32, i32, i32
  }
  func.func @transform_6(%arg0: i32) -> (i32, i32) {
    %c0_i32 = arith.constant 0 : i32
    %c0_i32_0 = arith.constant 0 : i32
    %c0_i32_1 = arith.constant 0 : i32
    return %c0_i32, %c0_i32_0 : i32, i32
  }
  func.func @transform_7(%arg0: i32) -> (i32, i32) {
    %c0_i32 = arith.constant 0 : i32
    %c0_i32_0 = arith.constant 0 : i32
    %c0_i32_1 = arith.constant 0 : i32
    return %c0_i32, %c0_i32_0 : i32, i32
  }
  func.func @transform_8(%arg0: i32) -> (i32, i32) {
    %c0_i32 = arith.constant 0 : i32
    %c0_i32_0 = arith.constant 0 : i32
    %c0_i32_1 = arith.constant 0 : i32
    return %c0_i32, %c0_i32_0 : i32, i32
  }
  func.func @transform_9(%arg0: i32) -> (i32, i32) {
    %c0_i32 = arith.constant 0 : i32
    %c0_i32_0 = arith.constant 0 : i32
    %c0_i32_1 = arith.constant 0 : i32
    return %c0_i32, %c0_i32_0 : i32, i32
  }
  func.func @transform_10(%arg0: i32) -> (i32, i32) {
    %c0_i32 = arith.constant 0 : i32
    %c0_i32_0 = arith.constant 0 : i32
    %c0_i32_1 = arith.constant 0 : i32
    return %c0_i32, %c0_i32_0 : i32, i32
  }
  func.func @transform_11(%arg0: i32) -> (i32, i32) {
    %c0_i32 = arith.constant 0 : i32
    %c0_i32_0 = arith.constant 0 : i32
    %c0_i32_1 = arith.constant 0 : i32
    return %c0_i32, %c0_i32_0 : i32, i32
  }
  func.func @transform_12(%arg0: i32) -> (i32, i32) {
    %c0_i32 = arith.constant 0 : i32
    %c0_i32_0 = arith.constant 0 : i32
    %c0_i32_1 = arith.constant 0 : i32
    return %c0_i32, %c0_i32_0 : i32, i32
  }
  func.func @transform_13(%arg0: i32) -> (i32, i32) {
    %c0_i32 = arith.constant 0 : i32
    %c0_i32_0 = arith.constant 0 : i32
    %c0_i32_1 = arith.constant 0 : i32
    return %c0_i32, %c0_i32_0 : i32, i32
  }
  func.func @transform_14(%arg0: i32) -> (i32, i32) {
    %c0_i32 = arith.constant 0 : i32
    %c0_i32_0 = arith.constant 0 : i32
    %c0_i32_1 = arith.constant 0 : i32
    return %c0_i32, %c0_i32_0 : i32, i32
  }
  func.func @transform_15(%arg0: i32) -> (i32, i32) {
    %c0_i32 = arith.constant 0 : i32
    %c0_i32_0 = arith.constant 0 : i32
    %c0_i32_1 = arith.constant 0 : i32
    return %c0_i32, %c0_i32_0 : i32, i32
  }
  func.func @transform_16(%arg0: i32) -> (i32, i32) {
    %c0_i32 = arith.constant 0 : i32
    %c0_i32_0 = arith.constant 0 : i32
    %c0_i32_1 = arith.constant 0 : i32
    return %c0_i32, %c0_i32_0 : i32, i32
  }
  func.func @transform_17(%arg0: i32) -> (i32, i32) {
    %c0_i32 = arith.constant 0 : i32
    %c0_i32_0 = arith.constant 0 : i32
    %c0_i32_1 = arith.constant 0 : i32
    return %c0_i32, %c0_i32_0 : i32, i32
  }
  func.func @transform_18(%arg0: i32) -> (i32, i32) {
    %c0_i32 = arith.constant 0 : i32
    %c0_i32_0 = arith.constant 0 : i32
    %c0_i32_1 = arith.constant 0 : i32
    return %c0_i32, %c0_i32_0 : i32, i32
  }
  func.func @transform_19(%arg0: i32) -> (i32, i32) {
    %c0_i32 = arith.constant 0 : i32
    %c0_i32_0 = arith.constant 0 : i32
    %c0_i32_1 = arith.constant 0 : i32
    return %c0_i32, %c0_i32_0 : i32, i32
  }
  func.func @transform_20(%arg0: i32) -> (i32, i32) {
    %c0_i32 = arith.constant 0 : i32
    %c0_i32_0 = arith.constant 0 : i32
    %c0_i32_1 = arith.constant 0 : i32
    return %c0_i32, %c0_i32_0 : i32, i32
  }
  func.func @transform_21(%arg0: i32) -> (i32, i32) {
    %c0_i32 = arith.constant 0 : i32
    %c0_i32_0 = arith.constant 0 : i32
    %c0_i32_1 = arith.constant 0 : i32
    return %c0_i32, %c0_i32_0 : i32, i32
  }
  func.func @transform_22(%arg0: i32) -> (i32, i32) {
    %c0_i32 = arith.constant 0 : i32
    %c0_i32_0 = arith.constant 0 : i32
    %c0_i32_1 = arith.constant 0 : i32
    return %c0_i32, %c0_i32_0 : i32, i32
  }
  func.func @transform_23(%arg0: i32) -> (i32, i32) {
    %c0_i32 = arith.constant 0 : i32
    %c0_i32_0 = arith.constant 0 : i32
    %c0_i32_1 = arith.constant 0 : i32
    return %c0_i32, %c0_i32_0 : i32, i32
  }
  func.func @transform_24(%arg0: i32) -> (i32, i32, i32) {
    %c0_i32 = arith.constant 0 : i32
    %c0_i32_0 = arith.constant 0 : i32
    %c0_i32_1 = arith.constant 0 : i32
    return %arg0, %c0_i32, %c0_i32_0 : i32, i32, i32
  }
}

</mosaic_0001>

<llo_original>
// kernel: tpu_custom_call.1
$region0: #{tpu_custom_call.1}
  #allocation0 [shape = 'u32[]', space=smem, size = 0x4, offset = 0x4, fixed_abs, tag = 'smem constant byte address 0x4 - core index']
  #allocation1 [shape = 'u32[144,128]{1,0:T(1,128)}', space=vmem, size = 0x12000, scoped, tag = 'internal scratch']
  %s0 = inlined_call_operand.vmem [shape: f32[2,16,32], index: 0, kind: input, shape index: {}]
  %s1 = inlined_call_operand.hbm [shape: f32[2,8,32], index: 1, kind: input, shape index: {}]
  %s2 = inlined_call_operand.vmem [shape: f32[2,6,32], index: 2, kind: input, shape index: {}]
  %s3 = inlined_call_operand.vmem [shape: f32[2,16,32], index: 3, kind: input, shape index: {}]
  %s4 = inlined_call_operand.vmem [shape: f32[2,16,32], index: 4, kind: input, shape index: {}]
  %s5 = inlined_call_operand.hbm [shape: f32[2,1,8], index: 5, kind: input, shape index: {}]
  %s6 = inlined_call_operand.vmem [shape: f32[32,96], index: 6, kind: input, shape index: {}]
  %s7 = inlined_call_operand.hbm [shape: f32[1,96], index: 7, kind: input, shape index: {}]
  %s8 = inlined_call_operand.hbm [shape: f32[1,32], index: 8, kind: input, shape index: {}]
  %s9 = inlined_call_operand.hbm [shape: f32[1,32], index: 9, kind: input, shape index: {}]
  %s10 = inlined_call_operand.vmem [shape: f32[32,32], index: 10, kind: input, shape index: {}]
  %s11 = inlined_call_operand.hbm [shape: f32[1,32], index: 11, kind: input, shape index: {}]
  %s12 = inlined_call_operand.vmem [shape: f32[32,32], index: 12, kind: input, shape index: {}]
  %s13 = inlined_call_operand.hbm [shape: f32[1,32], index: 13, kind: input, shape index: {}]
  %s14 = inlined_call_operand.hbm [shape: f32[32,64], index: 14, kind: input, shape index: {}]
  %s15 = inlined_call_operand.hbm [shape: f32[1,64], index: 15, kind: input, shape index: {}]
  %s16 = inlined_call_operand.hbm [shape: f32[1,32], index: 16, kind: input, shape index: {}]
  %s17 = inlined_call_operand.hbm [shape: f32[1,32], index: 17, kind: input, shape index: {}]
  %s18 = inlined_call_operand.vmem [shape: f32[32,32], index: 18, kind: input, shape index: {}]
  %s19 = inlined_call_operand.vmem [shape: f32[1,32], index: 19, kind: input, shape index: {}]
  %s20 = inlined_call_operand.hbm [shape: f32[32,128], index: 20, kind: input, shape index: {}]
  %s21 = inlined_call_operand.vmem [shape: f32[1,128], index: 21, kind: input, shape index: {}]
  %s22 = inlined_call_operand.vmem [shape: f32[128,32], index: 22, kind: input, shape index: {}]
  %s23 = inlined_call_operand.vmem [shape: f32[1,32], index: 23, kind: input, shape index: {}]
  %s24 = inlined_call_operand.hbm [shape: f32[2,16,32], index: 24, kind: output, shape index: {}]
  %s25 = sld [smem:[#allocation0]]
  $region177: #{tpu_custom_call.1} parent=0
    _
  %s27 = ssub.s32 1, %s25
  %s28 = scalar_select 0, %s27, %s25
  $region1: #{tpu_custom_call.1} parent=0
    #allocation2 [shape = 'u8[8192]{0}', space=vmem, size = 0x2000, scoped, tag = 'input window, operand 1']
    #allocation3 [shape = 's32[2]{0}', space=sflag, size = 0x8, scoped, tag = 'scoped memory for tpu_custom_call.1']
    #allocation4 [shape = 's32[2]{0}', space=sflag, size = 0x8, scoped, tag = 'scoped memory for tpu_custom_call.1']
    #allocation5 [shape = 'u8[1024]{0}', space=vmem, size = 0x400, scoped, tag = 'input window, operand 5']
    #allocation6 [shape = 's32[2]{0}', space=sflag, size = 0x8, scoped, tag = 'scoped memory for tpu_custom_call.1']
    #allocation7 [shape = 'u8[512]{0}', space=vmem, size = 0x400, scoped, tag = 'input window, operand 7, single buffered']
    #allocation8 [shape = 'u8[512]{0}', space=vmem, size = 0x400, scoped, tag = 'input window, operand 8, single buffered']
    #allocation9 [shape = 's32[1]{0}', space=sflag, size = 0x4, scoped, tag = 'scoped memory for tpu_custom_call.1']
    #allocation10 [shape = 'u8[512]{0}', space=vmem, size = 0x400, scoped, tag = 'input window, operand 9, single buffered']
    #allocation11 [shape = 'u8[512]{0}', space=vmem, size = 0x400, scoped, tag = 'input window, operand 11, single buffered']
    #allocation12 [shape = 's32[1]{0}', space=sflag, size = 0x4, scoped, tag = 'scoped memory for tpu_custom_call.1']
    #allocation13 [shape = 'u8[512]{0}', space=vmem, size = 0x400, scoped, tag = 'input window, operand 13, single buffered']
    #allocation14 [shape = 'u8[16384]{0}', space=vmem, size = 0x4000, scoped, tag = 'input window, operand 14, single buffered']
    #allocation15 [shape = 's32[1]{0}', space=sflag, size = 0x4, scoped, tag = 'scoped memory for tpu_custom_call.1']
    #allocation16 [shape = 'u8[512]{0}', space=vmem, size = 0x400, scoped, tag = 'input window, operand 15, single buffered']
    #allocation17 [shape = 'u8[512]{0}', space=vmem, size = 0x400, scoped, tag = 'input window, operand 16, single buffered']
    #allocation18 [shape = 's32[1]{0}', space=sflag, size = 0x4, scoped, tag = 'scoped memory for tpu_custom_call.1']
    #allocation19 [shape = 'u8[512]{0}', space=vmem, size = 0x400, scoped, tag = 'input window, operand 17, single buffered']
    #allocation20 [shape = 'u8[16384]{0}', space=vmem, size = 0x4000, scoped, tag = 'input window, operand 20, single buffered']
    #allocation21 [shape = 's32[1]{0}', space=sflag, size = 0x4, scoped, tag = 'scoped memory for tpu_custom_call.1']
    #allocation22 [shape = 'u8[16384]{0}', space=vmem, size = 0x4000, scoped, tag = 'output window, operand 0']
    %29 = vsyncpa [#allocation3], 0
    %s30 = scalar_lea.sflag [#allocation3], 1
    %31 = vsyncpa %s30, 0
    %32 = vsyncpa [#allocation6], 0
    %s33 = scalar_lea.sflag [#allocation6], 1
    %34 = vsyncpa %s33, 0
    %35 = vsyncpa [#allocation9], 0
    %36 = vsyncpa [#allocation12], 0
    %37 = vsyncpa [#allocation15], 0
    %38 = vsyncpa [#allocation18], 0
    %39 = vsyncpa [#allocation21], 0
    %40 = vsyncpa [#allocation4], 0
    %s41 = scalar_lea.sflag [#allocation4], 1
    %42 = vsyncpa %s41, 0
    loop: start=0, step=1, limit=4
    $region2: #{tpu_custom_call.1} parent=1 // loop_pre_header
      _
    $region3: #{tpu_custom_call.1} parent=1 // loop_header
      %s44 = sphi 0, %s48
      %p45 = scmp.ge.s32.totalorder %s44, 4
      %s54 = sphi 0, %s56
      %s57 = sphi 0, %s54
      %s58 = sphi 0, %s57
      %s74 = sphi 0, %s58
      %s80 = sphi 0, %s82
      %s83 = sphi 0, %s80
      %s84 = sphi 0, %s83
      %s100 = sphi 0, %s84
      %s106 = sphi 0, %s108
      %s109 = sphi 0, %s106
      %s110 = sphi 0, %s109
      %s126 = sphi 0, %s110
      %s132 = sphi 0, %s134
      %s135 = sphi 0, %s132
      %s136 = sphi 0, %s135
      %s152 = sphi 0, %s136
      %s158 = sphi 0, %s160
      %s161 = sphi 0, %s158
      %s162 = sphi 0, %s161
      %s178 = sphi 0, %s162
      %s184 = sphi 0, %s186
      %s187 = sphi 0, %s184
      %s188 = sphi 0, %s187
      %s204 = sphi 0, %s188
      %s208 = sphi 0, %s208
      %s210 = sphi 0, %s208
      %s211 = sphi 0, %s210
      %s225 = sphi 0, %s211
      %s229 = sphi 0, %s229
      %s231 = sphi 0, %s229
      %s232 = sphi 0, %s231
      %s246 = sphi 0, %s232
      %s250 = sphi 0, %s250
      %s252 = sphi 0, %s250
      %s253 = sphi 0, %s252
      %s267 = sphi 0, %s253
      %s271 = sphi 0, %s271
      %s273 = sphi 0, %s271
      %s274 = sphi 0, %s273
      %s288 = sphi 0, %s274
      %s292 = sphi 0, %s292
      %s294 = sphi 0, %s292
      %s295 = sphi 0, %s294
      %s309 = sphi 0, %s295
      %s313 = sphi 0, %s313
      %s315 = sphi 0, %s313
      %s316 = sphi 0, %s315
      %s330 = sphi 0, %s316
      %s334 = sphi 0, %s334
      %s336 = sphi 0, %s334
      %s337 = sphi 0, %s336
      %s351 = sphi 0, %s337
      %s355 = sphi 0, %s355
      %s357 = sphi 0, %s355
      %s358 = sphi 0, %s357
      %s372 = sphi 0, %s358
      %s376 = sphi 0, %s376
      %s378 = sphi 0, %s376
      %s379 = sphi 0, %s378
      %s393 = sphi 0, %s379
      %s397 = sphi 0, %s397
      %s399 = sphi 0, %s397
      %s400 = sphi 0, %s399
      %s414 = sphi 0, %s400
      %s418 = sphi 0, %s418
      %s420 = sphi 0, %s418
      %s421 = sphi 0, %s420
      %s435 = sphi 0, %s421
      %s439 = sphi 0, %s439
      %s441 = sphi 0, %s439
      %s442 = sphi 0, %s441
      %s456 = sphi 0, %s442
      %s460 = sphi 0, %s460
      %s462 = sphi 0, %s460
      %s463 = sphi 0, %s462
      %s477 = sphi 0, %s463
      %s481 = sphi 0, %s481
      %s483 = sphi 0, %s481
      %s484 = sphi 0, %s483
      %s498 = sphi 0, %s484
      %s502 = sphi 0, %s502
      %s504 = sphi 0, %s502
      %s505 = sphi 0, %s504
      %s519 = sphi 0, %s505
      %s523 = sphi 0, %s523
      %s525 = sphi 0, %s523
      %s526 = sphi 0, %s525
      %s540 = sphi 0, %s526
      %s544 = sphi 0, %s544
      %s546 = sphi 0, %s544
      %s547 = sphi 0, %s546
      %s561 = sphi 0, %s547
      %s565 = sphi 0, %s565
      %s567 = sphi 0, %s565
      %s568 = sphi 0, %s567
      %s582 = sphi 0, %s568
      %s588 = sphi 0, %s590
      %s591 = sphi 0, %s588
      %s592 = sphi 0, %s591
      %s608 = sphi 0, %s592
    $region4: #{tpu_custom_call.1} parent=1 // loop_header_branch
      %47 = sbr.rel (%p45) target = $region8
    $region5: #{tpu_custom_call.1} parent=1 // loop_body
      %s49 = ssub.s32 %s44, 1
      %s50 = ssub.s32 %s44, 2
      %s51 = sadd.s32 %s44, 1
      %s52 = ssub.s32 %s44, %s51
      %p53 = scmp.eq.s32.totalorder %s52, 0
      %s55 = sadd.s32 %s54, 1
      %s56 = scalar_select %p53, %s54, %s55
      %p59 = pneg %p53
      %p60 = scmp.eq.s32.totalorder %s44, 1
      %p61 = por %p59, %p60
      %p62 = scmp.ne.s32.totalorder %s54, %s57
      %p63 = scmp.eq.s32.totalorder %s44, 0
      %p64 = por %p62, %p63
      %p65 = scmp.ne.s32.totalorder %s54, %s57
      %p66 = scmp.eq.s32.totalorder %s49, 1
      %p67 = por %p65, %p66
      %p68 = scmp.ne.s32.totalorder %s57, %s58
      %p69 = scmp.eq.s32.totalorder %s49, 0
      %p70 = por %p68, %p69
      %p71 = scmp.ne.s32.totalorder %s57, %s58
      %p72 = scmp.eq.s32.totalorder %s50, 1
      %p73 = por %p71, %p72
      %p75 = scmp.ne.s32.totalorder %s58, %s74
      %p76 = scmp.eq.s32.totalorder %s50, 0
      %p77 = por %p75, %p76
      %s78 = ssub.s32 %s44, %s51
      %p79 = scmp.eq.s32.totalorder %s78, 0
      %s81 = sadd.s32 %s80, 1
      %s82 = scalar_select %p79, %s80, %s81
      %p85 = pneg %p79
      %p86 = scmp.eq.s32.totalorder %s44, 1
      %p87 = por %p85, %p86
      %p88 = scmp.ne.s32.totalorder %s80, %s83
      %p89 = scmp.eq.s32.totalorder %s44, 0
      %p90 = por %p88, %p89
      %p91 = scmp.ne.s32.totalorder %s80, %s83
      %p92 = scmp.eq.s32.totalorder %s49, 1
      %p93 = por %p91, %p92
      %p94 = scmp.ne.s32.totalorder %s83, %s84
      %p95 = scmp.eq.s32.totalorder %s49, 0
      %p96 = por %p94, %p95
      %p97 = scmp.ne.s32.totalorder %s83, %s84
      %p98 = scmp.eq.s32.totalorder %s50, 1
      %p99 = por %p97, %p98
      %p101 = scmp.ne.s32.totalorder %s84, %s100
      %p102 = scmp.eq.s32.totalorder %s50, 0
      %p103 = por %p101, %p102
      %s104 = ssub.s32 %s44, %s51
      %p105 = scmp.eq.s32.totalorder %s104, 0
      %s107 = sadd.s32 %s106, 1
      %s108 = scalar_select %p105, %s106, %s107
      %p111 = pneg %p105
      %p112 = scmp.eq.s32.totalorder %s44, 1
      %p113 = por %p111, %p112
      %p114 = scmp.ne.s32.totalorder %s106, %s109
      %p115 = scmp.eq.s32.totalorder %s44, 0
      %p116 = por %p114, %p115
      %p117 = scmp.ne.s32.totalorder %s106, %s109
      %p118 = scmp.eq.s32.totalorder %s49, 1
      %p119 = por %p117, %p118
      %p120 = scmp.ne.s32.totalorder %s109, %s110
      %p121 = scmp.eq.s32.totalorder %s49, 0
      %p122 = por %p120, %p121
      %p123 = scmp.ne.s32.totalorder %s109, %s110
      %p124 = scmp.eq.s32.totalorder %s50, 1
      %p125 = por %p123, %p124
      %p127 = scmp.ne.s32.totalorder %s110, %s126
      %p128 = scmp.eq.s32.totalorder %s50, 0
      %p129 = por %p127, %p128
      %s130 = ssub.s32 %s44, %s51
      %p131 = scmp.eq.s32.totalorder %s130, 0
      %s133 = sadd.s32 %s132, 1
      %s134 = scalar_select %p131, %s132, %s133
      %p137 = pneg %p131
      %p138 = scmp.eq.s32.totalorder %s44, 1
      %p139 = por %p137, %p138
      %p140 = scmp.ne.s32.totalorder %s132, %s135
      %p141 = scmp.eq.s32.totalorder %s44, 0
      %p142 = por %p140, %p141
      %p143 = scmp.ne.s32.totalorder %s132, %s135
      %p144 = scmp.eq.s32.totalorder %s49, 1
      %p145 = por %p143, %p144
      %p146 = scmp.ne.s32.totalorder %s135, %s136
      %p147 = scmp.eq.s32.totalorder %s49, 0
      %p148 = por %p146, %p147
      %p149 = scmp.ne.s32.totalorder %s135, %s136
      %p150 = scmp.eq.s32.totalorder %s50, 1
      %p151 = por %p149, %p150
      %p153 = scmp.ne.s32.totalorder %s136, %s152
      %p154 = scmp.eq.s32.totalorder %s50, 0
      %p155 = por %p153, %p154
      %s156 = ssub.s32 %s44, %s51
      %p157 = scmp.eq.s32.totalorder %s156, 0
      %s159 = sadd.s32 %s158, 1
      %s160 = scalar_select %p157, %s158, %s159
      %p163 = pneg %p157
      %p164 = scmp.eq.s32.totalorder %s44, 1
      %p165 = por %p163, %p164
      %p166 = scmp.ne.s32.totalorder %s158, %s161
      %p167 = scmp.eq.s32.totalorder %s44, 0
      %p168 = por %p166, %p167
      %p169 = scmp.ne.s32.totalorder %s158, %s161
      %p170 = scmp.eq.s32.totalorder %s49, 1
      %p171 = por %p169, %p170
      %p172 = scmp.ne.s32.totalorder %s161, %s162
      %p173 = scmp.eq.s32.totalorder %s49, 0
      %p174 = por %p172, %p173
      %p175 = scmp.ne.s32.totalorder %s161, %s162
      %p176 = scmp.eq.s32.totalorder %s50, 1
      %p177 = por %p175, %p176
      %p179 = scmp.ne.s32.totalorder %s162, %s178
      %p180 = scmp.eq.s32.totalorder %s50, 0
      %p181 = por %p179, %p180
      %s182 = ssub.s32 %s44, %s51
      %p183 = scmp.eq.s32.totalorder %s182, 0
      %s185 = sadd.s32 %s184, 1
      %s186 = scalar_select %p183, %s184, %s185
      %p189 = pneg %p183
      %p190 = scmp.eq.s32.totalorder %s44, 1
      %p191 = por %p189, %p190
      %p192 = scmp.ne.s32.totalorder %s184, %s187
      %p193 = scmp.eq.s32.totalorder %s44, 0
      %p194 = por %p192, %p193
      %p195 = scmp.ne.s32.totalorder %s184, %s187
      %p196 = scmp.eq.s32.totalorder %s49, 1
      %p197 = por %p195, %p196
      %p198 = scmp.ne.s32.totalorder %s187, %s188
      %p199 = scmp.eq.s32.totalorder %s49, 0
      %p200 = por %p198, %p199
      %p201 = scmp.ne.s32.totalorder %s187, %s188
      %p202 = scmp.eq.s32.totalorder %s50, 1
      %p203 = por %p201, %p202
      %p205 = scmp.ne.s32.totalorder %s188, %s204
      %p206 = scmp.eq.s32.totalorder %s50, 0
      %p207 = por %p205, %p206
      %s209 = sadd.s32 %s208, 1
      %p212 = scmp.eq.s32.totalorder %s44, 1
      %p213 = scmp.ne.s32.totalorder %s208, %s210
      %p214 = scmp.eq.s32.totalorder %s44, 0
      %p215 = por %p213, %p214
      %p216 = scmp.ne.s32.totalorder %s208, %s210
      %p217 = scmp.eq.s32.totalorder %s49, 1
      %p218 = por %p216, %p217
      %p219 = scmp.ne.s32.totalorder %s210, %s211
      %p220 = scmp.eq.s32.totalorder %s49, 0
      %p221 = por %p219, %p220
      %p222 = scmp.ne.s32.totalorder %s210, %s211
      %p223 = scmp.eq.s32.totalorder %s50, 1
      %p224 = por %p222, %p223
      %p226 = scmp.ne.s32.totalorder %s211, %s225
      %p227 = scmp.eq.s32.totalorder %s50, 0
      %p228 = por %p226, %p227
      %s230 = sadd.s32 %s229, 1
      %p233 = scmp.eq.s32.totalorder %s44, 1
      %p234 = scmp.ne.s32.totalorder %s229, %s231
      %p235 = scmp.eq.s32.totalorder %s44, 0
      %p236 = por %p234, %p235
      %p237 = scmp.ne.s32.totalorder %s229, %s231
      %p238 = scmp.eq.s32.totalorder %s49, 1
      %p239 = por %p237, %p238
      %p240 = scmp.ne.s32.totalorder %s231, %s232
      %p241 = scmp.eq.s32.totalorder %s49, 0
      %p242 = por %p240, %p241
      %p243 = scmp.ne.s32.totalorder %s231, %s232
      %p244 = scmp.eq.s32.totalorder %s50, 1
      %p245 = por %p243, %p244
      %p247 = scmp.ne.s32.totalorder %s232, %s246
      %p248 = scmp.eq.s32.totalorder %s50, 0
      %p249 = por %p247, %p248
      %s251 = sadd.s32 %s250, 1
      %p254 = scmp.eq.s32.totalorder %s44, 1
      %p255 = scmp.ne.s32.totalorder %s250, %s252
      %p256 = scmp.eq.s32.totalorder %s44, 0
      %p257 = por %p255, %p256
      %p258 = scmp.ne.s32.totalorder %s250, %s252
      %p259 = scmp.eq.s32.totalorder %s49, 1
      %p260 = por %p258, %p259
      %p261 = scmp.ne.s32.totalorder %s252, %s253
      %p262 = scmp.eq.s32.totalorder %s49, 0
      %p263 = por %p261, %p262
      %p264 = scmp.ne.s32.totalorder %s252, %s253
      %p265 = scmp.eq.s32.totalorder %s50, 1
      %p266 = por %p264, %p265
      %p268 = scmp.ne.s32.totalorder %s253, %s267
      %p269 = scmp.eq.s32.totalorder %s50, 0
      %p270 = por %p268, %p269
      %s272 = sadd.s32 %s271, 1
      %p275 = scmp.eq.s32.totalorder %s44, 1
      %p276 = scmp.ne.s32.totalorder %s271, %s273
      %p277 = scmp.eq.s32.totalorder %s44, 0
      %p278 = por %p276, %p277
      %p279 = scmp.ne.s32.totalorder %s271, %s273
      %p280 = scmp.eq.s32.totalorder %s49, 1
      %p281 = por %p279, %p280
      %p282 = scmp.ne.s32.totalorder %s273, %s274
      %p283 = scmp.eq.s32.totalorder %s49, 0
      %p284 = por %p282, %p283
      %p285 = scmp.ne.s32.totalorder %s273, %s274
      %p286 = scmp.eq.s32.totalorder %s50, 1
      %p287 = por %p285, %p286
      %p289 = scmp.ne.s32.totalorder %s274, %s288
      %p290 = scmp.eq.s32.totalorder %s50, 0
      %p291 = por %p289, %p290
      %s293 = sadd.s32 %s292, 1
      %p296 = scmp.eq.s32.totalorder %s44, 1
      %p297 = scmp.ne.s32.totalorder %s292, %s294
      %p298 = scmp.eq.s32.totalorder %s44, 0
      %p299 = por %p297, %p298
      %p300 = scmp.ne.s32.totalorder %s292, %s294
      %p301 = scmp.eq.s32.totalorder %s49, 1
      %p302 = por %p300, %p301
      %p303 = scmp.ne.s32.totalorder %s294, %s295
      %p304 = scmp.eq.s32.totalorder %s49, 0
      %p305 = por %p303, %p304
      %p306 = scmp.ne.s32.totalorder %s294, %s295
      %p307 = scmp.eq.s32.totalorder %s50, 1
      %p308 = por %p306, %p307
      %p310 = scmp.ne.s32.totalorder %s295, %s309
      %p311 = scmp.eq.s32.totalorder %s50, 0
      %p312 = por %p310, %p311
      %s314 = sadd.s32 %s313, 1
      %p317 = scmp.eq.s32.totalorder %s44, 1
      %p318 = scmp.ne.s32.totalorder %s313, %s315
      %p319 = scmp.eq.s32.totalorder %s44, 0
      %p320 = por %p318, %p319
      %p321 = scmp.ne.s32.totalorder %s313, %s315
      %p322 = scmp.eq.s32.totalorder %s49, 1
      %p323 = por %p321, %p322
      %p324 = scmp.ne.s32.totalorder %s315, %s316
      %p325 = scmp.eq.s32.totalorder %s49, 0
      %p326 = por %p324, %p325
      %p327 = scmp.ne.s32.totalorder %s315, %s316
      %p328 = scmp.eq.s32.totalorder %s50, 1
      %p329 = por %p327, %p328
      %p331 = scmp.ne.s32.totalorder %s316, %s330
      %p332 = scmp.eq.s32.totalorder %s50, 0
      %p333 = por %p331, %p332
      %s335 = sadd.s32 %s334, 1
      %p338 = scmp.eq.s32.totalorder %s44, 1
      %p339 = scmp.ne.s32.totalorder %s334, %s336
      %p340 = scmp.eq.s32.totalorder %s44, 0
      %p341 = por %p339, %p340
      %p342 = scmp.ne.s32.totalorder %s334, %s336
      %p343 = scmp.eq.s32.totalorder %s49, 1
      %p344 = por %p342, %p343
      %p345 = scmp.ne.s32.totalorder %s336, %s337
      %p346 = scmp.eq.s32.totalorder %s49, 0
      %p347 = por %p345, %p346
      %p348 = scmp.ne.s32.totalorder %s336, %s337
      %p349 = scmp.eq.s32.totalorder %s50, 1
      %p350 = por %p348, %p349
      %p352 = scmp.ne.s32.totalorder %s337, %s351
      %p353 = scmp.eq.s32.totalorder %s50, 0
      %p354 = por %p352, %p353
      %s356 = sadd.s32 %s355, 1
      %p359 = scmp.eq.s32.totalorder %s44, 1
      %p360 = scmp.ne.s32.totalorder %s355, %s357
      %p361 = scmp.eq.s32.totalorder %s44, 0
      %p362 = por %p360, %p361
      %p363 = scmp.ne.s32.totalorder %s355, %s357
      %p364 = scmp.eq.s32.totalorder %s49, 1
      %p365 = por %p363, %p364
      %p366 = scmp.ne.s32.totalorder %s357, %s358
      %p367 = scmp.eq.s32.totalorder %s49, 0
      %p368 = por %p366, %p367
      %p369 = scmp.ne.s32.totalorder %s357, %s358
      %p370 = scmp.eq.s32.totalorder %s50, 1
      %p371 = por %p369, %p370
      %p373 = scmp.ne.s32.totalorder %s358, %s372
      %p374 = scmp.eq.s32.totalorder %s50, 0
      %p375 = por %p373, %p374
      %s377 = sadd.s32 %s376, 1
      %p380 = scmp.eq.s32.totalorder %s44, 1
      %p381 = scmp.ne.s32.totalorder %s376, %s378
      %p382 = scmp.eq.s32.totalorder %s44, 0
      %p383 = por %p381, %p382
      %p384 = scmp.ne.s32.totalorder %s376, %s378
      %p385 = scmp.eq.s32.totalorder %s49, 1
      %p386 = por %p384, %p385
      %p387 = scmp.ne.s32.totalorder %s378, %s379
      %p388 = scmp.eq.s32.totalorder %s49, 0
      %p389 = por %p387, %p388
      %p390 = scmp.ne.s32.totalorder %s378, %s379
      %p391 = scmp.eq.s32.totalorder %s50, 1
      %p392 = por %p390, %p391
      %p394 = scmp.ne.s32.totalorder %s379, %s393
      %p395 = scmp.eq.s32.totalorder %s50, 0
      %p396 = por %p394, %p395
      %s398 = sadd.s32 %s397, 1
      %p401 = scmp.eq.s32.totalorder %s44, 1
      %p402 = scmp.ne.s32.totalorder %s397, %s399
      %p403 = scmp.eq.s32.totalorder %s44, 0
      %p404 = por %p402, %p403
      %p405 = scmp.ne.s32.totalorder %s397, %s399
      %p406 = scmp.eq.s32.totalorder %s49, 1
      %p407 = por %p405, %p406
      %p408 = scmp.ne.s32.totalorder %s399, %s400
      %p409 = scmp.eq.s32.totalorder %s49, 0
      %p410 = por %p408, %p409
      %p411 = scmp.ne.s32.totalorder %s399, %s400
      %p412 = scmp.eq.s32.totalorder %s50, 1
      %p413 = por %p411, %p412
      %p415 = scmp.ne.s32.totalorder %s400, %s414
      %p416 = scmp.eq.s32.totalorder %s50, 0
      %p417 = por %p415, %p416
      %s419 = sadd.s32 %s418, 1
      %p422 = scmp.eq.s32.totalorder %s44, 1
      %p423 = scmp.ne.s32.totalorder %s418, %s420
      %p424 = scmp.eq.s32.totalorder %s44, 0
      %p425 = por %p423, %p424
      %p426 = scmp.ne.s32.totalorder %s418, %s420
      %p427 = scmp.eq.s32.totalorder %s49, 1
      %p428 = por %p426, %p427
      %p429 = scmp.ne.s32.totalorder %s420, %s421
      %p430 = scmp.eq.s32.totalorder %s49, 0
      %p431 = por %p429, %p430
      %p432 = scmp.ne.s32.totalorder %s420, %s421
      %p433 = scmp.eq.s32.totalorder %s50, 1
      %p434 = por %p432, %p433
      %p436 = scmp.ne.s32.totalorder %s421, %s435
      %p437 = scmp.eq.s32.totalorder %s50, 0
      %p438 = por %p436, %p437
      %s440 = sadd.s32 %s439, 1
      %p443 = scmp.eq.s32.totalorder %s44, 1
      %p444 = scmp.ne.s32.totalorder %s439, %s441
      %p445 = scmp.eq.s32.totalorder %s44, 0
      %p446 = por %p444, %p445
      %p447 = scmp.ne.s32.totalorder %s439, %s441
      %p448 = scmp.eq.s32.totalorder %s49, 1
      %p449 = por %p447, %p448
      %p450 = scmp.ne.s32.totalorder %s441, %s442
      %p451 = scmp.eq.s32.totalorder %s49, 0
      %p452 = por %p450, %p451
      %p453 = scmp.ne.s32.totalorder %s441, %s442
      %p454 = scmp.eq.s32.totalorder %s50, 1
      %p455 = por %p453, %p454
      %p457 = scmp.ne.s32.totalorder %s442, %s456
      %p458 = scmp.eq.s32.totalorder %s50, 0
      %p459 = por %p457, %p458
      %s461 = sadd.s32 %s460, 1
      %p464 = scmp.eq.s32.totalorder %s44, 1
      %p465 = scmp.ne.s32.totalorder %s460, %s462
      %p466 = scmp.eq.s32.totalorder %s44, 0
      %p467 = por %p465, %p466
      %p468 = scmp.ne.s32.totalorder %s460, %s462
      %p469 = scmp.eq.s32.totalorder %s49, 1
      %p470 = por %p468, %p469
      %p471 = scmp.ne.s32.totalorder %s462, %s463
      %p472 = scmp.eq.s32.totalorder %s49, 0
      %p473 = por %p471, %p472
      %p474 = scmp.ne.s32.totalorder %s462, %s463
      %p475 = scmp.eq.s32.totalorder %s50, 1
      %p476 = por %p474, %p475
      %p478 = scmp.ne.s32.totalorder %s463, %s477
      %p479 = scmp.eq.s32.totalorder %s50, 0
      %p480 = por %p478, %p479
      %s482 = sadd.s32 %s481, 1
      %p485 = scmp.eq.s32.totalorder %s44, 1
      %p486 = scmp.ne.s32.totalorder %s481, %s483
      %p487 = scmp.eq.s32.totalorder %s44, 0
      %p488 = por %p486, %p487
      %p489 = scmp.ne.s32.totalorder %s481, %s483
      %p490 = scmp.eq.s32.totalorder %s49, 1
      %p491 = por %p489, %p490
      %p492 = scmp.ne.s32.totalorder %s483, %s484
      %p493 = scmp.eq.s32.totalorder %s49, 0
      %p494 = por %p492, %p493
      %p495 = scmp.ne.s32.totalorder %s483, %s484
      %p496 = scmp.eq.s32.totalorder %s50, 1
      %p497 = por %p495, %p496
      %p499 = scmp.ne.s32.totalorder %s484, %s498
      %p500 = scmp.eq.s32.totalorder %s50, 0
      %p501 = por %p499, %p500
      %s503 = sadd.s32 %s502, 1
      %p506 = scmp.eq.s32.totalorder %s44, 1
      %p507 = scmp.ne.s32.totalorder %s502, %s504
      %p508 = scmp.eq.s32.totalorder %s44, 0
      %p509 = por %p507, %p508
      %p510 = scmp.ne.s32.totalorder %s502, %s504
      %p511 = scmp.eq.s32.totalorder %s49, 1
      %p512 = por %p510, %p511
      %p513 = scmp.ne.s32.totalorder %s504, %s505
      %p514 = scmp.eq.s32.totalorder %s49, 0
      %p515 = por %p513, %p514
      %p516 = scmp.ne.s32.totalorder %s504, %s505
      %p517 = scmp.eq.s32.totalorder %s50, 1
      %p518 = por %p516, %p517
      %p520 = scmp.ne.s32.totalorder %s505, %s519
      %p521 = scmp.eq.s32.totalorder %s50, 0
      %p522 = por %p520, %p521
      %s524 = sadd.s32 %s523, 1
      %p527 = scmp.eq.s32.totalorder %s44, 1
      %p528 = scmp.ne.s32.totalorder %s523, %s525
      %p529 = scmp.eq.s32.totalorder %s44, 0
      %p530 = por %p528, %p529
      %p531 = scmp.ne.s32.totalorder %s523, %s525
      %p532 = scmp.eq.s32.totalorder %s49, 1
      %p533 = por %p531, %p532
      %p534 = scmp.ne.s32.totalorder %s525, %s526
      %p535 = scmp.eq.s32.totalorder %s49, 0
      %p536 = por %p534, %p535
      %p537 = scmp.ne.s32.totalorder %s525, %s526
      %p538 = scmp.eq.s32.totalorder %s50, 1
      %p539 = por %p537, %p538
      %p541 = scmp.ne.s32.totalorder %s526, %s540
      %p542 = scmp.eq.s32.totalorder %s50, 0
      %p543 = por %p541, %p542
      %s545 = sadd.s32 %s544, 1
      %p548 = scmp.eq.s32.totalorder %s44, 1
      %p549 = scmp.ne.s32.totalorder %s544, %s546
      %p550 = scmp.eq.s32.totalorder %s44, 0
      %p551 = por %p549, %p550
      %p552 = scmp.ne.s32.totalorder %s544, %s546
      %p553 = scmp.eq.s32.totalorder %s49, 1
      %p554 = por %p552, %p553
      %p555 = scmp.ne.s32.totalorder %s546, %s547
      %p556 = scmp.eq.s32.totalorder %s49, 0
      %p557 = por %p555, %p556
      %p558 = scmp.ne.s32.totalorder %s546, %s547
      %p559 = scmp.eq.s32.totalorder %s50, 1
      %p560 = por %p558, %p559
      %p562 = scmp.ne.s32.totalorder %s547, %s561
      %p563 = scmp.eq.s32.totalorder %s50, 0
      %p564 = por %p562, %p563
      %s566 = sadd.s32 %s565, 1
      %p569 = scmp.eq.s32.totalorder %s44, 1
      %p570 = scmp.ne.s32.totalorder %s565, %s567
      %p571 = scmp.eq.s32.totalorder %s44, 0
      %p572 = por %p570, %p571
      %p573 = scmp.ne.s32.totalorder %s565, %s567
      %p574 = scmp.eq.s32.totalorder %s49, 1
      %p575 = por %p573, %p574
      %p576 = scmp.ne.s32.totalorder %s567, %s568
      %p577 = scmp.eq.s32.totalorder %s49, 0
      %p578 = por %p576, %p577
      %p579 = scmp.ne.s32.totalorder %s567, %s568
      %p580 = scmp.eq.s32.totalorder %s50, 1
      %p581 = por %p579, %p580
      %p583 = scmp.ne.s32.totalorder %s568, %s582
      %p584 = scmp.eq.s32.totalorder %s50, 0
      %p585 = por %p583, %p584
      %s586 = ssub.s32 %s44, %s51
      %p587 = scmp.eq.s32.totalorder %s586, 0
      %s589 = sadd.s32 %s588, 1
      %s590 = scalar_select %p587, %s588, %s589
      %p593 = pneg %p587
      %p594 = scmp.eq.s32.totalorder %s44, 1
      %p595 = por %p593, %p594
      %p596 = scmp.ne.s32.totalorder %s588, %s591
      %p597 = scmp.eq.s32.totalorder %s44, 0
      %p598 = por %p596, %p597
      %p599 = scmp.ne.s32.totalorder %s588, %s591
      %p600 = scmp.eq.s32.totalorder %s49, 1
      %p601 = por %p599, %p600
      %p602 = scmp.ne.s32.totalorder %s591, %s592
      %p603 = scmp.eq.s32.totalorder %s49, 0
      %p604 = por %p602, %p603
      %p605 = scmp.ne.s32.totalorder %s591, %s592
      %p606 = scmp.eq.s32.totalorder %s50, 1
      %p607 = por %p605, %p606
      %p609 = scmp.ne.s32.totalorder %s592, %s608
      %p610 = scmp.eq.s32.totalorder %s50, 0
      %p611 = por %p609, %p610
      %p612 = scmp.le.s32.totalorder 1, %s44
      %p613 = scmp.lt.s32.totalorder %s44, 3
      %p614 = pnand %p612, %p613
      %p615 = pneg %p614
      // Predicated region
      $region9: #{tpu_custom_call.1} parent=5 // pred_check
        _
      $region10: #{tpu_custom_call.1} parent=5 // pred_check_branch
        %617 = sbr.rel (%p614) target = $region12
      $region11: #{tpu_custom_call.1} parent=5 // pred_region
        %s618 = ssub.s32 %s44, 1
        // Predicated region
        $region13: #{tpu_custom_call.1} parent=11 // pred_check
          %p619 = pneg %p221
        $region14: #{tpu_custom_call.1} parent=11 // pred_check_branch
          %621 = sbr.rel (%p619) target = $region16
        $region15: #{tpu_custom_call.1} parent=11 // pred_region
          _
        $region16: #{tpu_custom_call.1} parent=11 // pred_fallthru
          _
        // Predicated region
        $region17: #{tpu_custom_call.1} parent=11 // pred_check
          %p622 = pneg %p242
        $region18: #{tpu_custom_call.1} parent=11 // pred_check_branch
          %624 = sbr.rel (%p622) target = $region20
        $region19: #{tpu_custom_call.1} parent=11 // pred_region
          %s626 = ssub.s32 16, 16
          %627 = vsyncadd [#allocation6], %s626
          %s629 = sshll.u32 [#allocation7], 4
          %s630 = int_to_ptr.vmem [resolvable:$true] %s629
          %632 = dma.hbm_to_vmem [thread:$0]  %s7, 16, %s630, [#allocation6]
        $region20: #{tpu_custom_call.1} parent=11 // pred_fallthru
          _
        // Predicated region
        $region21: #{tpu_custom_call.1} parent=11 // pred_check
          %p633 = pneg %p263
        $region22: #{tpu_custom_call.1} parent=11 // pred_check_branch
          %635 = sbr.rel (%p633) target = $region24
        $region23: #{tpu_custom_call.1} parent=11 // pred_region
          %s637 = ssub.s32 16, 16
          %638 = vsyncadd [#allocation9], %s637
          %s640 = sshll.u32 [#allocation8], 4
          %s641 = int_to_ptr.vmem [resolvable:$true] %s640
          %643 = dma.hbm_to_vmem [thread:$0]  %s8, 16, %s641, [#allocation9]
        $region24: #{tpu_custom_call.1} parent=11 // pred_fallthru
          _
        // Predicated region
        $region25: #{tpu_custom_call.1} parent=11 // pred_check
          %p644 = pneg %p284
        $region26: #{tpu_custom_call.1} parent=11 // pred_check_branch
          %646 = sbr.rel (%p644) target = $region28
        $region27: #{tpu_custom_call.1} parent=11 // pred_region
          %s648 = ssub.s32 16, 16
          %649 = vsyncadd [#allocation9], %s648
          %s651 = sshll.u32 [#allocation10], 4
          %s652 = int_to_ptr.vmem [resolvable:$true] %s651
          %654 = dma.hbm_to_vmem [thread:$0]  %s9, 16, %s652, [#allocation9]
        $region28: #{tpu_custom_call.1} parent=11 // pred_fallthru
          _
        // Predicated region
        $region29: #{tpu_custom_call.1} parent=11 // pred_check
          %p655 = pneg %p305
        $region30: #{tpu_custom_call.1} parent=11 // pred_check_branch
          %657 = sbr.rel (%p655) target = $region32
        $region31: #{tpu_custom_call.1} parent=11 // pred_region
          _
        $region32: #{tpu_custom_call.1} parent=11 // pred_fallthru
          _
        // Predicated region
        $region33: #{tpu_custom_call.1} parent=11 // pred_check
          %p658 = pneg %p326
        $region34: #{tpu_custom_call.1} parent=11 // pred_check_branch
          %660 = sbr.rel (%p658) target = $region36
        $region35: #{tpu_custom_call.1} parent=11 // pred_region
          %s662 = ssub.s32 16, 16
          %663 = vsyncadd [#allocation12], %s662
          %s665 = sshll.u32 [#allocation11], 4
          %s666 = int_to_ptr.vmem [resolvable:$true] %s665
          %668 = dma.hbm_to_vmem [thread:$0]  %s11, 16, %s666, [#allocation12]
        $region36: #{tpu_custom_call.1} parent=11 // pred_fallthru
          _
        // Predicated region
        $region37: #{tpu_custom_call.1} parent=11 // pred_check
          %p669 = pneg %p347
        $region38: #{tpu_custom_call.1} parent=11 // pred_check_branch
          %671 = sbr.rel (%p669) target = $region40
        $region39: #{tpu_custom_call.1} parent=11 // pred_region
          _
        $region40: #{tpu_custom_call.1} parent=11 // pred_fallthru
          _
        // Predicated region
        $region41: #{tpu_custom_call.1} parent=11 // pred_check
          %p672 = pneg %p368
        $region42: #{tpu_custom_call.1} parent=11 // pred_check_branch
          %674 = sbr.rel (%p672) target = $region44
        $region43: #{tpu_custom_call.1} parent=11 // pred_region
          %s676 = ssub.s32 16, 16
          %677 = vsyncadd [#allocation12], %s676
          %s679 = sshll.u32 [#allocation13], 4
          %s680 = int_to_ptr.vmem [resolvable:$true] %s679
          %682 = dma.hbm_to_vmem [thread:$0]  %s13, 16, %s680, [#allocation12]
        $region44: #{tpu_custom_call.1} parent=11 // pred_fallthru
          _
        // Predicated region
        $region45: #{tpu_custom_call.1} parent=11 // pred_check
          %p683 = pneg %p389
        $region46: #{tpu_custom_call.1} parent=11 // pred_check_branch
          %685 = sbr.rel (%p683) target = $region48
        $region47: #{tpu_custom_call.1} parent=11 // pred_region
          %s687 = ssub.s32 512, 512
          %688 = vsyncadd [#allocation15], %s687
          %s689 = sshll.u32 [#allocation14], 4
          %s690 = int_to_ptr.vmem [resolvable:$true] %s689
          %695 = dma.hbm_to_vmem [thread:$0]  %s14, 512, %s690, [#allocation15], 128, 128, 8
        $region48: #{tpu_custom_call.1} parent=11 // pred_fallthru
          _
        // Predicated region
        $region49: #{tpu_custom_call.1} parent=11 // pred_check
          %p696 = pneg %p410
        $region50: #{tpu_custom_call.1} parent=11 // pred_check_branch
          %698 = sbr.rel (%p696) target = $region52
        $region51: #{tpu_custom_call.1} parent=11 // pred_region
          %s700 = ssub.s32 16, 16
          %701 = vsyncadd [#allocation15], %s700
          %s703 = sshll.u32 [#allocation16], 4
          %s704 = int_to_ptr.vmem [resolvable:$true] %s703
          %706 = dma.hbm_to_vmem [thread:$0]  %s15, 16, %s704, [#allocation15]
        $region52: #{tpu_custom_call.1} parent=11 // pred_fallthru
          _
        // Predicated region
        $region53: #{tpu_custom_call.1} parent=11 // pred_check
          %p707 = pneg %p431
        $region54: #{tpu_custom_call.1} parent=11 // pred_check_branch
          %709 = sbr.rel (%p707) target = $region56
        $region55: #{tpu_custom_call.1} parent=11 // pred_region
          %s711 = ssub.s32 16, 16
          %712 = vsyncadd [#allocation18], %s711
          %s714 = sshll.u32 [#allocation17], 4
          %s715 = int_to_ptr.vmem [resolvable:$true] %s714
          %717 = dma.hbm_to_vmem [thread:$0]  %s16, 16, %s715, [#allocation18]
        $region56: #{tpu_custom_call.1} parent=11 // pred_fallthru
          _
        // Predicated region
        $region57: #{tpu_custom_call.1} parent=11 // pred_check
          %p718 = pneg %p452
        $region58: #{tpu_custom_call.1} parent=11 // pred_check_branch
          %720 = sbr.rel (%p718) target = $region60
        $region59: #{tpu_custom_call.1} parent=11 // pred_region
          %s722 = ssub.s32 16, 16
          %723 = vsyncadd [#allocation18], %s722
          %s725 = sshll.u32 [#allocation19], 4
          %s726 = int_to_ptr.vmem [resolvable:$true] %s725
          %728 = dma.hbm_to_vmem [thread:$0]  %s17, 16, %s726, [#allocation18]
        $region60: #{tpu_custom_call.1} parent=11 // pred_fallthru
          _
        // Predicated region
        $region61: #{tpu_custom_call.1} parent=11 // pred_check
          %p729 = pneg %p473
        $region62: #{tpu_custom_call.1} parent=11 // pred_check_branch
          %731 = sbr.rel (%p729) target = $region64
        $region63: #{tpu_custom_call.1} parent=11 // pred_region
          _
        $region64: #{tpu_custom_call.1} parent=11 // pred_fallthru
          _
        // Predicated region
        $region65: #{tpu_custom_call.1} parent=11 // pred_check
          %p732 = pneg %p494
        $region66: #{tpu_custom_call.1} parent=11 // pred_check_branch
          %734 = sbr.rel (%p732) target = $region68
        $region67: #{tpu_custom_call.1} parent=11 // pred_region
          _
        $region68: #{tpu_custom_call.1} parent=11 // pred_fallthru
          _
        // Predicated region
        $region69: #{tpu_custom_call.1} parent=11 // pred_check
          %p735 = pneg %p515
        $region70: #{tpu_custom_call.1} parent=11 // pred_check_branch
          %737 = sbr.rel (%p735) target = $region72
        $region71: #{tpu_custom_call.1} parent=11 // pred_region
          %s739 = ssub.s32 512, 512
          %740 = vsyncadd [#allocation21], %s739
          %s741 = sshll.u32 [#allocation20], 4
          %s742 = int_to_ptr.vmem [resolvable:$true] %s741
          %747 = dma.hbm_to_vmem [thread:$0]  %s20, 512, %s742, [#allocation21], 128, 128, 8
        $region72: #{tpu_custom_call.1} parent=11 // pred_fallthru
          _
        // Predicated region
        $region73: #{tpu_custom_call.1} parent=11 // pred_check
          %p748 = pneg %p536
        $region74: #{tpu_custom_call.1} parent=11 // pred_check_branch
          %750 = sbr.rel (%p748) target = $region76
        $region75: #{tpu_custom_call.1} parent=11 // pred_region
          _
        $region76: #{tpu_custom_call.1} parent=11 // pred_fallthru
          _
        // Predicated region
        $region77: #{tpu_custom_call.1} parent=11 // pred_check
          %p751 = pneg %p557
        $region78: #{tpu_custom_call.1} parent=11 // pred_check_branch
          %753 = sbr.rel (%p751) target = $region80
        $region79: #{tpu_custom_call.1} parent=11 // pred_region
          _
        $region80: #{tpu_custom_call.1} parent=11 // pred_fallthru
          _
        // Predicated region
        $region81: #{tpu_custom_call.1} parent=11 // pred_check
          %p754 = pneg %p578
        $region82: #{tpu_custom_call.1} parent=11 // pred_check_branch
          %756 = sbr.rel (%p754) target = $region84
        $region83: #{tpu_custom_call.1} parent=11 // pred_region
          _
        $region84: #{tpu_custom_call.1} parent=11 // pred_fallthru
          _
      $region12: #{tpu_custom_call.1} parent=5 // pred_fallthru
        _
      %p757 = scmp.lt.s32.totalorder %s44, 2
      // Predicated region
      $region85: #{tpu_custom_call.1} parent=5 // pred_check
        %p758 = pneg %p757
      $region86: #{tpu_custom_call.1} parent=5 // pred_check_branch
        %760 = sbr.rel (%p758) target = $region88
      $region87: #{tpu_custom_call.1} parent=5 // pred_region
        // Predicated region
        $region89: #{tpu_custom_call.1} parent=87 // pred_check
          %p761 = pneg %p64
        $region90: #{tpu_custom_call.1} parent=87 // pred_check_branch
          %763 = sbr.rel (%p761) target = $region92
        $region91: #{tpu_custom_call.1} parent=87 // pred_region
          %p764 = scmp.lt.s32.totalorder %s44, 1
          %s765 = scalar_select %p764, %s44, 1
          %s766 = smul.addr %s765, 2
          %s767 = smul.addr %s766, 8
          %s768 = scalar_lea.vmem %s0, %s767
        $region92: #{tpu_custom_call.1} parent=87 // pred_fallthru
          _
        // Predicated region
        $region93: #{tpu_custom_call.1} parent=87 // pred_check
          %p769 = pneg %p90
        $region94: #{tpu_custom_call.1} parent=87 // pred_check_branch
          %771 = sbr.rel (%p769) target = $region96
        $region95: #{tpu_custom_call.1} parent=87 // pred_region
          %s772 = sand.u32 %s80, 1
          %s773 = scalar_lea.sflag [#allocation3], %s772
          %s774 = sand.u32 %s80, 1
          %s775 = smul.addr %s774, 8
          %s776 = scalar_lea.vmem [#allocation2], %s775
          %s778 = ssub.s32 128, 128
          %779 = vsyncadd %s773, %s778
          %s780 = smul.addr %s44, 128
          %s781 = scalar_lea.hbm %s1, %s780
          %s783 = sshll.u32 %s776, 4
          %s784 = int_to_ptr.vmem [resolvable:$true] %s783
          %786 = dma.hbm_to_vmem [thread:$0]  %s781, 128, %s784, %s773
        $region96: #{tpu_custom_call.1} parent=87 // pred_fallthru
          _
        // Predicated region
        $region97: #{tpu_custom_call.1} parent=87 // pred_check
          %p787 = pneg %p116
        $region98: #{tpu_custom_call.1} parent=87 // pred_check_branch
          %789 = sbr.rel (%p787) target = $region100
        $region99: #{tpu_custom_call.1} parent=87 // pred_region
          %p790 = scmp.lt.s32.totalorder %s44, 1
          %s791 = scalar_select %p790, %s44, 1
          %s792 = smul.addr %s791, 8
          %s793 = scalar_lea.vmem %s2, %s792
        $region100: #{tpu_custom_call.1} parent=87 // pred_fallthru
          _
        // Predicated region
        $region101: #{tpu_custom_call.1} parent=87 // pred_check
          %p794 = pneg %p142
        $region102: #{tpu_custom_call.1} parent=87 // pred_check_branch
          %796 = sbr.rel (%p794) target = $region104
        $region103: #{tpu_custom_call.1} parent=87 // pred_region
          %p797 = scmp.lt.s32.totalorder %s44, 1
          %s798 = scalar_select %p797, %s44, 1
          %s799 = smul.addr %s798, 2
          %s800 = smul.addr %s799, 8
          %s801 = scalar_lea.vmem %s3, %s800
        $region104: #{tpu_custom_call.1} parent=87 // pred_fallthru
          _
        // Predicated region
        $region105: #{tpu_custom_call.1} parent=87 // pred_check
          %p802 = pneg %p168
        $region106: #{tpu_custom_call.1} parent=87 // pred_check_branch
          %804 = sbr.rel (%p802) target = $region108
        $region107: #{tpu_custom_call.1} parent=87 // pred_region
          %p805 = scmp.lt.s32.totalorder %s44, 1
          %s806 = scalar_select %p805, %s44, 1
          %s807 = smul.addr %s806, 2
          %s808 = smul.addr %s807, 8
          %s809 = scalar_lea.vmem %s4, %s808
        $region108: #{tpu_custom_call.1} parent=87 // pred_fallthru
          _
        // Predicated region
        $region109: #{tpu_custom_call.1} parent=87 // pred_check
          %p810 = pneg %p194
        $region110: #{tpu_custom_call.1} parent=87 // pred_check_branch
          %812 = sbr.rel (%p810) target = $region112
        $region111: #{tpu_custom_call.1} parent=87 // pred_region
          %s813 = sand.u32 %s44, 1
          %s814 = scalar_lea.sflag [#allocation6], %s813
          %s815 = sand.u32 %s184, 1
          %s816 = scalar_lea.vmem [#allocation5], %s815
          %s818 = ssub.s32 16, 16
          %819 = vsyncadd %s814, %s818
          %s820 = smul.addr %s44, 16
          %s821 = scalar_lea.hbm %s5, %s820
          %s823 = sshll.u32 %s816, 4
          %s824 = int_to_ptr.vmem [resolvable:$true] %s823
          %826 = dma.hbm_to_vmem [thread:$0]  %s821, 16, %s824, %s814
        $region112: #{tpu_custom_call.1} parent=87 // pred_fallthru
          _
      $region88: #{tpu_custom_call.1} parent=5 // pred_fallthru
        _
      %p827 = scmp.le.s32.totalorder 1, %s44
      %p828 = scmp.lt.s32.totalorder %s44, 3
      %p829 = pnand %p827, %p828
      %p830 = pneg %p829
      // Predicated region
      $region113: #{tpu_custom_call.1} parent=5 // pred_check
        _
      $region114: #{tpu_custom_call.1} parent=5 // pred_check_branch
        %832 = sbr.rel (%p829) target = $region116
      $region115: #{tpu_custom_call.1} parent=5 // pred_region
        %s833 = ssub.s32 %s44, 1
        %s834 = sand.u32 %s83, 1
        %s835 = scalar_lea.sflag [#allocation3], %s834
        %s836 = sand.u32 %s83, 1
        %s837 = smul.addr %s836, 8
        %s838 = scalar_lea.vmem [#allocation2], %s837
        // Predicated region
        $region117: #{tpu_custom_call.1} parent=115 // pred_check
          %p839 = pneg %p96
        $region118: #{tpu_custom_call.1} parent=115 // pred_check_branch
          %841 = sbr.rel (%p839) target = $region120
        $region119: #{tpu_custom_call.1} parent=115 // pred_region
          %842 = dma.done %s835, 128
        $region120: #{tpu_custom_call.1} parent=115 // pred_fallthru
          _
        %s843 = sand.u32 %s49, 1
        %s844 = scalar_lea.sflag [#allocation6], %s843
        %s845 = sand.u32 %s187, 1
        %s846 = scalar_lea.vmem [#allocation5], %s845
        // Predicated region
        $region121: #{tpu_custom_call.1} parent=115 // pred_check
          %p847 = pneg %p200
        $region122: #{tpu_custom_call.1} parent=115 // pred_check_branch
          %849 = sbr.rel (%p847) target = $region124
        $region123: #{tpu_custom_call.1} parent=115 // pred_region
          %850 = dma.done %s844, 16
        $region124: #{tpu_custom_call.1} parent=115 // pred_fallthru
          _
        // Predicated region
        $region125: #{tpu_custom_call.1} parent=115 // pred_check
          %p851 = pneg %p242
        $region126: #{tpu_custom_call.1} parent=115 // pred_check_branch
          %853 = sbr.rel (%p851) target = $region128
        $region127: #{tpu_custom_call.1} parent=115 // pred_region
          %854 = dma.done [#allocation6], 16
        $region128: #{tpu_custom_call.1} parent=115 // pred_fallthru
          _
        // Predicated region
        $region129: #{tpu_custom_call.1} parent=115 // pred_check
          %p855 = pneg %p263
        $region130: #{tpu_custom_call.1} parent=115 // pred_check_branch
          %857 = sbr.rel (%p855) target = $region132
        $region131: #{tpu_custom_call.1} parent=115 // pred_region
          %858 = dma.done [#allocation9], 16
        $region132: #{tpu_custom_call.1} parent=115 // pred_fallthru
          _
        // Predicated region
        $region133: #{tpu_custom_call.1} parent=115 // pred_check
          %p859 = pneg %p284
        $region134: #{tpu_custom_call.1} parent=115 // pred_check_branch
          %861 = sbr.rel (%p859) target = $region136
        $region135: #{tpu_custom_call.1} parent=115 // pred_region
          %862 = dma.done [#allocation9], 16
        $region136: #{tpu_custom_call.1} parent=115 // pred_fallthru
          _
        // Predicated region
        $region137: #{tpu_custom_call.1} parent=115 // pred_check
          %p863 = pneg %p326
        $region138: #{tpu_custom_call.1} parent=115 // pred_check_branch
          %865 = sbr.rel (%p863) target = $region140
        $region139: #{tpu_custom_call.1} parent=115 // pred_region
          %866 = dma.done [#allocation12], 16
        $region140: #{tpu_custom_call.1} parent=115 // pred_fallthru
          _
        // Predicated region
        $region141: #{tpu_custom_call.1} parent=115 // pred_check
          %p867 = pneg %p368
        $region142: #{tpu_custom_call.1} parent=115 // pred_check_branch
          %869 = sbr.rel (%p867) target = $region144
        $region143: #{tpu_custom_call.1} parent=115 // pred_region
          %870 = dma.done [#allocation12], 16
        $region144: #{tpu_custom_call.1} parent=115 // pred_fallthru
          _
        // Predicated region
        $region145: #{tpu_custom_call.1} parent=115 // pred_check
          %p871 = pneg %p389
        $region146: #{tpu_custom_call.1} parent=115 // pred_check_branch
          %873 = sbr.rel (%p871) target = $region148
        $region147: #{tpu_custom_call.1} parent=115 // pred_region
          %874 = dma.done [#allocation15], 512
        $region148: #{tpu_custom_call.1} parent=115 // pred_fallthru
          _
        // Predicated region
        $region149: #{tpu_custom_call.1} parent=115 // pred_check
          %p875 = pneg %p410
        $region150: #{tpu_custom_call.1} parent=115 // pred_check_branch
          %877 = sbr.rel (%p875) target = $region152
        $region151: #{tpu_custom_call.1} parent=115 // pred_region
          %878 = dma.done [#allocation15], 16
        $region152: #{tpu_custom_call.1} parent=115 // pred_fallthru
          _
        // Predicated region
        $region153: #{tpu_custom_call.1} parent=115 // pred_check
          %p879 = pneg %p431
        $region154: #{tpu_custom_call.1} parent=115 // pred_check_branch
          %881 = sbr.rel (%p879) target = $region156
        $region155: #{tpu_custom_call.1} parent=115 // pred_region
          %882 = dma.done [#allocation18], 16
        $region156: #{tpu_custom_call.1} parent=115 // pred_fallthru
          _
        // Predicated region
        $region157: #{tpu_custom_call.1} parent=115 // pred_check
          %p883 = pneg %p452
        $region158: #{tpu_custom_call.1} parent=115 // pred_check_branch
          %885 = sbr.rel (%p883) target = $region160
        $region159: #{tpu_custom_call.1} parent=115 // pred_region
          %886 = dma.done [#allocation18], 16
        $region160: #{tpu_custom_call.1} parent=115 // pred_fallthru
          _
        // Predicated region
        $region161: #{tpu_custom_call.1} parent=115 // pred_check
          %p887 = pneg %p515
        $region162: #{tpu_custom_call.1} parent=115 // pred_check_branch
          %889 = sbr.rel (%p887) target = $region164
        $region163: #{tpu_custom_call.1} parent=115 // pred_region
          %890 = dma.done [#allocation21], 512
        $region164: #{tpu_custom_call.1} parent=115 // pred_fallthru
          _
        %p891 = scmp.lt.s32.totalorder %s49, 1
        %s892 = scalar_select %p891, %s49, 1
        %s893 = smul.addr %s892, 2
        %s894 = smul.addr %s893, 8
        %s895 = scalar_lea.vmem %s0, %s894
        %p896 = pneg %p70
        %p897 = pneg %p67
        %s898 = sand.u32 %s83, 1
        %s899 = scalar_lea.sflag [#allocation3], %s898
        %s900 = sand.u32 %s83, 1
        %s901 = smul.addr %s900, 8
        %s902 = scalar_lea.vmem [#allocation2], %s901
        %p903 = pneg %p96
        %p904 = pneg %p93
        %p905 = scmp.lt.s32.totalorder %s49, 1
        %s906 = scalar_select %p905, %s49, 1
        %s907 = smul.addr %s906, 8
        %s908 = scalar_lea.vmem %s2, %s907
        %p909 = pneg %p122
        %p910 = pneg %p119
        %p911 = scmp.lt.s32.totalorder %s49, 1
        %s912 = scalar_select %p911, %s49, 1
        %s913 = smul.addr %s912, 2
        %s914 = smul.addr %s913, 8
        %s915 = scalar_lea.vmem %s3, %s914
        %p916 = pneg %p148
        %p917 = pneg %p145
        %p918 = scmp.lt.s32.totalorder %s49, 1
        %s919 = scalar_select %p918, %s49, 1
        %s920 = smul.addr %s919, 2
        %s921 = smul.addr %s920, 8
        %s922 = scalar_lea.vmem %s4, %s921
        %p923 = pneg %p174
        %p924 = pneg %p171
        %s925 = sand.u32 %s49, 1
        %s926 = scalar_lea.sflag [#allocation6], %s925
        %s927 = sand.u32 %s187, 1
        %s928 = scalar_lea.vmem [#allocation5], %s927
        %p929 = pneg %p200
        %p930 = pneg %p197
        %p931 = pneg %p221
        %p932 = pneg %p218
        %p933 = pneg %p242
        %p934 = pneg %p239
        %p935 = pneg %p263
        %p936 = pneg %p260
        %p937 = pneg %p284
        %p938 = pneg %p281
        %p939 = pneg %p305
        %p940 = pneg %p302
        %p941 = pneg %p326
        %p942 = pneg %p323
        %p943 = pneg %p347
        %p944 = pneg %p344
        %p945 = pneg %p368
        %p946 = pneg %p365
        %p947 = pneg %p389
        %p948 = pneg %p386
        %p949 = pneg %p410
        %p950 = pneg %p407
        %p951 = pneg %p431
        %p952 = pneg %p428
        %p953 = pneg %p452
        %p954 = pneg %p449
        %p955 = pneg %p473
        %p956 = pneg %p470
        %p957 = pneg %p494
        %p958 = pneg %p491
        %p959 = pneg %p515
        %p960 = pneg %p512
        %p961 = pneg %p536
        %p962 = pneg %p533
        %p963 = pneg %p557
        %p964 = pneg %p554
        %p965 = pneg %p578
        %p966 = pneg %p575
        %p967 = pneg %p604
        %p968 = pneg %p601
        %s969 = sand.u32 %s591, 1
        %s970 = scalar_lea.sflag [#allocation4], %s969
        %s971 = sand.u32 %s591, 1
        %s972 = smul.addr %s971, 16
        %s973 = scalar_lea.vmem [#allocation22], %s972
        %p974 = scmp.lt.s32.totalorder %s49, 1
        %s975 = scalar_select %p974, %s49, 1
        %s976 = smul.addr %s975, 2
        %s977 = smul.addr %s976, 8
        %s978 = scalar_lea.vmem %s0, %s977
        %p979 = scmp.lt.s32.totalorder %s49, 1
        %s980 = scalar_select %p979, %s49, 1
        %s981 = smul.addr %s980, 8
        %s982 = scalar_lea.vmem %s2, %s981
        %p983 = scmp.lt.s32.totalorder %s49, 1
        %s984 = scalar_select %p983, %s49, 1
        %s985 = smul.addr %s984, 2
        %s986 = smul.addr %s985, 8
        %s987 = scalar_lea.vmem %s3, %s986
        %p988 = scmp.lt.s32.totalorder %s49, 1
        %s989 = scalar_select %p988, %s49, 1
        %s990 = smul.addr %s989, 2
        %s991 = smul.addr %s990, 8
        %s992 = scalar_lea.vmem %s4, %s991
        %v993 = vld [vmem:[%s978] sm:$0xff]
        %v994 = vld [vmem:[%s978 + $0x8] sm:$0xff]
        %v995 = vld [vmem:[%s838] sm:$0xff]
        %v996 = vld [vmem:[%s982] sm:$0x3f]
        %v997 = vld [vmem:[%s987] sm:$0xff]
        %v998 = vld [vmem:[%s987 + $0x8] sm:$0xff]
        %v999 = vld [vmem:[%s992] sm:$0xff]
        %v1000 = vld [vmem:[%s992 + $0x8] sm:$0xff]
        %v1001 = vld [vmem:[%s846] sm:$0x1]
        %v1002 = vmul.f32 %v993, %v993
        %v1003 = vmul.f32 %v994, %v994
        %vm1004 = vcmask 261120
        %v1005 = vsel %vm1004, %v1002, 0.0
        %1006 = vadd.xlane.f32.xlu0 %v1005
        %v1007 = vpop.xlane.xlu0 %1006
        %v1008 = vsel %vm1004, %v1003, 0.0
        %1009 = vadd.xlane.f32.xlu0 %v1008
        %v1010 = vpop.xlane.xlu0 %1009
        %v1011 = vrcp.pop 32.0
        %v1012 = vmul.f32 %v1007, %v1011
        %v1013 = vmul.f32 %v1010, %v1011
        %v1014 = vadd.f32 %v1012, 1e-06
        %v1015 = vadd.f32 %v1013, 1e-06
        %v1016 = vrsqrt.pop %v1014
        %v1017 = vrsqrt.pop %v1015
        %v1018 = vmul.f32 %v993, %v1016
        %v1019 = vmul.f32 %v994, %v1017
        %v1020 = vadd.f32 %v996, 1.0
        %v1021 = vlaneseq
        %v1022 = vshrl.u32 %v1021, 7
        %v1023 = vsub.s32 1, %v1022
        %v1024 = vrot.slane %v1020, %v1023
        %v1025 = vmul.f32 %v1018, %v1024
        %v1026 = vmul.f32 %v1019, %v1024
        %v1027 = vlaneseq
        %v1028 = vshrl.u32 %v1027, 7
        %v1029 = vsub.s32 0, %v1028
        %v1030 = vrot.slane %v996, %v1029
        %v1031 = vadd.f32 %v1025, %v1030
        %v1032 = vadd.f32 %v1026, %v1030
        %v1033 = vld [vmem:[%s6] sm:$0xff]
        %v1034 = vld [vmem:[%s6 + $0x8] sm:$0xff]
        %v1035 = vld [vmem:[%s6 + $0x10] sm:$0xff]
        %v1036 = vld [vmem:[%s6 + $0x18] sm:$0xff]
        %v1037 = vld [vmem:[#allocation7] sm:$0x1]
        %v1039 = vlaneseq
        %v1040 = vshrl.u32 %v1039, 7
        %v1041 = vsub.s32 0, %v1040
        %v1042 = vrot.slane %v1037, %v1041
        %v1045 = vsel %vm1004, %v1031, 0
        %v1048 = vsel %vm1004, %v1032, 0
        %1050 = vmatprep.subr.mxu0 0.0
        %1051 = vmatpush1.msra.mxu0 %v1033
        %1052 = vmatprep.subr.mxu0 0.0
        %1053 = vmatpush1.msra.mxu0 %v1034
        %1054 = vmatprep.subr.mxu0 0.0
        %1055 = vmatpush1.msra.mxu0 %v1035
        %1056 = vmatprep.subr.mxu0 0.0
        %1057 = vmatpush1.msra.mxu0 %v1036
        %1058 = vmatprep.subr.mxu0 0.0
        %1059 = vmatpush1.msra.mxu0 0.0
        %1060 = vmatprep.subr.mxu0 0.0
        %1061 = vmatpush1.msra.mxu0 0.0
        %1062 = vmatprep.subr.mxu0 0.0
        %1063 = vmatpush1.msra.mxu0 0.0
        %1064 = vmatprep.subr.mxu0 0.0
        %1065 = vmatpush1.msra.mxu0 0.0
        %1066 = vmatprep.subr.mxu0 0.0
        %1067 = vmatpush1.msra.mxu0 0.0
        %1068 = vmatprep.subr.mxu0 0.0
        %1069 = vmatpush1.msra.mxu0 0.0
        %1070 = vmatprep.subr.mxu0 0.0
        %1071 = vmatpush1.msra.mxu0 0.0
        %1072 = vmatprep.subr.mxu0 0.0
        %1073 = vmatpush1.msra.mxu0 0.0
        %1074 = vmatprep.subr.mxu0 0.0
        %1075 = vmatpush1.msra.mxu0 0.0
        %1076 = vmatprep.subr.mxu0 0.0
        %1077 = vmatpush1.msra.mxu0 0.0
        %1078 = vmatprep.subr.mxu0 0.0
        %1079 = vmatpush1.msra.mxu0 0.0
        %1080 = vmatprep.subr.mxu0 0.0
        %1081 = vmatpush1.msra.mxu0 0.0
        %1082 = vmatprep.subr.mxu0 0.0
        %1083 = vmatpush1.msra.mxu0 0.0
        %1084 = vmatprep.subr.mxu0 0.0
        %1085 = vmatpush1.msra.mxu0 0.0
        %1086 = vmatprep.subr.mxu0 0.0
        %1087 = vmatpush1.msra.mxu0 0.0
        %1088 = vmatprep.subr.mxu0 0.0
        %1089 = vmatpush1.msra.mxu0 0.0
        %1090 = vmatprep.subr.mxu0 0.0
        %1091 = vmatpush1.msra.mxu0 0.0
        %1092 = vmatprep.subr.mxu0 0.0
        %1093 = vmatpush1.msra.mxu0 0.0
        %1094 = vmatprep.subr.mxu0 0.0
        %1095 = vmatpush1.msra.mxu0 0.0
        %1096 = vmatprep.subr.mxu0 0.0
        %1097 = vmatpush1.msra.mxu0 0.0
        %1098 = vmatprep.subr.mxu0 0.0
        %1099 = vmatpush1.msra.mxu0 0.0
        %1100 = vmatprep.subr.mxu0 0.0
        %1101 = vmatpush1.msra.mxu0 0.0
        %1102 = vmatprep.subr.mxu0 0.0
        %1103 = vmatpush1.msra.mxu0 0.0
        %1104 = vmatprep.subr.mxu0 0.0
        %1105 = vmatpush1.msra.mxu0 0.0
        %1106 = vmatprep.subr.mxu0 0.0
        %1107 = vmatpush1.msra.mxu0 0.0
        %1108 = vmatprep.subr.mxu0 0.0
        %1109 = vmatpush1.msra.mxu0 0.0
        %1110 = vmatprep.subr.mxu0 0.0
        %1111 = vmatpush1.msra.mxu0 0.0
        %1112 = vmatprep.subr.mxu0 0.0
        %1113 = vmatpush1.msra.mxu0 0.0
        %1114 = vmatprep.mubr.f32.mxu0 0.0
        %1115 = vmatmul.mubr.f32.gmra.mrb[0].mxu0 %v1045
        %v1116 = vpop.f32.mrb[0].mxu0
        %v1117 = vadd.f32 %v1042, %v1116
        %v1118 = vpop.f32.mrb[0].mxu0
        %1119 = vmatprep.mubr.f32.mxu0 0.0
        %1120 = vmatmul.mubr.f32.gmra.mrb[0].mxu0 %v1048
        %v1121 = vpop.f32.mrb[0].mxu0
        %v1122 = vadd.f32 %v1042, %v1121
        %v1123 = vpop.f32.mrb[0].mxu0
        %1124 = vdwg.mxu0
        %v1125 = vld [vmem:[#allocation8] sm:$0x1]
        %v1126 = vmul.f32 %v1117, %v1117
        %v1127 = vmul.f32 %v1122, %v1122
        %v1128 = vsel %vm1004, %v1126, 0.0
        %1129 = vadd.xlane.f32.xlu0 %v1128
        %v1130 = vpop.xlane.xlu0 %1129
        %v1131 = vsel %vm1004, %v1127, 0.0
        %1132 = vadd.xlane.f32.xlu0 %v1131
        %v1133 = vpop.xlane.xlu0 %1132
        %v1134 = vmul.f32 %v1130, %v1011
        %v1135 = vmul.f32 %v1133, %v1011
        %v1136 = vadd.f32 %v1134, 1e-05
        %v1137 = vadd.f32 %v1135, 1e-05
        %v1138 = vrsqrt.pop %v1136
        %v1139 = vrsqrt.pop %v1137
        %v1140 = vmul.f32 %v1117, %v1138
        %v1141 = vmul.f32 %v1122, %v1139
        %v1143 = vlaneseq
        %v1144 = vshrl.u32 %v1143, 7
        %v1145 = vsub.s32 0, %v1144
        %v1146 = vrot.slane %v1125, %v1145
        %v1148 = vmul.f32 %v1140, %v1146
        %v1149 = vmul.f32 %v1141, %v1146
        %v1150 = vld [vmem:[#allocation10] sm:$0x1]
        %1153 = vrot.lane.b32.xlu0 %v1126, 96
        %v1154 = vpop.permute.xlu0 %1153
        %1155 = vrot.lane.b32.xlu0 %v1127, 96
        %v1156 = vpop.permute.xlu0 %1155
        %v1159 = vsel %vm1004, %v1154, 0.0
        %1160 = vadd.xlane.f32.xlu0 %v1159
        %v1161 = vpop.xlane.xlu0 %1160
        %v1162 = vsel %vm1004, %v1156, 0.0
        %1163 = vadd.xlane.f32.xlu0 %v1162
        %v1164 = vpop.xlane.xlu0 %1163
        %v1165 = vmul.f32 %v1161, %v1011
        %v1166 = vmul.f32 %v1164, %v1011
        %v1167 = vadd.f32 %v1165, 1e-05
        %v1168 = vadd.f32 %v1166, 1e-05
        %v1169 = vrsqrt.pop %v1167
        %v1170 = vrsqrt.pop %v1168
        %v1171 = vmul.f32 %v1117, %v1169
        %v1172 = vmul.f32 %v1122, %v1170
        %v1174 = vlaneseq
        %v1175 = vshrl.u32 %v1174, 7
        %v1176 = vsub.s32 0, %v1175
        %v1177 = vrot.slane %v1150, %v1176
        %1178 = vrot.lane.b32.xlu0 %v1177, 32
        %v1179 = vpop.permute.xlu0 %1178
        %v1181 = vmul.f32 %v1171, %v1179
        %v1182 = vmul.f32 %v1172, %v1179
        %v1183 = vmul.f32 %v1148, %v997
        %v1184 = vmul.f32 %v1149, %v998
        %v1185 = vsub.f32 0.0, %v1148
        %v1186 = vsub.f32 0.0, %v1149
        %1189 = vrot.lane.b32.xlu0 %v1185, 120
        %v1190 = vpop.permute.xlu0 %1189
        %1191 = vrot.lane.b32.xlu0 %v1186, 120
        %v1192 = vpop.permute.xlu0 %1191
        %1197 = vrot.lane.b32.xlu0 %v1148, 8
        %v1198 = vpop.permute.xlu0 %1197
        %1199 = vrot.lane.b32.xlu0 %v1149, 8
        %v1200 = vpop.permute.xlu0 %1199
        %vm1203 = vcmask 64512
        %v1204 = vsel %vm1203, %v1190, %v1198
        %v1205 = vsel %vm1203, %v1192, %v1200
        %vm1206 = vcmask 130048
        %v1207 = vsel %vm1206, %v1204, %v1190
        %v1208 = vsel %vm1206, %v1205, %v1192
        %vm1209 = vcmask 195584
        %v1210 = vsel %vm1209, %v1207, %v1198
        %v1211 = vsel %vm1209, %v1208, %v1200
        %v1212 = vmul.f32 %v1210, %v999
        %v1213 = vmul.f32 %v1211, %v1000
        %v1214 = vadd.f32 %v1183, %v1212
        %v1215 = vadd.f32 %v1184, %v1213
        %1218 = vrot.lane.b32.xlu0 %v997, 32
        %v1219 = vpop.permute.xlu0 %1218
        %1220 = vrot.lane.b32.xlu0 %v998, 32
        %v1221 = vpop.permute.xlu0 %1220
        %v1224 = vmul.f32 %v1181, %v1219
        %v1225 = vmul.f32 %v1182, %v1221
        %v1226 = vsub.f32 0.0, %v1181
        %v1227 = vsub.f32 0.0, %v1182
        %1230 = vrot.lane.b32.xlu0 %v1226, 88
        %v1231 = vpop.permute.xlu0 %1230
        %1232 = vrot.lane.b32.xlu0 %v1227, 88
        %v1233 = vpop.permute.xlu0 %1232
        %1238 = vrot.lane.b32.xlu0 %v1181, 104
        %v1239 = vpop.permute.xlu0 %1238
        %1240 = vrot.lane.b32.xlu0 %v1182, 104
        %v1241 = vpop.permute.xlu0 %1240
        %v1244 = vsel %vm1203, %v1231, %v1239
        %v1245 = vsel %vm1203, %v1233, %v1241
        %v1246 = vsel %vm1206, %v1244, %v1231
        %v1247 = vsel %vm1206, %v1245, %v1233
        %v1248 = vsel %vm1209, %v1246, %v1239
        %v1249 = vsel %vm1209, %v1247, %v1241
        %v1250 = vmul.f32 %v1248, %v999
        %v1251 = vmul.f32 %v1249, %v1000
        %1254 = vrot.lane.b32.xlu0 %v1250, 32
        %v1255 = vpop.permute.xlu0 %1254
        %1256 = vrot.lane.b32.xlu0 %v1251, 32
        %v1257 = vpop.permute.xlu0 %1256
        %v1260 = vadd.f32 %v1224, %v1255
        %v1261 = vadd.f32 %v1225, %v1257
        %v1262 = vld [vmem:[%s10] sm:$0xff]
        %v1263 = vld [vmem:[%s10 + $0x8] sm:$0xff]
        %v1264 = vld [vmem:[%s10 + $0x10] sm:$0xff]
        %v1265 = vld [vmem:[%s10 + $0x18] sm:$0xff]
        %v1266 = vld [vmem:[#allocation11] sm:$0x1]
        %1269 = vrot.lane.b32.xlu0 %v1260, 96
        %v1270 = vpop.permute.xlu0 %1269
        %1271 = vrot.lane.b32.xlu0 %v1261, 96
        %v1272 = vpop.permute.xlu0 %1271
        %v1274 = vsel %vm1206, %v1214, 0
        %v1277 = vsel %vm1206, %v1215, 0
        %v1279 = vsel %vm1206, %v1270, 0
        %v1281 = vsel %vm1206, %v1272, 0
        %1283 = vmatprep.subr.mxu0 0.0
        %1284 = vmatpush1.xpose.msra.mxu0 %v1279
        %1285 = vmatprep.subr.mxu0 0.0
        %1286 = vmatpush1.xpose.msra.mxu0 %v1281
        %1287 = vmatprep.subr.mxu0 0.0
        %1288 = vmatpush1.xpose.msra.mxu0 0.0
        %1289 = vmatprep.subr.mxu0 0.0
        %1290 = vmatpush1.xpose.msra.mxu0 0.0
        %1291 = vmatprep.subr.mxu0 0.0
        %1292 = vmatpush1.xpose.msra.mxu0 0.0
        %1293 = vmatprep.subr.mxu0 0.0
        %1294 = vmatpush1.xpose.msra.mxu0 0.0
        %1295 = vmatprep.subr.mxu0 0.0
        %1296 = vmatpush1.xpose.msra.mxu0 0.0
        %1297 = vmatprep.subr.mxu0 0.0
        %1298 = vmatpush1.xpose.msra.mxu0 0.0
        %1299 = vmatprep.subr.mxu0 0.0
        %1300 = vmatpush1.xpose.msra.mxu0 0.0
        %1301 = vmatprep.subr.mxu0 0.0
        %1302 = vmatpush1.xpose.msra.mxu0 0.0
        %1303 = vmatprep.subr.mxu0 0.0
        %1304 = vmatpush1.xpose.msra.mxu0 0.0
        %1305 = vmatprep.subr.mxu0 0.0
        %1306 = vmatpush1.xpose.msra.mxu0 0.0
        %1307 = vmatprep.subr.mxu0 0.0
        %1308 = vmatpush1.xpose.msra.mxu0 0.0
        %1309 = vmatprep.subr.mxu0 0.0
        %1310 = vmatpush1.xpose.msra.mxu0 0.0
        %1311 = vmatprep.subr.mxu0 0.0
        %1312 = vmatpush1.xpose.msra.mxu0 0.0
        %1313 = vmatprep.subr.mxu0 0.0
        %1314 = vmatpush1.xpose.msra.mxu0 0.0
        %1315 = vmatprep.subr.mxu0 0.0
        %1316 = vmatpush1.xpose.msra.mxu0 0.0
        %1317 = vmatprep.subr.mxu0 0.0
        %1318 = vmatpush1.xpose.msra.mxu0 0.0
        %1319 = vmatprep.subr.mxu0 0.0
        %1320 = vmatpush1.xpose.msra.mxu0 0.0
        %1321 = vmatprep.subr.mxu0 0.0
        %1322 = vmatpush1.xpose.msra.mxu0 0.0
        %1323 = vmatprep.subr.mxu0 0.0
        %1324 = vmatpush1.xpose.msra.mxu0 0.0
        %1325 = vmatprep.subr.mxu0 0.0
        %1326 = vmatpush1.xpose.msra.mxu0 0.0
        %1327 = vmatprep.subr.mxu0 0.0
        %1328 = vmatpush1.xpose.msra.mxu0 0.0
        %1329 = vmatprep.subr.mxu0 0.0
        %1330 = vmatpush1.xpose.msra.mxu0 0.0
        %1331 = vmatprep.subr.mxu0 0.0
        %1332 = vmatpush1.xpose.msra.mxu0 0.0
        %1333 = vmatprep.subr.mxu0 0.0
        %1334 = vmatpush1.xpose.msra.mxu0 0.0
        %1335 = vmatprep.subr.mxu0 0.0
        %1336 = vmatpush1.xpose.msra.mxu0 0.0
        %1337 = vmatprep.subr.mxu0 0.0
        %1338 = vmatpush1.xpose.msra.mxu0 0.0
        %1339 = vmatprep.subr.mxu0 0.0
        %1340 = vmatpush1.xpose.msra.mxu0 0.0
        %1341 = vmatprep.subr.mxu0 0.0
        %1342 = vmatpush1.xpose.msra.mxu0 0.0
        %1343 = vmatprep.subr.mxu0 0.0
        %1344 = vmatpush1.xpose.msra.mxu0 0.0
        %1345 = vmatprep.subr.mxu0 0.0
        %1346 = vmatpush1.xpose.msra.mxu0 0.0
        %1347 = vmatprep.mubr.f32.mxu0 0.0
        %1348 = vmatmul.mubr.f32.gmra.mrb[0].mxu0 %v1274
        %v1349 = vpop.f32.mrb[0].mxu0
        %v1350 = vadd.f32 0.0, %v1349
        %v1351 = vpop.f32.mrb[0].mxu0
        %1352 = vmatprep.mubr.f32.mxu0 0.0
        %1353 = vmatmul.mubr.f32.gmra.mrb[0].mxu0 %v1277
        %v1354 = vpop.f32.mrb[0].mxu0
        %v1355 = vadd.f32 0.0, %v1354
        %v1356 = vpop.f32.mrb[0].mxu0
        %1357 = vdwg.mxu0
        %1358 = vrot.lane.b32.xlu0 %v1214, 112
        %v1359 = vpop.permute.xlu0 %1358
        %1360 = vrot.lane.b32.xlu0 %v1215, 112
        %v1361 = vpop.permute.xlu0 %1360
        %1362 = vrot.lane.b32.xlu0 %v1260, 80
        %v1363 = vpop.permute.xlu0 %1362
        %1364 = vrot.lane.b32.xlu0 %v1261, 80
        %v1365 = vpop.permute.xlu0 %1364
        %v1366 = vsel %vm1206, %v1359, 0
        %v1368 = vsel %vm1206, %v1361, 0
        %v1370 = vsel %vm1206, %v1363, 0
        %v1372 = vsel %vm1206, %v1365, 0
        %1374 = vmatprep.subr.mxu0 0.0
        %1375 = vmatpush1.xpose.msra.mxu0 %v1370
        %1376 = vmatprep.subr.mxu0 0.0
        %1377 = vmatpush1.xpose.msra.mxu0 %v1372
        %1378 = vmatprep.subr.mxu0 0.0
        %1379 = vmatpush1.xpose.msra.mxu0 0.0
        %1380 = vmatprep.subr.mxu0 0.0
        %1381 = vmatpush1.xpose.msra.mxu0 0.0
        %1382 = vmatprep.subr.mxu0 0.0
        %1383 = vmatpush1.xpose.msra.mxu0 0.0
        %1384 = vmatprep.subr.mxu0 0.0
        %1385 = vmatpush1.xpose.msra.mxu0 0.0
        %1386 = vmatprep.subr.mxu0 0.0
        %1387 = vmatpush1.xpose.msra.mxu0 0.0
        %1388 = vmatprep.subr.mxu0 0.0
        %1389 = vmatpush1.xpose.msra.mxu0 0.0
        %1390 = vmatprep.subr.mxu0 0.0
        %1391 = vmatpush1.xpose.msra.mxu0 0.0
        %1392 = vmatprep.subr.mxu0 0.0
        %1393 = vmatpush1.xpose.msra.mxu0 0.0
        %1394 = vmatprep.subr.mxu0 0.0
        %1395 = vmatpush1.xpose.msra.mxu0 0.0
        %1396 = vmatprep.subr.mxu0 0.0
        %1397 = vmatpush1.xpose.msra.mxu0 0.0
        %1398 = vmatprep.subr.mxu0 0.0
        %1399 = vmatpush1.xpose.msra.mxu0 0.0
        %1400 = vmatprep.subr.mxu0 0.0
        %1401 = vmatpush1.xpose.msra.mxu0 0.0
        %1402 = vmatprep.subr.mxu0 0.0
        %1403 = vmatpush1.xpose.msra.mxu0 0.0
        %1404 = vmatprep.subr.mxu0 0.0
        %1405 = vmatpush1.xpose.msra.mxu0 0.0
        %1406 = vmatprep.subr.mxu0 0.0
        %1407 = vmatpush1.xpose.msra.mxu0 0.0
        %1408 = vmatprep.subr.mxu0 0.0
        %1409 = vmatpush1.xpose.msra.mxu0 0.0
        %1410 = vmatprep.subr.mxu0 0.0
        %1411 = vmatpush1.xpose.msra.mxu0 0.0
        %1412 = vmatprep.subr.mxu0 0.0
        %1413 = vmatpush1.xpose.msra.mxu0 0.0
        %1414 = vmatprep.subr.mxu0 0.0
        %1415 = vmatpush1.xpose.msra.mxu0 0.0
        %1416 = vmatprep.subr.mxu0 0.0
        %1417 = vmatpush1.xpose.msra.mxu0 0.0
        %1418 = vmatprep.subr.mxu0 0.0
        %1419 = vmatpush1.xpose.msra.mxu0 0.0
        %1420 = vmatprep.subr.mxu0 0.0
        %1421 = vmatpush1.xpose.msra.mxu0 0.0
        %1422 = vmatprep.subr.mxu0 0.0
        %1423 = vmatpush1.xpose.msra.mxu0 0.0
        %1424 = vmatprep.subr.mxu0 0.0
        %1425 = vmatpush1.xpose.msra.mxu0 0.0
        %1426 = vmatprep.subr.mxu0 0.0
        %1427 = vmatpush1.xpose.msra.mxu0 0.0
        %1428 = vmatprep.subr.mxu0 0.0
        %1429 = vmatpush1.xpose.msra.mxu0 0.0
        %1430 = vmatprep.subr.mxu0 0.0
        %1431 = vmatpush1.xpose.msra.mxu0 0.0
        %1432 = vmatprep.subr.mxu0 0.0
        %1433 = vmatpush1.xpose.msra.mxu0 0.0
        %1434 = vmatprep.subr.mxu0 0.0
        %1435 = vmatpush1.xpose.msra.mxu0 0.0
        %1436 = vmatprep.subr.mxu0 0.0
        %1437 = vmatpush1.xpose.msra.mxu0 0.0
        %1438 = vmatprep.mubr.f32.mxu0 0.0
        %1439 = vmatmul.mubr.f32.gmra.mrb[0].mxu0 %v1366
        %v1440 = vpop.f32.mrb[0].mxu0
        %v1441 = vadd.f32 0.0, %v1440
        %v1442 = vpop.f32.mrb[0].mxu0
        %1443 = vmatprep.mubr.f32.mxu0 0.0
        %1444 = vmatmul.mubr.f32.gmra.mrb[0].mxu0 %v1368
        %v1445 = vpop.f32.mrb[0].mxu0
        %v1446 = vadd.f32 0.0, %v1445
        %v1447 = vpop.f32.mrb[0].mxu0
        %1448 = vdwg.mxu0
        %v1449 = vmul.f32 %v1350, 0.25
        %v1450 = vmul.f32 %v1355, 0.25
        %v1451 = vmul.f32 %v1441, 0.25
        %v1452 = vmul.f32 %v1446, 0.25
        %v1453 = vsel %vm1206, %v1449, -inf
        %1454 = vmax.xlane.f32.xlu0 %v1453
        %v1455 = vpop.xlane.xlu0 %1454
        %v1456 = vsel %vm1206, %v1450, -inf
        %1457 = vmax.xlane.f32.xlu0 %v1456
        %v1458 = vpop.xlane.xlu0 %1457
        %v1459 = vsel %vm1206, %v1451, -inf
        %1460 = vmax.xlane.f32.xlu0 %v1459
        %v1461 = vpop.xlane.xlu0 %1460
        %v1462 = vsel %vm1206, %v1452, -inf
        %1463 = vmax.xlane.f32.xlu0 %v1462
        %v1464 = vpop.xlane.xlu0 %1463
        %v1465 = vsub.f32 %v1449, %v1455
        %v1466 = vsub.f32 %v1450, %v1458
        %v1467 = vsub.f32 %v1451, %v1461
        %v1468 = vsub.f32 %v1452, %v1464
        %v1469 = vmul.f32 %v1465, 1.442695
        %v1470 = vpow.pop %v1469
        %v1471 = vmul.f32 %v1466, 1.442695
        %v1472 = vpow.pop %v1471
        %v1473 = vmul.f32 %v1467, 1.442695
        %v1474 = vpow.pop %v1473
        %v1475 = vmul.f32 %v1468, 1.442695
        %v1476 = vpow.pop %v1475
        %v1477 = vsel %vm1206, %v1470, 0.0
        %1478 = vadd.xlane.f32.xlu0 %v1477
        %v1479 = vpop.xlane.xlu0 %1478
        %v1480 = vsel %vm1206, %v1472, 0.0
        %1481 = vadd.xlane.f32.xlu0 %v1480
        %v1482 = vpop.xlane.xlu0 %1481
        %v1483 = vsel %vm1206, %v1474, 0.0
        %1484 = vadd.xlane.f32.xlu0 %v1483
        %v1485 = vpop.xlane.xlu0 %1484
        %v1486 = vsel %vm1206, %v1476, 0.0
        %1487 = vadd.xlane.f32.xlu0 %v1486
        %v1488 = vpop.xlane.xlu0 %1487
        %v1489 = vrcp.pop %v1479
        %v1490 = vrcp.pop %v1482
        %v1491 = vrcp.pop %v1485
        %v1492 = vrcp.pop %v1488
        %v1493 = vmul.f32 %v1470, %v1489
        %v1494 = vmul.f32 %v1472, %v1490
        %v1495 = vmul.f32 %v1474, %v1491
        %v1496 = vmul.f32 %v1476, %v1492
        %1499 = vrot.lane.b32.xlu0 %v1117, 64
        %v1500 = vpop.permute.xlu0 %1499
        %1501 = vrot.lane.b32.xlu0 %v1122, 64
        %v1502 = vpop.permute.xlu0 %1501
        %v1506 = vsel %vm1206, %v1493, 0
        %v1509 = vsel %vm1206, %v1494, 0
        %1511 = vmatprep.subr.mxu0 0.0
        %1512 = vmatpush1.msra.mxu0 %v1500
        %1513 = vmatprep.subr.mxu0 0.0
        %1514 = vmatpush1.msra.mxu0 %v1502
        %1515 = vmatprep.subr.mxu0 0.0
        %1516 = vmatpush1.msra.mxu0 0.0
        %1517 = vmatprep.subr.mxu0 0.0
        %1518 = vmatpush1.msra.mxu0 0.0
        %1519 = vmatprep.subr.mxu0 0.0
        %1520 = vmatpush1.msra.mxu0 0.0
        %1521 = vmatprep.subr.mxu0 0.0
        %1522 = vmatpush1.msra.mxu0 0.0
        %1523 = vmatprep.subr.mxu0 0.0
        %1524 = vmatpush1.msra.mxu0 0.0
        %1525 = vmatprep.subr.mxu0 0.0
        %1526 = vmatpush1.msra.mxu0 0.0
        %1527 = vmatprep.subr.mxu0 0.0
        %1528 = vmatpush1.msra.mxu0 0.0
        %1529 = vmatprep.subr.mxu0 0.0
        %1530 = vmatpush1.msra.mxu0 0.0
        %1531 = vmatprep.subr.mxu0 0.0
        %1532 = vmatpush1.msra.mxu0 0.0
        %1533 = vmatprep.subr.mxu0 0.0
        %1534 = vmatpush1.msra.mxu0 0.0
        %1535 = vmatprep.subr.mxu0 0.0
        %1536 = vmatpush1.msra.mxu0 0.0
        %1537 = vmatprep.subr.mxu0 0.0
        %1538 = vmatpush1.msra.mxu0 0.0
        %1539 = vmatprep.subr.mxu0 0.0
        %1540 = vmatpush1.msra.mxu0 0.0
        %1541 = vmatprep.subr.mxu0 0.0
        %1542 = vmatpush1.msra.mxu0 0.0
        %1543 = vmatprep.subr.mxu0 0.0
        %1544 = vmatpush1.msra.mxu0 0.0
        %1545 = vmatprep.subr.mxu0 0.0
        %1546 = vmatpush1.msra.mxu0 0.0
        %1547 = vmatprep.subr.mxu0 0.0
        %1548 = vmatpush1.msra.mxu0 0.0
        %1549 = vmatprep.subr.mxu0 0.0
        %1550 = vmatpush1.msra.mxu0 0.0
        %1551 = vmatprep.subr.mxu0 0.0
        %1552 = vmatpush1.msra.mxu0 0.0
        %1553 = vmatprep.subr.mxu0 0.0
        %1554 = vmatpush1.msra.mxu0 0.0
        %1555 = vmatprep.subr.mxu0 0.0
        %1556 = vmatpush1.msra.mxu0 0.0
        %1557 = vmatprep.subr.mxu0 0.0
        %1558 = vmatpush1.msra.mxu0 0.0
        %1559 = vmatprep.subr.mxu0 0.0
        %1560 = vmatpush1.msra.mxu0 0.0
        %1561 = vmatprep.subr.mxu0 0.0
        %1562 = vmatpush1.msra.mxu0 0.0
        %1563 = vmatprep.subr.mxu0 0.0
        %1564 = vmatpush1.msra.mxu0 0.0
        %1565 = vmatprep.subr.mxu0 0.0
        %1566 = vmatpush1.msra.mxu0 0.0
        %1567 = vmatprep.subr.mxu0 0.0
        %1568 = vmatpush1.msra.mxu0 0.0
        %1569 = vmatprep.subr.mxu0 0.0
        %1570 = vmatpush1.msra.mxu0 0.0
        %1571 = vmatprep.subr.mxu0 0.0
        %1572 = vmatpush1.msra.mxu0 0.0
        %1573 = vmatprep.subr.mxu0 0.0
        %1574 = vmatpush1.msra.mxu0 0.0
        %1575 = vmatprep.mubr.f32.mxu0 0.0
        %1576 = vmatmul.mubr.f32.gmra.mrb[0].mxu0 %v1506
        %v1577 = vpop.f32.mrb[0].mxu0
        %v1578 = vadd.f32 0.0, %v1577
        %v1579 = vpop.f32.mrb[0].mxu0
        %1580 = vmatprep.mubr.f32.mxu0 0.0
        %1581 = vmatmul.mubr.f32.gmra.mrb[0].mxu0 %v1509
        %v1582 = vpop.f32.mrb[0].mxu0
        %v1583 = vadd.f32 0.0, %v1582
        %v1584 = vpop.f32.mrb[0].mxu0
        %1585 = vdwg.mxu0
        %1586 = vrot.lane.b32.xlu0 %v1117, 48
        %v1587 = vpop.permute.xlu0 %1586
        %1588 = vrot.lane.b32.xlu0 %v1122, 48
        %v1589 = vpop.permute.xlu0 %1588
        %v1593 = vsel %vm1206, %v1495, 0
        %v1596 = vsel %vm1206, %v1496, 0
        %1598 = vmatprep.subr.mxu0 0.0
        %1599 = vmatpush1.msra.mxu0 %v1587
        %1600 = vmatprep.subr.mxu0 0.0
        %1601 = vmatpush1.msra.mxu0 %v1589
        %1602 = vmatprep.subr.mxu0 0.0
        %1603 = vmatpush1.msra.mxu0 0.0
        %1604 = vmatprep.subr.mxu0 0.0
        %1605 = vmatpush1.msra.mxu0 0.0
        %1606 = vmatprep.subr.mxu0 0.0
        %1607 = vmatpush1.msra.mxu0 0.0
        %1608 = vmatprep.subr.mxu0 0.0
        %1609 = vmatpush1.msra.mxu0 0.0
        %1610 = vmatprep.subr.mxu0 0.0
        %1611 = vmatpush1.msra.mxu0 0.0
        %1612 = vmatprep.subr.mxu0 0.0
        %1613 = vmatpush1.msra.mxu0 0.0
        %1614 = vmatprep.subr.mxu0 0.0
        %1615 = vmatpush1.msra.mxu0 0.0
        %1616 = vmatprep.subr.mxu0 0.0
        %1617 = vmatpush1.msra.mxu0 0.0
        %1618 = vmatprep.subr.mxu0 0.0
        %1619 = vmatpush1.msra.mxu0 0.0
        %1620 = vmatprep.subr.mxu0 0.0
        %1621 = vmatpush1.msra.mxu0 0.0
        %1622 = vmatprep.subr.mxu0 0.0
        %1623 = vmatpush1.msra.mxu0 0.0
        %1624 = vmatprep.subr.mxu0 0.0
        %1625 = vmatpush1.msra.mxu0 0.0
        %1626 = vmatprep.subr.mxu0 0.0
        %1627 = vmatpush1.msra.mxu0 0.0
        %1628 = vmatprep.subr.mxu0 0.0
        %1629 = vmatpush1.msra.mxu0 0.0
        %1630 = vmatprep.subr.mxu0 0.0
        %1631 = vmatpush1.msra.mxu0 0.0
        %1632 = vmatprep.subr.mxu0 0.0
        %1633 = vmatpush1.msra.mxu0 0.0
        %1634 = vmatprep.subr.mxu0 0.0
        %1635 = vmatpush1.msra.mxu0 0.0
        %1636 = vmatprep.subr.mxu0 0.0
        %1637 = vmatpush1.msra.mxu0 0.0
        %1638 = vmatprep.subr.mxu0 0.0
        %1639 = vmatpush1.msra.mxu0 0.0
        %1640 = vmatprep.subr.mxu0 0.0
        %1641 = vmatpush1.msra.mxu0 0.0
        %1642 = vmatprep.subr.mxu0 0.0
        %1643 = vmatpush1.msra.mxu0 0.0
        %1644 = vmatprep.subr.mxu0 0.0
        %1645 = vmatpush1.msra.mxu0 0.0
        %1646 = vmatprep.subr.mxu0 0.0
        %1647 = vmatpush1.msra.mxu0 0.0
        %1648 = vmatprep.subr.mxu0 0.0
        %1649 = vmatpush1.msra.mxu0 0.0
        %1650 = vmatprep.subr.mxu0 0.0
        %1651 = vmatpush1.msra.mxu0 0.0
        %1652 = vmatprep.subr.mxu0 0.0
        %1653 = vmatpush1.msra.mxu0 0.0
        %1654 = vmatprep.subr.mxu0 0.0
        %1655 = vmatpush1.msra.mxu0 0.0
        %1656 = vmatprep.subr.mxu0 0.0
        %1657 = vmatpush1.msra.mxu0 0.0
        %1658 = vmatprep.subr.mxu0 0.0
        %1659 = vmatpush1.msra.mxu0 0.0
        %1660 = vmatprep.subr.mxu0 0.0
        %1661 = vmatpush1.msra.mxu0 0.0
        %1662 = vmatprep.mubr.f32.mxu0 0.0
        %1663 = vmatmul.mubr.f32.gmra.mrb[0].mxu0 %v1593
        %v1664 = vpop.f32.mrb[0].mxu0
        %v1665 = vadd.f32 0.0, %v1664
        %v1666 = vpop.f32.mrb[0].mxu0
        %1667 = vmatprep.mubr.f32.mxu0 0.0
        %1668 = vmatmul.mubr.f32.gmra.mrb[0].mxu0 %v1596
        %v1669 = vpop.f32.mrb[0].mxu0
        %v1670 = vadd.f32 0.0, %v1669
        %v1671 = vpop.f32.mrb[0].mxu0
        %1672 = vdwg.mxu0
        %1675 = vrot.lane.b32.xlu0 %v1665, 16
        %v1676 = vpop.permute.xlu0 %1675
        %1677 = vrot.lane.b32.xlu0 %v1670, 16
        %v1678 = vpop.permute.xlu0 %1677
        %v1681 = vsel %vm1206, %v1578, %v1676
        %v1682 = vsel %vm1206, %v1583, %v1678
        %v1684 = vlaneseq
        %v1685 = vshrl.u32 %v1684, 7
        %v1686 = vsub.s32 0, %v1685
        %v1687 = vrot.slane %v1266, %v1686
        %v1690 = vsel %vm1004, %v1681, 0
        %v1693 = vsel %vm1004, %v1682, 0
        %1695 = vmatprep.subr.mxu0 0.0
        %1696 = vmatpush1.msra.mxu0 %v1262
        %1697 = vmatprep.subr.mxu0 0.0
        %1698 = vmatpush1.msra.mxu0 %v1263
        %1699 = vmatprep.subr.mxu0 0.0
        %1700 = vmatpush1.msra.mxu0 %v1264
        %1701 = vmatprep.subr.mxu0 0.0
        %1702 = vmatpush1.msra.mxu0 %v1265
        %1703 = vmatprep.subr.mxu0 0.0
        %1704 = vmatpush1.msra.mxu0 0.0
        %1705 = vmatprep.subr.mxu0 0.0
        %1706 = vmatpush1.msra.mxu0 0.0
        %1707 = vmatprep.subr.mxu0 0.0
        %1708 = vmatpush1.msra.mxu0 0.0
        %1709 = vmatprep.subr.mxu0 0.0
        %1710 = vmatpush1.msra.mxu0 0.0
        %1711 = vmatprep.subr.mxu0 0.0
        %1712 = vmatpush1.msra.mxu0 0.0
        %1713 = vmatprep.subr.mxu0 0.0
        %1714 = vmatpush1.msra.mxu0 0.0
        %1715 = vmatprep.subr.mxu0 0.0
        %1716 = vmatpush1.msra.mxu0 0.0
        %1717 = vmatprep.subr.mxu0 0.0
        %1718 = vmatpush1.msra.mxu0 0.0
        %1719 = vmatprep.subr.mxu0 0.0
        %1720 = vmatpush1.msra.mxu0 0.0
        %1721 = vmatprep.subr.mxu0 0.0
        %1722 = vmatpush1.msra.mxu0 0.0
        %1723 = vmatprep.subr.mxu0 0.0
        %1724 = vmatpush1.msra.mxu0 0.0
        %1725 = vmatprep.subr.mxu0 0.0
        %1726 = vmatpush1.msra.mxu0 0.0
        %1727 = vmatprep.subr.mxu0 0.0
        %1728 = vmatpush1.msra.mxu0 0.0
        %1729 = vmatprep.subr.mxu0 0.0
        %1730 = vmatpush1.msra.mxu0 0.0
        %1731 = vmatprep.subr.mxu0 0.0
        %1732 = vmatpush1.msra.mxu0 0.0
        %1733 = vmatprep.subr.mxu0 0.0
        %1734 = vmatpush1.msra.mxu0 0.0
        %1735 = vmatprep.subr.mxu0 0.0
        %1736 = vmatpush1.msra.mxu0 0.0
        %1737 = vmatprep.subr.mxu0 0.0
        %1738 = vmatpush1.msra.mxu0 0.0
        %1739 = vmatprep.subr.mxu0 0.0
        %1740 = vmatpush1.msra.mxu0 0.0
        %1741 = vmatprep.subr.mxu0 0.0
        %1742 = vmatpush1.msra.mxu0 0.0
        %1743 = vmatprep.subr.mxu0 0.0
        %1744 = vmatpush1.msra.mxu0 0.0
        %1745 = vmatprep.subr.mxu0 0.0
        %1746 = vmatpush1.msra.mxu0 0.0
        %1747 = vmatprep.subr.mxu0 0.0
        %1748 = vmatpush1.msra.mxu0 0.0
        %1749 = vmatprep.subr.mxu0 0.0
        %1750 = vmatpush1.msra.mxu0 0.0
        %1751 = vmatprep.subr.mxu0 0.0
        %1752 = vmatpush1.msra.mxu0 0.0
        %1753 = vmatprep.subr.mxu0 0.0
        %1754 = vmatpush1.msra.mxu0 0.0
        %1755 = vmatprep.subr.mxu0 0.0
        %1756 = vmatpush1.msra.mxu0 0.0
        %1757 = vmatprep.subr.mxu0 0.0
        %1758 = vmatpush1.msra.mxu0 0.0
        %1759 = vmatprep.mubr.f32.mxu0 0.0
        %1760 = vmatmul.mubr.f32.gmra.mrb[0].mxu0 %v1690
        %v1761 = vpop.f32.mrb[0].mxu0
        %v1762 = vadd.f32 %v1687, %v1761
        %v1763 = vpop.f32.mrb[0].mxu0
        %1764 = vmatprep.mubr.f32.mxu0 0.0
        %1765 = vmatmul.mubr.f32.gmra.mrb[0].mxu0 %v1693
        %v1766 = vpop.f32.mrb[0].mxu0
        %v1767 = vadd.f32 %v1687, %v1766
        %v1768 = vpop.f32.mrb[0].mxu0
        %1769 = vdwg.mxu0
        %v1770 = vlaneseq
        %v1771 = vshrl.u32 %v1770, 7
        %v1772 = vsub.s32 2, %v1771
        %v1773 = vrot.slane %v996, %v1772
        %v1774 = vmul.f32 %v1762, %v1773
        %v1775 = vmul.f32 %v1767, %v1773
        %v1776 = vadd.f32 %v993, %v1774
        %v1777 = vadd.f32 %v994, %v1775
        %v1778 = vld [vmem:[%s12] sm:$0xff]
        %v1779 = vld [vmem:[%s12 + $0x8] sm:$0xff]
        %v1780 = vld [vmem:[%s12 + $0x10] sm:$0xff]
        %v1781 = vld [vmem:[%s12 + $0x18] sm:$0xff]
        %v1782 = vld [vmem:[#allocation13] sm:$0x1]
        %v1784 = vlaneseq
        %v1785 = vshrl.u32 %v1784, 7
        %v1786 = vsub.s32 0, %v1785
        %v1787 = vrot.slane %v1782, %v1786
        %v1790 = vsel %vm1004, %v1776, 0
        %v1793 = vsel %vm1004, %v1777, 0
        %1795 = vmatprep.subr.mxu0 0.0
        %1796 = vmatpush1.msra.mxu0 %v1778
        %1797 = vmatprep.subr.mxu0 0.0
        %1798 = vmatpush1.msra.mxu0 %v1779
        %1799 = vmatprep.subr.mxu0 0.0
        %1800 = vmatpush1.msra.mxu0 %v1780
        %1801 = vmatprep.subr.mxu0 0.0
        %1802 = vmatpush1.msra.mxu0 %v1781
        %1803 = vmatprep.subr.mxu0 0.0
        %1804 = vmatpush1.msra.mxu0 0.0
        %1805 = vmatprep.subr.mxu0 0.0
        %1806 = vmatpush1.msra.mxu0 0.0
        %1807 = vmatprep.subr.mxu0 0.0
        %1808 = vmatpush1.msra.mxu0 0.0
        %1809 = vmatprep.subr.mxu0 0.0
        %1810 = vmatpush1.msra.mxu0 0.0
        %1811 = vmatprep.subr.mxu0 0.0
        %1812 = vmatpush1.msra.mxu0 0.0
        %1813 = vmatprep.subr.mxu0 0.0
        %1814 = vmatpush1.msra.mxu0 0.0
        %1815 = vmatprep.subr.mxu0 0.0
        %1816 = vmatpush1.msra.mxu0 0.0
        %1817 = vmatprep.subr.mxu0 0.0
        %1818 = vmatpush1.msra.mxu0 0.0
        %1819 = vmatprep.subr.mxu0 0.0
        %1820 = vmatpush1.msra.mxu0 0.0
        %1821 = vmatprep.subr.mxu0 0.0
        %1822 = vmatpush1.msra.mxu0 0.0
        %1823 = vmatprep.subr.mxu0 0.0
        %1824 = vmatpush1.msra.mxu0 0.0
        %1825 = vmatprep.subr.mxu0 0.0
        %1826 = vmatpush1.msra.mxu0 0.0
        %1827 = vmatprep.subr.mxu0 0.0
        %1828 = vmatpush1.msra.mxu0 0.0
        %1829 = vmatprep.subr.mxu0 0.0
        %1830 = vmatpush1.msra.mxu0 0.0
        %1831 = vmatprep.subr.mxu0 0.0
        %1832 = vmatpush1.msra.mxu0 0.0
        %1833 = vmatprep.subr.mxu0 0.0
        %1834 = vmatpush1.msra.mxu0 0.0
        %1835 = vmatprep.subr.mxu0 0.0
        %1836 = vmatpush1.msra.mxu0 0.0
        %1837 = vmatprep.subr.mxu0 0.0
        %1838 = vmatpush1.msra.mxu0 0.0
        %1839 = vmatprep.subr.mxu0 0.0
        %1840 = vmatpush1.msra.mxu0 0.0
        %1841 = vmatprep.subr.mxu0 0.0
        %1842 = vmatpush1.msra.mxu0 0.0
        %1843 = vmatprep.subr.mxu0 0.0
        %1844 = vmatpush1.msra.mxu0 0.0
        %1845 = vmatprep.subr.mxu0 0.0
        %1846 = vmatpush1.msra.mxu0 0.0
        %1847 = vmatprep.subr.mxu0 0.0
        %1848 = vmatpush1.msra.mxu0 0.0
        %1849 = vmatprep.subr.mxu0 0.0
        %1850 = vmatpush1.msra.mxu0 0.0
        %1851 = vmatprep.subr.mxu0 0.0
        %1852 = vmatpush1.msra.mxu0 0.0
        %1853 = vmatprep.subr.mxu0 0.0
        %1854 = vmatpush1.msra.mxu0 0.0
        %1855 = vmatprep.subr.mxu0 0.0
        %1856 = vmatpush1.msra.mxu0 0.0
        %1857 = vmatprep.subr.mxu0 0.0
        %1858 = vmatpush1.msra.mxu0 0.0
        %1859 = vmatprep.mubr.f32.mxu0 0.0
        %1860 = vmatmul.mubr.f32.gmra.mrb[0].mxu0 %v1790
        %v1861 = vpop.f32.mrb[0].mxu0
        %v1862 = vadd.f32 %v1787, %v1861
        %v1863 = vpop.f32.mrb[0].mxu0
        %1864 = vmatprep.mubr.f32.mxu0 0.0
        %1865 = vmatmul.mubr.f32.gmra.mrb[0].mxu0 %v1793
        %v1866 = vpop.f32.mrb[0].mxu0
        %v1867 = vadd.f32 %v1787, %v1866
        %v1868 = vpop.f32.mrb[0].mxu0
        %1869 = vdwg.mxu0
        %v1870 = vld [vmem:[#allocation14] sm:$0xff]
        %v1871 = vld [vmem:[#allocation14 + $0x8] sm:$0xff]
        %v1872 = vld [vmem:[#allocation14 + $0x10] sm:$0xff]
        %v1873 = vld [vmem:[#allocation14 + $0x18] sm:$0xff]
        %v1874 = vld [vmem:[#allocation16] sm:$0x1]
        %v1876 = vlaneseq
        %v1877 = vshrl.u32 %v1876, 7
        %v1878 = vsub.s32 0, %v1877
        %v1879 = vrot.slane %v1874, %v1878
        %v1882 = vsel %vm1004, %v995, 0
        %1884 = vmatprep.subr.mxu0 0.0
        %1885 = vmatpush1.msra.mxu0 %v1870
        %1886 = vmatprep.subr.mxu0 0.0
        %1887 = vmatpush1.msra.mxu0 %v1871
        %1888 = vmatprep.subr.mxu0 0.0
        %1889 = vmatpush1.msra.mxu0 %v1872
        %1890 = vmatprep.subr.mxu0 0.0
        %1891 = vmatpush1.msra.mxu0 %v1873
        %1892 = vmatprep.subr.mxu0 0.0
        %1893 = vmatpush1.msra.mxu0 0.0
        %1894 = vmatprep.subr.mxu0 0.0
        %1895 = vmatpush1.msra.mxu0 0.0
        %1896 = vmatprep.subr.mxu0 0.0
        %1897 = vmatpush1.msra.mxu0 0.0
        %1898 = vmatprep.subr.mxu0 0.0
        %1899 = vmatpush1.msra.mxu0 0.0
        %1900 = vmatprep.subr.mxu0 0.0
        %1901 = vmatpush1.msra.mxu0 0.0
        %1902 = vmatprep.subr.mxu0 0.0
        %1903 = vmatpush1.msra.mxu0 0.0
        %1904 = vmatprep.subr.mxu0 0.0
        %1905 = vmatpush1.msra.mxu0 0.0
        %1906 = vmatprep.subr.mxu0 0.0
        %1907 = vmatpush1.msra.mxu0 0.0
        %1908 = vmatprep.subr.mxu0 0.0
        %1909 = vmatpush1.msra.mxu0 0.0
        %1910 = vmatprep.subr.mxu0 0.0
        %1911 = vmatpush1.msra.mxu0 0.0
        %1912 = vmatprep.subr.mxu0 0.0
        %1913 = vmatpush1.msra.mxu0 0.0
        %1914 = vmatprep.subr.mxu0 0.0
        %1915 = vmatpush1.msra.mxu0 0.0
        %1916 = vmatprep.subr.mxu0 0.0
        %1917 = vmatpush1.msra.mxu0 0.0
        %1918 = vmatprep.subr.mxu0 0.0
        %1919 = vmatpush1.msra.mxu0 0.0
        %1920 = vmatprep.subr.mxu0 0.0
        %1921 = vmatpush1.msra.mxu0 0.0
        %1922 = vmatprep.subr.mxu0 0.0
        %1923 = vmatpush1.msra.mxu0 0.0
        %1924 = vmatprep.subr.mxu0 0.0
        %1925 = vmatpush1.msra.mxu0 0.0
        %1926 = vmatprep.subr.mxu0 0.0
        %1927 = vmatpush1.msra.mxu0 0.0
        %1928 = vmatprep.subr.mxu0 0.0
        %1929 = vmatpush1.msra.mxu0 0.0
        %1930 = vmatprep.subr.mxu0 0.0
        %1931 = vmatpush1.msra.mxu0 0.0
        %1932 = vmatprep.subr.mxu0 0.0
        %1933 = vmatpush1.msra.mxu0 0.0
        %1934 = vmatprep.subr.mxu0 0.0
        %1935 = vmatpush1.msra.mxu0 0.0
        %1936 = vmatprep.subr.mxu0 0.0
        %1937 = vmatpush1.msra.mxu0 0.0
        %1938 = vmatprep.subr.mxu0 0.0
        %1939 = vmatpush1.msra.mxu0 0.0
        %1940 = vmatprep.subr.mxu0 0.0
        %1941 = vmatpush1.msra.mxu0 0.0
        %1942 = vmatprep.subr.mxu0 0.0
        %1943 = vmatpush1.msra.mxu0 0.0
        %1944 = vmatprep.subr.mxu0 0.0
        %1945 = vmatpush1.msra.mxu0 0.0
        %1946 = vmatprep.subr.mxu0 0.0
        %1947 = vmatpush1.msra.mxu0 0.0
        %1948 = vmatprep.mubr.f32.mxu0 0.0
        %1949 = vmatmul.mubr.f32.gmra.mrb[0].mxu0 %v1882
        %v1950 = vpop.f32.mrb[0].mxu0
        %v1951 = vadd.f32 %v1879, %v1950
        %v1952 = vpop.f32.mrb[0].mxu0
        %1953 = vdwg.mxu0
        %v1954 = vld [vmem:[#allocation17] sm:$0x1]
        %v1955 = vmul.f32 %v1862, %v1862
        %v1956 = vmul.f32 %v1867, %v1867
        %v1957 = vsel %vm1004, %v1955, 0.0
        %1958 = vadd.xlane.f32.xlu0 %v1957
        %v1959 = vpop.xlane.xlu0 %1958
        %v1960 = vsel %vm1004, %v1956, 0.0
        %1961 = vadd.xlane.f32.xlu0 %v1960
        %v1962 = vpop.xlane.xlu0 %1961
        %v1963 = vmul.f32 %v1959, %v1011
        %v1964 = vmul.f32 %v1962, %v1011
        %v1965 = vadd.f32 %v1963, 1e-05
        %v1966 = vadd.f32 %v1964, 1e-05
        %v1967 = vrsqrt.pop %v1965
        %v1968 = vrsqrt.pop %v1966
        %v1969 = vmul.f32 %v1862, %v1967
        %v1970 = vmul.f32 %v1867, %v1968
        %v1972 = vlaneseq
        %v1973 = vshrl.u32 %v1972, 7
        %v1974 = vsub.s32 0, %v1973
        %v1975 = vrot.slane %v1954, %v1974
        %v1977 = vmul.f32 %v1969, %v1975
        %v1978 = vmul.f32 %v1970, %v1975
        %v1979 = vld [vmem:[#allocation19] sm:$0x1]
        %v1980 = vmul.f32 %v1951, %v1951
        %v1981 = vsel %vm1004, %v1980, 0.0
        %1982 = vadd.xlane.f32.xlu0 %v1981
        %v1983 = vpop.xlane.xlu0 %1982
        %v1984 = vmul.f32 %v1983, %v1011
        %v1985 = vadd.f32 %v1984, 1e-05
        %v1986 = vrsqrt.pop %v1985
        %v1987 = vmul.f32 %v1951, %v1986
        %v1989 = vlaneseq
        %v1990 = vshrl.u32 %v1989, 7
        %v1991 = vsub.s32 0, %v1990
        %v1992 = vrot.slane %v1979, %v1991
        %v1994 = vmul.f32 %v1987, %v1992
        %v1995 = vld [vmem:[%s18] sm:$0xff]
        %v1996 = vld [vmem:[%s18 + $0x8] sm:$0xff]
        %v1997 = vld [vmem:[%s18 + $0x10] sm:$0xff]
        %v1998 = vld [vmem:[%s18 + $0x18] sm:$0xff]
        %v1999 = vld [vmem:[%s19] sm:$0x1]
        %v2001 = vsel %vm1206, %v1977, 0
        %v2004 = vsel %vm1206, %v1978, 0
        %v2007 = vsel %vm1206, %v1994, 0
        %2009 = vmatprep.subr.mxu0 0.0
        %2010 = vmatpush1.xpose.msra.mxu0 %v2007
        %2011 = vmatprep.subr.mxu0 0.0
        %2012 = vmatpush1.xpose.msra.mxu0 0.0
        %2013 = vmatprep.subr.mxu0 0.0
        %2014 = vmatpush1.xpose.msra.mxu0 0.0
        %2015 = vmatprep.subr.mxu0 0.0
        %2016 = vmatpush1.xpose.msra.mxu0 0.0
        %2017 = vmatprep.subr.mxu0 0.0
        %2018 = vmatpush1.xpose.msra.mxu0 0.0
        %2019 = vmatprep.subr.mxu0 0.0
        %2020 = vmatpush1.xpose.msra.mxu0 0.0
        %2021 = vmatprep.subr.mxu0 0.0
        %2022 = vmatpush1.xpose.msra.mxu0 0.0
        %2023 = vmatprep.subr.mxu0 0.0
        %2024 = vmatpush1.xpose.msra.mxu0 0.0
        %2025 = vmatprep.subr.mxu0 0.0
        %2026 = vmatpush1.xpose.msra.mxu0 0.0
        %2027 = vmatprep.subr.mxu0 0.0
        %2028 = vmatpush1.xpose.msra.mxu0 0.0
        %2029 = vmatprep.subr.mxu0 0.0
        %2030 = vmatpush1.xpose.msra.mxu0 0.0
        %2031 = vmatprep.subr.mxu0 0.0
        %2032 = vmatpush1.xpose.msra.mxu0 0.0
        %2033 = vmatprep.subr.mxu0 0.0
        %2034 = vmatpush1.xpose.msra.mxu0 0.0
        %2035 = vmatprep.subr.mxu0 0.0
        %2036 = vmatpush1.xpose.msra.mxu0 0.0
        %2037 = vmatprep.subr.mxu0 0.0
        %2038 = vmatpush1.xpose.msra.mxu0 0.0
        %2039 = vmatprep.subr.mxu0 0.0
        %2040 = vmatpush1.xpose.msra.mxu0 0.0
        %2041 = vmatprep.subr.mxu0 0.0
        %2042 = vmatpush1.xpose.msra.mxu0 0.0
        %2043 = vmatprep.subr.mxu0 0.0
        %2044 = vmatpush1.xpose.msra.mxu0 0.0
        %2045 = vmatprep.subr.mxu0 0.0
        %2046 = vmatpush1.xpose.msra.mxu0 0.0
        %2047 = vmatprep.subr.mxu0 0.0
        %2048 = vmatpush1.xpose.msra.mxu0 0.0
        %2049 = vmatprep.subr.mxu0 0.0
        %2050 = vmatpush1.xpose.msra.mxu0 0.0
        %2051 = vmatprep.subr.mxu0 0.0
        %2052 = vmatpush1.xpose.msra.mxu0 0.0
        %2053 = vmatprep.subr.mxu0 0.0
        %2054 = vmatpush1.xpose.msra.mxu0 0.0
        %2055 = vmatprep.subr.mxu0 0.0
        %2056 = vmatpush1.xpose.msra.mxu0 0.0
        %2057 = vmatprep.subr.mxu0 0.0
        %2058 = vmatpush1.xpose.msra.mxu0 0.0
        %2059 = vmatprep.subr.mxu0 0.0
        %2060 = vmatpush1.xpose.msra.mxu0 0.0
        %2061 = vmatprep.subr.mxu0 0.0
        %2062 = vmatpush1.xpose.msra.mxu0 0.0
        %2063 = vmatprep.subr.mxu0 0.0
        %2064 = vmatpush1.xpose.msra.mxu0 0.0
        %2065 = vmatprep.subr.mxu0 0.0
        %2066 = vmatpush1.xpose.msra.mxu0 0.0
        %2067 = vmatprep.subr.mxu0 0.0
        %2068 = vmatpush1.xpose.msra.mxu0 0.0
        %2069 = vmatprep.subr.mxu0 0.0
        %2070 = vmatpush1.xpose.msra.mxu0 0.0
        %2071 = vmatprep.subr.mxu0 0.0
        %2072 = vmatpush1.xpose.msra.mxu0 0.0
        %2073 = vmatprep.mubr.f32.mxu0 0.0
        %2074 = vmatmul.mubr.f32.gmra.mrb[0].mxu0 %v2001
        %v2075 = vpop.f32.mrb[0].mxu0
        %v2076 = vadd.f32 0.0, %v2075
        %v2077 = vpop.f32.mrb[0].mxu0
        %2078 = vmatprep.mubr.f32.mxu0 0.0
        %2079 = vmatmul.mubr.f32.gmra.mrb[0].mxu0 %v2004
        %v2080 = vpop.f32.mrb[0].mxu0
        %v2081 = vadd.f32 0.0, %v2080
        %v2082 = vpop.f32.mrb[0].mxu0
        %2083 = vdwg.mxu0
        %2084 = vrot.lane.b32.xlu0 %v1977, 112
        %v2085 = vpop.permute.xlu0 %2084
        %2086 = vrot.lane.b32.xlu0 %v1978, 112
        %v2087 = vpop.permute.xlu0 %2086
        %2088 = vrot.lane.b32.xlu0 %v1994, 112
        %v2089 = vpop.permute.xlu0 %2088
        %v2090 = vsel %vm1206, %v2085, 0
        %v2092 = vsel %vm1206, %v2087, 0
        %v2094 = vsel %vm1206, %v2089, 0
        %2096 = vmatprep.subr.mxu0 0.0
        %2097 = vmatpush1.xpose.msra.mxu0 %v2094
        %2098 = vmatprep.subr.mxu0 0.0
        %2099 = vmatpush1.xpose.msra.mxu0 0.0
        %2100 = vmatprep.subr.mxu0 0.0
        %2101 = vmatpush1.xpose.msra.mxu0 0.0
        %2102 = vmatprep.subr.mxu0 0.0
        %2103 = vmatpush1.xpose.msra.mxu0 0.0
        %2104 = vmatprep.subr.mxu0 0.0
        %2105 = vmatpush1.xpose.msra.mxu0 0.0
        %2106 = vmatprep.subr.mxu0 0.0
        %2107 = vmatpush1.xpose.msra.mxu0 0.0
        %2108 = vmatprep.subr.mxu0 0.0
        %2109 = vmatpush1.xpose.msra.mxu0 0.0
        %2110 = vmatprep.subr.mxu0 0.0
        %2111 = vmatpush1.xpose.msra.mxu0 0.0
        %2112 = vmatprep.subr.mxu0 0.0
        %2113 = vmatpush1.xpose.msra.mxu0 0.0
        %2114 = vmatprep.subr.mxu0 0.0
        %2115 = vmatpush1.xpose.msra.mxu0 0.0
        %2116 = vmatprep.subr.mxu0 0.0
        %2117 = vmatpush1.xpose.msra.mxu0 0.0
        %2118 = vmatprep.subr.mxu0 0.0
        %2119 = vmatpush1.xpose.msra.mxu0 0.0
        %2120 = vmatprep.subr.mxu0 0.0
        %2121 = vmatpush1.xpose.msra.mxu0 0.0
        %2122 = vmatprep.subr.mxu0 0.0
        %2123 = vmatpush1.xpose.msra.mxu0 0.0
        %2124 = vmatprep.subr.mxu0 0.0
        %2125 = vmatpush1.xpose.msra.mxu0 0.0
        %2126 = vmatprep.subr.mxu0 0.0
        %2127 = vmatpush1.xpose.msra.mxu0 0.0
        %2128 = vmatprep.subr.mxu0 0.0
        %2129 = vmatpush1.xpose.msra.mxu0 0.0
        %2130 = vmatprep.subr.mxu0 0.0
        %2131 = vmatpush1.xpose.msra.mxu0 0.0
        %2132 = vmatprep.subr.mxu0 0.0
        %2133 = vmatpush1.xpose.msra.mxu0 0.0
        %2134 = vmatprep.subr.mxu0 0.0
        %2135 = vmatpush1.xpose.msra.mxu0 0.0
        %2136 = vmatprep.subr.mxu0 0.0
        %2137 = vmatpush1.xpose.msra.mxu0 0.0
        %2138 = vmatprep.subr.mxu0 0.0
        %2139 = vmatpush1.xpose.msra.mxu0 0.0
        %2140 = vmatprep.subr.mxu0 0.0
        %2141 = vmatpush1.xpose.msra.mxu0 0.0
        %2142 = vmatprep.subr.mxu0 0.0
        %2143 = vmatpush1.xpose.msra.mxu0 0.0
        %2144 = vmatprep.subr.mxu0 0.0
        %2145 = vmatpush1.xpose.msra.mxu0 0.0
        %2146 = vmatprep.subr.mxu0 0.0
        %2147 = vmatpush1.xpose.msra.mxu0 0.0
        %2148 = vmatprep.subr.mxu0 0.0
        %2149 = vmatpush1.xpose.msra.mxu0 0.0
        %2150 = vmatprep.subr.mxu0 0.0
        %2151 = vmatpush1.xpose.msra.mxu0 0.0
        %2152 = vmatprep.subr.mxu0 0.0
        %2153 = vmatpush1.xpose.msra.mxu0 0.0
        %2154 = vmatprep.subr.mxu0 0.0
        %2155 = vmatpush1.xpose.msra.mxu0 0.0
        %2156 = vmatprep.subr.mxu0 0.0
        %2157 = vmatpush1.xpose.msra.mxu0 0.0
        %2158 = vmatprep.subr.mxu0 0.0
        %2159 = vmatpush1.xpose.msra.mxu0 0.0
        %2160 = vmatprep.mubr.f32.mxu0 0.0
        %2161 = vmatmul.mubr.f32.gmra.mrb[0].mxu0 %v2090
        %v2162 = vpop.f32.mrb[0].mxu0
        %v2163 = vadd.f32 0.0, %v2162
        %v2164 = vpop.f32.mrb[0].mxu0
        %2165 = vmatprep.mubr.f32.mxu0 0.0
        %2166 = vmatmul.mubr.f32.gmra.mrb[0].mxu0 %v2092
        %v2167 = vpop.f32.mrb[0].mxu0
        %v2168 = vadd.f32 0.0, %v2167
        %v2169 = vpop.f32.mrb[0].mxu0
        %2170 = vdwg.mxu0
        %v2171 = vmul.f32 %v2076, 0.25
        %v2172 = vmul.f32 %v2081, 0.25
        %v2173 = vmul.f32 %v2163, 0.25
        %v2174 = vmul.f32 %v2168, 0.25
        %v2176 = vlaneseq
        %v2177 = vshrl.u32 %v2176, 7
        %v2178 = vsub.s32 0, %v2177
        %v2179 = vrot.slane %v1001, %v2178
        %v2181 = vadd.f32 %v2171, %v2179
        %v2182 = vadd.f32 %v2172, %v2179
        %v2183 = vadd.f32 %v2173, %v2179
        %v2184 = vadd.f32 %v2174, %v2179
        %v2185 = vsel %vm1203, %v2181, -inf
        %2186 = vmax.xlane.f32.xlu0 %v2185
        %v2187 = vpop.xlane.xlu0 %2186
        %v2188 = vsel %vm1203, %v2182, -inf
        %2189 = vmax.xlane.f32.xlu0 %v2188
        %v2190 = vpop.xlane.xlu0 %2189
        %v2191 = vsel %vm1203, %v2183, -inf
        %2192 = vmax.xlane.f32.xlu0 %v2191
        %v2193 = vpop.xlane.xlu0 %2192
        %v2194 = vsel %vm1203, %v2184, -inf
        %2195 = vmax.xlane.f32.xlu0 %v2194
        %v2196 = vpop.xlane.xlu0 %2195
        %v2197 = vsub.f32 %v2181, %v2187
        %v2198 = vsub.f32 %v2182, %v2190
        %v2199 = vsub.f32 %v2183, %v2193
        %v2200 = vsub.f32 %v2184, %v2196
        %v2201 = vmul.f32 %v2197, 1.442695
        %v2202 = vpow.pop %v2201
        %v2203 = vmul.f32 %v2198, 1.442695
        %v2204 = vpow.pop %v2203
        %v2205 = vmul.f32 %v2199, 1.442695
        %v2206 = vpow.pop %v2205
        %v2207 = vmul.f32 %v2200, 1.442695
        %v2208 = vpow.pop %v2207
        %v2209 = vsel %vm1203, %v2202, 0.0
        %2210 = vadd.xlane.f32.xlu0 %v2209
        %v2211 = vpop.xlane.xlu0 %2210
        %v2212 = vsel %vm1203, %v2204, 0.0
        %2213 = vadd.xlane.f32.xlu0 %v2212
        %v2214 = vpop.xlane.xlu0 %2213
        %v2215 = vsel %vm1203, %v2206, 0.0
        %2216 = vadd.xlane.f32.xlu0 %v2215
        %v2217 = vpop.xlane.xlu0 %2216
        %v2218 = vsel %vm1203, %v2208, 0.0
        %2219 = vadd.xlane.f32.xlu0 %v2218
        %v2220 = vpop.xlane.xlu0 %2219
        %v2221 = vrcp.pop %v2211
        %v2222 = vrcp.pop %v2214
        %v2223 = vrcp.pop %v2217
        %v2224 = vrcp.pop %v2220
        %v2225 = vmul.f32 %v2202, %v2221
        %v2226 = vmul.f32 %v2204, %v2222
        %v2227 = vmul.f32 %v2206, %v2223
        %v2228 = vmul.f32 %v2208, %v2224
        %2230 = vrot.lane.b32.xlu0 %v1951, 96
        %v2231 = vpop.permute.xlu0 %2230
        %v2234 = vsel %vm1203, %v2225, 0
        %v2237 = vsel %vm1203, %v2226, 0
        %2239 = vmatprep.subr.mxu0 0.0
        %2240 = vmatpush1.msra.mxu0 %v2231
        %2241 = vmatprep.subr.mxu0 0.0
        %2242 = vmatpush1.msra.mxu0 0.0
        %2243 = vmatprep.subr.mxu0 0.0
        %2244 = vmatpush1.msra.mxu0 0.0
        %2245 = vmatprep.subr.mxu0 0.0
        %2246 = vmatpush1.msra.mxu0 0.0
        %2247 = vmatprep.subr.mxu0 0.0
        %2248 = vmatpush1.msra.mxu0 0.0
        %2249 = vmatprep.subr.mxu0 0.0
        %2250 = vmatpush1.msra.mxu0 0.0
        %2251 = vmatprep.subr.mxu0 0.0
        %2252 = vmatpush1.msra.mxu0 0.0
        %2253 = vmatprep.subr.mxu0 0.0
        %2254 = vmatpush1.msra.mxu0 0.0
        %2255 = vmatprep.subr.mxu0 0.0
        %2256 = vmatpush1.msra.mxu0 0.0
        %2257 = vmatprep.subr.mxu0 0.0
        %2258 = vmatpush1.msra.mxu0 0.0
        %2259 = vmatprep.subr.mxu0 0.0
        %2260 = vmatpush1.msra.mxu0 0.0
        %2261 = vmatprep.subr.mxu0 0.0
        %2262 = vmatpush1.msra.mxu0 0.0
        %2263 = vmatprep.subr.mxu0 0.0
        %2264 = vmatpush1.msra.mxu0 0.0
        %2265 = vmatprep.subr.mxu0 0.0
        %2266 = vmatpush1.msra.mxu0 0.0
        %2267 = vmatprep.subr.mxu0 0.0
        %2268 = vmatpush1.msra.mxu0 0.0
        %2269 = vmatprep.subr.mxu0 0.0
        %2270 = vmatpush1.msra.mxu0 0.0
        %2271 = vmatprep.subr.mxu0 0.0
        %2272 = vmatpush1.msra.mxu0 0.0
        %2273 = vmatprep.subr.mxu0 0.0
        %2274 = vmatpush1.msra.mxu0 0.0
        %2275 = vmatprep.subr.mxu0 0.0
        %2276 = vmatpush1.msra.mxu0 0.0
        %2277 = vmatprep.subr.mxu0 0.0
        %2278 = vmatpush1.msra.mxu0 0.0
        %2279 = vmatprep.subr.mxu0 0.0
        %2280 = vmatpush1.msra.mxu0 0.0
        %2281 = vmatprep.subr.mxu0 0.0
        %2282 = vmatpush1.msra.mxu0 0.0
        %2283 = vmatprep.subr.mxu0 0.0
        %2284 = vmatpush1.msra.mxu0 0.0
        %2285 = vmatprep.subr.mxu0 0.0
        %2286 = vmatpush1.msra.mxu0 0.0
        %2287 = vmatprep.subr.mxu0 0.0
        %2288 = vmatpush1.msra.mxu0 0.0
        %2289 = vmatprep.subr.mxu0 0.0
        %2290 = vmatpush1.msra.mxu0 0.0
        %2291 = vmatprep.subr.mxu0 0.0
        %2292 = vmatpush1.msra.mxu0 0.0
        %2293 = vmatprep.subr.mxu0 0.0
        %2294 = vmatpush1.msra.mxu0 0.0
        %2295 = vmatprep.subr.mxu0 0.0
        %2296 = vmatpush1.msra.mxu0 0.0
        %2297 = vmatprep.subr.mxu0 0.0
        %2298 = vmatpush1.msra.mxu0 0.0
        %2299 = vmatprep.subr.mxu0 0.0
        %2300 = vmatpush1.msra.mxu0 0.0
        %2301 = vmatprep.subr.mxu0 0.0
        %2302 = vmatpush1.msra.mxu0 0.0
        %2303 = vmatprep.mubr.f32.mxu0 0.0
        %2304 = vmatmul.mubr.f32.gmra.mrb[0].mxu0 %v2234
        %v2305 = vpop.f32.mrb[0].mxu0
        %v2306 = vadd.f32 0.0, %v2305
        %v2307 = vpop.f32.mrb[0].mxu0
        %2308 = vmatprep.mubr.f32.mxu0 0.0
        %2309 = vmatmul.mubr.f32.gmra.mrb[0].mxu0 %v2237
        %v2310 = vpop.f32.mrb[0].mxu0
        %v2311 = vadd.f32 0.0, %v2310
        %v2312 = vpop.f32.mrb[0].mxu0
        %2313 = vdwg.mxu0
        %2314 = vrot.lane.b32.xlu0 %v1951, 80
        %v2315 = vpop.permute.xlu0 %2314
        %v2318 = vsel %vm1203, %v2227, 0
        %v2321 = vsel %vm1203, %v2228, 0
        %2323 = vmatprep.subr.mxu0 0.0
        %2324 = vmatpush1.msra.mxu0 %v2315
        %2325 = vmatprep.subr.mxu0 0.0
        %2326 = vmatpush1.msra.mxu0 0.0
        %2327 = vmatprep.subr.mxu0 0.0
        %2328 = vmatpush1.msra.mxu0 0.0
        %2329 = vmatprep.subr.mxu0 0.0
        %2330 = vmatpush1.msra.mxu0 0.0
        %2331 = vmatprep.subr.mxu0 0.0
        %2332 = vmatpush1.msra.mxu0 0.0
        %2333 = vmatprep.subr.mxu0 0.0
        %2334 = vmatpush1.msra.mxu0 0.0
        %2335 = vmatprep.subr.mxu0 0.0
        %2336 = vmatpush1.msra.mxu0 0.0
        %2337 = vmatprep.subr.mxu0 0.0
        %2338 = vmatpush1.msra.mxu0 0.0
        %2339 = vmatprep.subr.mxu0 0.0
        %2340 = vmatpush1.msra.mxu0 0.0
        %2341 = vmatprep.subr.mxu0 0.0
        %2342 = vmatpush1.msra.mxu0 0.0
        %2343 = vmatprep.subr.mxu0 0.0
        %2344 = vmatpush1.msra.mxu0 0.0
        %2345 = vmatprep.subr.mxu0 0.0
        %2346 = vmatpush1.msra.mxu0 0.0
        %2347 = vmatprep.subr.mxu0 0.0
        %2348 = vmatpush1.msra.mxu0 0.0
        %2349 = vmatprep.subr.mxu0 0.0
        %2350 = vmatpush1.msra.mxu0 0.0
        %2351 = vmatprep.subr.mxu0 0.0
        %2352 = vmatpush1.msra.mxu0 0.0
        %2353 = vmatprep.subr.mxu0 0.0
        %2354 = vmatpush1.msra.mxu0 0.0
        %2355 = vmatprep.subr.mxu0 0.0
        %2356 = vmatpush1.msra.mxu0 0.0
        %2357 = vmatprep.subr.mxu0 0.0
        %2358 = vmatpush1.msra.mxu0 0.0
        %2359 = vmatprep.subr.mxu0 0.0
        %2360 = vmatpush1.msra.mxu0 0.0
        %2361 = vmatprep.subr.mxu0 0.0
        %2362 = vmatpush1.msra.mxu0 0.0
        %2363 = vmatprep.subr.mxu0 0.0
        %2364 = vmatpush1.msra.mxu0 0.0
        %2365 = vmatprep.subr.mxu0 0.0
        %2366 = vmatpush1.msra.mxu0 0.0
        %2367 = vmatprep.subr.mxu0 0.0
        %2368 = vmatpush1.msra.mxu0 0.0
        %2369 = vmatprep.subr.mxu0 0.0
        %2370 = vmatpush1.msra.mxu0 0.0
        %2371 = vmatprep.subr.mxu0 0.0
        %2372 = vmatpush1.msra.mxu0 0.0
        %2373 = vmatprep.subr.mxu0 0.0
        %2374 = vmatpush1.msra.mxu0 0.0
        %2375 = vmatprep.subr.mxu0 0.0
        %2376 = vmatpush1.msra.mxu0 0.0
        %2377 = vmatprep.subr.mxu0 0.0
        %2378 = vmatpush1.msra.mxu0 0.0
        %2379 = vmatprep.subr.mxu0 0.0
        %2380 = vmatpush1.msra.mxu0 0.0
        %2381 = vmatprep.subr.mxu0 0.0
        %2382 = vmatpush1.msra.mxu0 0.0
        %2383 = vmatprep.subr.mxu0 0.0
        %2384 = vmatpush1.msra.mxu0 0.0
        %2385 = vmatprep.subr.mxu0 0.0
        %2386 = vmatpush1.msra.mxu0 0.0
        %2387 = vmatprep.mubr.f32.mxu0 0.0
        %2388 = vmatmul.mubr.f32.gmra.mrb[0].mxu0 %v2318
        %v2389 = vpop.f32.mrb[0].mxu0
        %v2390 = vadd.f32 0.0, %v2389
        %v2391 = vpop.f32.mrb[0].mxu0
        %2392 = vmatprep.mubr.f32.mxu0 0.0
        %2393 = vmatmul.mubr.f32.gmra.mrb[0].mxu0 %v2321
        %v2394 = vpop.f32.mrb[0].mxu0
        %v2395 = vadd.f32 0.0, %v2394
        %v2396 = vpop.f32.mrb[0].mxu0
        %2397 = vdwg.mxu0
        %2400 = vrot.lane.b32.xlu0 %v2390, 16
        %v2401 = vpop.permute.xlu0 %2400
        %2402 = vrot.lane.b32.xlu0 %v2395, 16
        %v2403 = vpop.permute.xlu0 %2402
        %v2406 = vsel %vm1206, %v2306, %v2401
        %v2407 = vsel %vm1206, %v2311, %v2403
        %v2409 = vlaneseq
        %v2410 = vshrl.u32 %v2409, 7
        %v2411 = vsub.s32 0, %v2410
        %v2412 = vrot.slane %v1999, %v2411
        %v2415 = vsel %vm1004, %v2406, 0
        %v2418 = vsel %vm1004, %v2407, 0
        %2420 = vmatprep.subr.mxu0 0.0
        %2421 = vmatpush1.msra.mxu0 %v1995
        %2422 = vmatprep.subr.mxu0 0.0
        %2423 = vmatpush1.msra.mxu0 %v1996
        %2424 = vmatprep.subr.mxu0 0.0
        %2425 = vmatpush1.msra.mxu0 %v1997
        %2426 = vmatprep.subr.mxu0 0.0
        %2427 = vmatpush1.msra.mxu0 %v1998
        %2428 = vmatprep.subr.mxu0 0.0
        %2429 = vmatpush1.msra.mxu0 0.0
        %2430 = vmatprep.subr.mxu0 0.0
        %2431 = vmatpush1.msra.mxu0 0.0
        %2432 = vmatprep.subr.mxu0 0.0
        %2433 = vmatpush1.msra.mxu0 0.0
        %2434 = vmatprep.subr.mxu0 0.0
        %2435 = vmatpush1.msra.mxu0 0.0
        %2436 = vmatprep.subr.mxu0 0.0
        %2437 = vmatpush1.msra.mxu0 0.0
        %2438 = vmatprep.subr.mxu0 0.0
        %2439 = vmatpush1.msra.mxu0 0.0
        %2440 = vmatprep.subr.mxu0 0.0
        %2441 = vmatpush1.msra.mxu0 0.0
        %2442 = vmatprep.subr.mxu0 0.0
        %2443 = vmatpush1.msra.mxu0 0.0
        %2444 = vmatprep.subr.mxu0 0.0
        %2445 = vmatpush1.msra.mxu0 0.0
        %2446 = vmatprep.subr.mxu0 0.0
        %2447 = vmatpush1.msra.mxu0 0.0
        %2448 = vmatprep.subr.mxu0 0.0
        %2449 = vmatpush1.msra.mxu0 0.0
        %2450 = vmatprep.subr.mxu0 0.0
        %2451 = vmatpush1.msra.mxu0 0.0
        %2452 = vmatprep.subr.mxu0 0.0
        %2453 = vmatpush1.msra.mxu0 0.0
        %2454 = vmatprep.subr.mxu0 0.0
        %2455 = vmatpush1.msra.mxu0 0.0
        %2456 = vmatprep.subr.mxu0 0.0
        %2457 = vmatpush1.msra.mxu0 0.0
        %2458 = vmatprep.subr.mxu0 0.0
        %2459 = vmatpush1.msra.mxu0 0.0
        %2460 = vmatprep.subr.mxu0 0.0
        %2461 = vmatpush1.msra.mxu0 0.0
        %2462 = vmatprep.subr.mxu0 0.0
        %2463 = vmatpush1.msra.mxu0 0.0
        %2464 = vmatprep.subr.mxu0 0.0
        %2465 = vmatpush1.msra.mxu0 0.0
        %2466 = vmatprep.subr.mxu0 0.0
        %2467 = vmatpush1.msra.mxu0 0.0
        %2468 = vmatprep.subr.mxu0 0.0
        %2469 = vmatpush1.msra.mxu0 0.0
        %2470 = vmatprep.subr.mxu0 0.0
        %2471 = vmatpush1.msra.mxu0 0.0
        %2472 = vmatprep.subr.mxu0 0.0
        %2473 = vmatpush1.msra.mxu0 0.0
        %2474 = vmatprep.subr.mxu0 0.0
        %2475 = vmatpush1.msra.mxu0 0.0
        %2476 = vmatprep.subr.mxu0 0.0
        %2477 = vmatpush1.msra.mxu0 0.0
        %2478 = vmatprep.subr.mxu0 0.0
        %2479 = vmatpush1.msra.mxu0 0.0
        %2480 = vmatprep.subr.mxu0 0.0
        %2481 = vmatpush1.msra.mxu0 0.0
        %2482 = vmatprep.subr.mxu0 0.0
        %2483 = vmatpush1.msra.mxu0 0.0
        %2484 = vmatprep.mubr.f32.mxu0 0.0
        %2485 = vmatmul.mubr.f32.gmra.mrb[0].mxu0 %v2415
        %v2486 = vpop.f32.mrb[0].mxu0
        %v2487 = vadd.f32 %v2412, %v2486
        %v2488 = vpop.f32.mrb[0].mxu0
        %2489 = vmatprep.mubr.f32.mxu0 0.0
        %2490 = vmatmul.mubr.f32.gmra.mrb[0].mxu0 %v2418
        %v2491 = vpop.f32.mrb[0].mxu0
        %v2492 = vadd.f32 %v2412, %v2491
        %v2493 = vpop.f32.mrb[0].mxu0
        %2494 = vdwg.mxu0
        %v2495 = vadd.f32 %v1776, %v2487
        %v2496 = vadd.f32 %v1777, %v2492
        %v2497 = vmul.f32 %v2495, %v2495
        %v2498 = vmul.f32 %v2496, %v2496
        %v2499 = vsel %vm1004, %v2497, 0.0
        %2500 = vadd.xlane.f32.xlu0 %v2499
        %v2501 = vpop.xlane.xlu0 %2500
        %v2502 = vsel %vm1004, %v2498, 0.0
        %2503 = vadd.xlane.f32.xlu0 %v2502
        %v2504 = vpop.xlane.xlu0 %2503
        %v2505 = vmul.f32 %v2501, %v1011
        %v2506 = vmul.f32 %v2504, %v1011
        %v2507 = vadd.f32 %v2505, 1e-06
        %v2508 = vadd.f32 %v2506, 1e-06
        %v2509 = vrsqrt.pop %v2507
        %v2510 = vrsqrt.pop %v2508
        %v2511 = vmul.f32 %v2495, %v2509
        %v2512 = vmul.f32 %v2496, %v2510
        %v2513 = vlaneseq
        %v2514 = vshrl.u32 %v2513, 7
        %v2515 = vsub.s32 4, %v2514
        %v2516 = vrot.slane %v1020, %v2515
        %v2517 = vmul.f32 %v2511, %v2516
        %v2518 = vmul.f32 %v2512, %v2516
        %v2519 = vlaneseq
        %v2520 = vshrl.u32 %v2519, 7
        %v2521 = vsub.s32 3, %v2520
        %v2522 = vrot.slane %v996, %v2521
        %v2523 = vadd.f32 %v2517, %v2522
        %v2524 = vadd.f32 %v2518, %v2522
        %v2525 = vld [vmem:[#allocation20] sm:$0xff]
        %v2526 = vld [vmem:[#allocation20 + $0x8] sm:$0xff]
        %v2527 = vld [vmem:[#allocation20 + $0x10] sm:$0xff]
        %v2528 = vld [vmem:[#allocation20 + $0x18] sm:$0xff]
        %v2529 = vld [vmem:[%s21] sm:$0x1]
        %v2531 = vlaneseq
        %v2532 = vshrl.u32 %v2531, 7
        %v2533 = vsub.s32 0, %v2532
        %v2534 = vrot.slane %v2529, %v2533
        %v2537 = vsel %vm1004, %v2523, 0
        %v2540 = vsel %vm1004, %v2524, 0
        %2542 = vmatprep.subr.mxu0 0.0
        %2543 = vmatpush1.msra.mxu0 %v2525
        %2544 = vmatprep.subr.mxu0 0.0
        %2545 = vmatpush1.msra.mxu0 %v2526
        %2546 = vmatprep.subr.mxu0 0.0
        %2547 = vmatpush1.msra.mxu0 %v2527
        %2548 = vmatprep.subr.mxu0 0.0
        %2549 = vmatpush1.msra.mxu0 %v2528
        %2550 = vmatprep.subr.mxu0 0.0
        %2551 = vmatpush1.msra.mxu0 0.0
        %2552 = vmatprep.subr.mxu0 0.0
        %2553 = vmatpush1.msra.mxu0 0.0
        %2554 = vmatprep.subr.mxu0 0.0
        %2555 = vmatpush1.msra.mxu0 0.0
        %2556 = vmatprep.subr.mxu0 0.0
        %2557 = vmatpush1.msra.mxu0 0.0
        %2558 = vmatprep.subr.mxu0 0.0
        %2559 = vmatpush1.msra.mxu0 0.0
        %2560 = vmatprep.subr.mxu0 0.0
        %2561 = vmatpush1.msra.mxu0 0.0
        %2562 = vmatprep.subr.mxu0 0.0
        %2563 = vmatpush1.msra.mxu0 0.0
        %2564 = vmatprep.subr.mxu0 0.0
        %2565 = vmatpush1.msra.mxu0 0.0
        %2566 = vmatprep.subr.mxu0 0.0
        %2567 = vmatpush1.msra.mxu0 0.0
        %2568 = vmatprep.subr.mxu0 0.0
        %2569 = vmatpush1.msra.mxu0 0.0
        %2570 = vmatprep.subr.mxu0 0.0
        %2571 = vmatpush1.msra.mxu0 0.0
        %2572 = vmatprep.subr.mxu0 0.0
        %2573 = vmatpush1.msra.mxu0 0.0
        %2574 = vmatprep.subr.mxu0 0.0
        %2575 = vmatpush1.msra.mxu0 0.0
        %2576 = vmatprep.subr.mxu0 0.0
        %2577 = vmatpush1.msra.mxu0 0.0
        %2578 = vmatprep.subr.mxu0 0.0
        %2579 = vmatpush1.msra.mxu0 0.0
        %2580 = vmatprep.subr.mxu0 0.0
        %2581 = vmatpush1.msra.mxu0 0.0
        %2582 = vmatprep.subr.mxu0 0.0
        %2583 = vmatpush1.msra.mxu0 0.0
        %2584 = vmatprep.subr.mxu0 0.0
        %2585 = vmatpush1.msra.mxu0 0.0
        %2586 = vmatprep.subr.mxu0 0.0
        %2587 = vmatpush1.msra.mxu0 0.0
        %2588 = vmatprep.subr.mxu0 0.0
        %2589 = vmatpush1.msra.mxu0 0.0
        %2590 = vmatprep.subr.mxu0 0.0
        %2591 = vmatpush1.msra.mxu0 0.0
        %2592 = vmatprep.subr.mxu0 0.0
        %2593 = vmatpush1.msra.mxu0 0.0
        %2594 = vmatprep.subr.mxu0 0.0
        %2595 = vmatpush1.msra.mxu0 0.0
        %2596 = vmatprep.subr.mxu0 0.0
        %2597 = vmatpush1.msra.mxu0 0.0
        %2598 = vmatprep.subr.mxu0 0.0
        %2599 = vmatpush1.msra.mxu0 0.0
        %2600 = vmatprep.subr.mxu0 0.0
        %2601 = vmatpush1.msra.mxu0 0.0
        %2602 = vmatprep.subr.mxu0 0.0
        %2603 = vmatpush1.msra.mxu0 0.0
        %2604 = vmatprep.subr.mxu0 0.0
        %2605 = vmatpush1.msra.mxu0 0.0
        %2606 = vmatprep.mubr.f32.mxu0 0.0
        %2607 = vmatmul.mubr.f32.gmra.mrb[0].mxu0 %v2537
        %v2608 = vpop.f32.mrb[0].mxu0
        %v2609 = vadd.f32 %v2534, %v2608
        %v2610 = vpop.f32.mrb[0].mxu0
        %2611 = vmatprep.mubr.f32.mxu0 0.0
        %2612 = vmatmul.mubr.f32.gmra.mrb[0].mxu0 %v2540
        %v2613 = vpop.f32.mrb[0].mxu0
        %v2614 = vadd.f32 %v2534, %v2613
        %v2615 = vpop.f32.mrb[0].mxu0
        %2616 = vdwg.mxu0
        %v2617 = vmul.f32 %v2609, %v2609
        %v2618 = vmul.f32 %v2614, %v2614
        %v2619 = vmul.f32 %v2609, %v2617
        %v2620 = vmul.f32 %v2614, %v2618
        %v2621 = vmul.f32 %v2619, 0.044715
        %v2622 = vmul.f32 %v2620, 0.044715
        %v2623 = vadd.f32 %v2609, %v2621
        %v2624 = vadd.f32 %v2614, %v2622
        %v2625 = vmul.f32 %v2623, 0.7978846
        %v2626 = vmul.f32 %v2624, 0.7978846
        %v2627 = vtanh.pop %v2625
        %v2628 = vtanh.pop %v2626
        %v2629 = vadd.f32 %v2627, 1.0
        %v2630 = vadd.f32 %v2628, 1.0
        %v2631 = vmul.f32 %v2629, 0.5
        %v2632 = vmul.f32 %v2630, 0.5
        %v2633 = vmul.f32 %v2609, %v2631
        %v2634 = vmul.f32 %v2614, %v2632
        %v2635 = vld [vmem:[%s22] sm:$0xff]
        %v2636 = vld [vmem:[%s22 + $0x8] sm:$0xff]
        %v2637 = vld [vmem:[%s22 + $0x10] sm:$0xff]
        %v2638 = vld [vmem:[%s22 + $0x18] sm:$0xff]
        %v2639 = vld [vmem:[%s22 + $0x20] sm:$0xff]
        %v2640 = vld [vmem:[%s22 + $0x28] sm:$0xff]
        %v2641 = vld [vmem:[%s22 + $0x30] sm:$0xff]
        %v2642 = vld [vmem:[%s22 + $0x38] sm:$0xff]
        %v2643 = vld [vmem:[%s22 + $0x40] sm:$0xff]
        %v2644 = vld [vmem:[%s22 + $0x48] sm:$0xff]
        %v2645 = vld [vmem:[%s22 + $0x50] sm:$0xff]
        %v2646 = vld [vmem:[%s22 + $0x58] sm:$0xff]
        %v2647 = vld [vmem:[%s22 + $0x60] sm:$0xff]
        %v2648 = vld [vmem:[%s22 + $0x68] sm:$0xff]
        %v2649 = vld [vmem:[%s22 + $0x70] sm:$0xff]
        %v2650 = vld [vmem:[%s22 + $0x78] sm:$0xff]
        %v2651 = vld [vmem:[%s23] sm:$0x1]
        %v2653 = vlaneseq
        %v2654 = vshrl.u32 %v2653, 7
        %v2655 = vsub.s32 0, %v2654
        %v2656 = vrot.slane %v2651, %v2655
        %2658 = vmatprep.subr.mxu0 0.0
        %2659 = vmatpush1.msra.mxu0 %v2635
        %2660 = vmatprep.subr.mxu0 0.0
        %2661 = vmatpush1.msra.mxu0 %v2636
        %2662 = vmatprep.subr.mxu0 0.0
        %2663 = vmatpush1.msra.mxu0 %v2637
        %2664 = vmatprep.subr.mxu0 0.0
        %2665 = vmatpush1.msra.mxu0 %v2638
        %2666 = vmatprep.subr.mxu0 0.0
        %2667 = vmatpush1.msra.mxu0 %v2639
        %2668 = vmatprep.subr.mxu0 0.0
        %2669 = vmatpush1.msra.mxu0 %v2640
        %2670 = vmatprep.subr.mxu0 0.0
        %2671 = vmatpush1.msra.mxu0 %v2641
        %2672 = vmatprep.subr.mxu0 0.0
        %2673 = vmatpush1.msra.mxu0 %v2642
        %2674 = vmatprep.subr.mxu0 0.0
        %2675 = vmatpush1.msra.mxu0 %v2643
        %2676 = vmatprep.subr.mxu0 0.0
        %2677 = vmatpush1.msra.mxu0 %v2644
        %2678 = vmatprep.subr.mxu0 0.0
        %2679 = vmatpush1.msra.mxu0 %v2645
        %2680 = vmatprep.subr.mxu0 0.0
        %2681 = vmatpush1.msra.mxu0 %v2646
        %2682 = vmatprep.subr.mxu0 0.0
        %2683 = vmatpush1.msra.mxu0 %v2647
        %2684 = vmatprep.subr.mxu0 0.0
        %2685 = vmatpush1.msra.mxu0 %v2648
        %2686 = vmatprep.subr.mxu0 0.0
        %2687 = vmatpush1.msra.mxu0 %v2649
        %2688 = vmatprep.subr.mxu0 0.0
        %2689 = vmatpush1.msra.mxu0 %v2650
        %2690 = vmatprep.subr.mxu0 0.0
        %2691 = vmatpush1.msra.mxu0 0.0
        %2692 = vmatprep.subr.mxu0 0.0
        %2693 = vmatpush1.msra.mxu0 0.0
        %2694 = vmatprep.subr.mxu0 0.0
        %2695 = vmatpush1.msra.mxu0 0.0
        %2696 = vmatprep.subr.mxu0 0.0
        %2697 = vmatpush1.msra.mxu0 0.0
        %2698 = vmatprep.subr.mxu0 0.0
        %2699 = vmatpush1.msra.mxu0 0.0
        %2700 = vmatprep.subr.mxu0 0.0
        %2701 = vmatpush1.msra.mxu0 0.0
        %2702 = vmatprep.subr.mxu0 0.0
        %2703 = vmatpush1.msra.mxu0 0.0
        %2704 = vmatprep.subr.mxu0 0.0
        %2705 = vmatpush1.msra.mxu0 0.0
        %2706 = vmatprep.subr.mxu0 0.0
        %2707 = vmatpush1.msra.mxu0 0.0
        %2708 = vmatprep.subr.mxu0 0.0
        %2709 = vmatpush1.msra.mxu0 0.0
        %2710 = vmatprep.subr.mxu0 0.0
        %2711 = vmatpush1.msra.mxu0 0.0
        %2712 = vmatprep.subr.mxu0 0.0
        %2713 = vmatpush1.msra.mxu0 0.0
        %2714 = vmatprep.subr.mxu0 0.0
        %2715 = vmatpush1.msra.mxu0 0.0
        %2716 = vmatprep.subr.mxu0 0.0
        %2717 = vmatpush1.msra.mxu0 0.0
        %2718 = vmatprep.subr.mxu0 0.0
        %2719 = vmatpush1.msra.mxu0 0.0
        %2720 = vmatprep.subr.mxu0 0.0
        %2721 = vmatpush1.msra.mxu0 0.0
        %2722 = vmatprep.mubr.f32.mxu0 0.0
        %2723 = vmatmul.mubr.f32.gmra.mrb[0].mxu0 %v2633
        %v2724 = vpop.f32.mrb[0].mxu0
        %v2725 = vadd.f32 %v2656, %v2724
        %v2726 = vpop.f32.mrb[0].mxu0
        %2727 = vmatprep.mubr.f32.mxu0 0.0
        %2728 = vmatmul.mubr.f32.gmra.mrb[0].mxu0 %v2634
        %v2729 = vpop.f32.mrb[0].mxu0
        %v2730 = vadd.f32 %v2656, %v2729
        %v2731 = vpop.f32.mrb[0].mxu0
        %2732 = vdwg.mxu0
        %v2733 = vlaneseq
        %v2734 = vshrl.u32 %v2733, 7
        %v2735 = vsub.s32 5, %v2734
        %v2736 = vrot.slane %v996, %v2735
        %v2737 = vmul.f32 %v2725, %v2736
        %v2738 = vmul.f32 %v2730, %v2736
        %v2739 = vadd.f32 %v2495, %v2737
        %v2740 = vadd.f32 %v2496, %v2738
        %2741 = vst.msk [vmem:[%s973] sm:$0xff] %vm1004, %v2739
        %2742 = vst.msk [vmem:[%s973 + $0x8] sm:$0xff] %vm1004, %v2740
        %s2743 = sand.u32 %s591, 1
        %s2744 = scalar_lea.sflag [#allocation4], %s2743
        %s2745 = sand.u32 %s591, 1
        %s2746 = smul.addr %s2745, 16
        %s2747 = scalar_lea.vmem [#allocation22], %s2746
        // Predicated region
        $region165: #{tpu_custom_call.1} parent=115 // pred_check
          %p2748 = pneg %p601
        $region166: #{tpu_custom_call.1} parent=115 // pred_check_branch
          %2750 = sbr.rel (%p2748) target = $region168
        $region167: #{tpu_custom_call.1} parent=115 // pred_region
          %s2752 = ssub.s32 256, 256
          %2753 = vsyncadd %s2744, %s2752
          %s2754 = smul.addr %s49, 2
          %s2755 = smul.addr %s2754, 128
          %s2756 = scalar_lea.hbm %s24, %s2755
          %s2757 = sshll.u32 %s2747, 4
          %s2758 = int_to_ptr.vmem [resolvable:$true] %s2757
          %2763 = dma.vmem_to_hbm [thread:$0]  %s2758, 256, %s2756, %s2744, 128, 128, 8
        $region168: #{tpu_custom_call.1} parent=115 // pred_fallthru
          _
      $region116: #{tpu_custom_call.1} parent=5 // pred_fallthru
        _
      %p2764 = scmp.le.s32.totalorder 2, %s44
      // Predicated region
      $region169: #{tpu_custom_call.1} parent=5 // pred_check
        %p2765 = pneg %p2764
      $region170: #{tpu_custom_call.1} parent=5 // pred_check_branch
        %2767 = sbr.rel (%p2765) target = $region172
      $region171: #{tpu_custom_call.1} parent=5 // pred_region
        %s2768 = ssub.s32 %s44, 2
        // Predicated region
        $region173: #{tpu_custom_call.1} parent=171 // pred_check
          %p2769 = pneg %p607
        $region174: #{tpu_custom_call.1} parent=171 // pred_check_branch
          %2771 = sbr.rel (%p2769) target = $region176
        $region175: #{tpu_custom_call.1} parent=171 // pred_region
          %s2772 = sand.u32 %s592, 1
          %s2773 = scalar_lea.sflag [#allocation4], %s2772
          %s2774 = sand.u32 %s592, 1
          %s2775 = smul.addr %s2774, 16
          %s2776 = scalar_lea.vmem [#allocation22], %s2775
          %2777 = dma.done %s2773, 256
        $region176: #{tpu_custom_call.1} parent=171 // pred_fallthru
          _
      $region172: #{tpu_custom_call.1} parent=5 // pred_fallthru
        _
    $region6: #{tpu_custom_call.1} parent=1 // loop_footer
      %s48 = sadd.s32 1, %s44
    $region7: #{tpu_custom_call.1} parent=1 // loop_footer_branch
      %43 = sbr.rel target = $region3
    $region8: #{tpu_custom_call.1} parent=1 // loop_exit
      _
    %2778 = vsyncpa [#allocation3], 1
    %s2779 = scalar_lea.sflag [#allocation3], 1
    %2780 = vsyncpa %s2779, 1
    %2781 = vsyncpa [#allocation6], 1
    %s2782 = scalar_lea.sflag [#allocation6], 1
    %2783 = vsyncpa %s2782, 1
    %2784 = vsyncpa [#allocation9], 1
    %2785 = vsyncpa [#allocation12], 1
    %2786 = vsyncpa [#allocation15], 1
    %2787 = vsyncpa [#allocation18], 1
    %2788 = vsyncpa [#allocation21], 1
    %2789 = vsyncpa [#allocation4], 1
    %s2790 = scalar_lea.sflag [#allocation4], 1
    %2791 = vsyncpa %s2790, 1

</llo_original>
